<compile_context>
chip_gen: v7x
topology: tpu7x:2x2x1
jax: 0.10.0
libtpu: 0.0.40
codegen_flags: <defaults>
</compile_context>

<pallas_src>
import functools

import jax
import jax.numpy as jnp
import numpy as np
from jax import lax
from jax.experimental import pallas as pl
from jax.experimental.pallas import tpu as pltpu


def _origin_interaction_kernel(wtile_ref, bq_ref, bk_ref, bias_ref,
                               q_ref, k_ref, v_ref, *refs,
                               inv_temperature, batch_tile,
                               has_st, has_mask, return_attn):
    # ---- parse optional refs (static layout) ----
    i = 0
    st_ref = None
    mask_ref = None
    if has_st:
        st_ref = refs[i]; i += 1
    if has_mask:
        mask_ref = refs[i]; i += 1
    out_ref = refs[i]; i += 1
    attn_ref = refs[i] if return_attn else None

    f32 = jnp.float32
    hp = lax.Precision.HIGHEST
    contract_last = (((1,), (1,)), ((), ()))

    # Grid-invariant constants: constant index_map -> DMA'd once, stay resident.
    wtile = wtile_ref[...]              # (Lq, Lk)  W[qi % c, ki % c]
    bq = bq_ref[...]                    # (Lq, Lq)  1[qi//c == qj//c]
    bk = bk_ref[...]                    # (Lk, Lk)  1[ki//c == kj//c]
    bias = bias_ref[0]                  # scalar    dk * fc_bias  (SMEM)

    def body(b, carry):
        q = q_ref[b]                    # (Lq, dk)
        k = k_ref[b]                    # (Lk, dk)
        v = v_ref[b]                    # (Lk, dv)

        # global weight S = q @ k^T   (MXU, f32 accumulate, full precision)
        s = lax.dot_general(q, k, contract_last,
                            preferred_element_type=f32, precision=hp)

        # local term: weighted block pooling + in-block broadcast, fused into
        # two matmuls:  local = Bq @ (S * Wtile) @ Bk
        sw = s * wtile                                              # VPU
        tmp = jnp.dot(bq, sw, preferred_element_type=f32, precision=hp)
        local = jnp.dot(tmp, bk, preferred_element_type=f32, precision=hp)

        attn = s + local + bias
        if has_st:
            attn = attn * st_ref[b].astype(f32)
        attn = attn * inv_temperature
        if has_mask:
            # Additive large-negative mask: exp underflows to exactly 0, same
            # as torch's -inf except on fully masked rows (torch -> NaN there).
            attn = jnp.where(mask_ref[b] != 0, f32(-1e30), attn)

        # softmax over the key axis (torch dim=2) — exact normalization
        m = jnp.max(attn, axis=-1, keepdims=True)
        e = jnp.exp(attn - m)
        denom = jnp.sum(e, axis=-1, keepdims=True)
        p = e * (f32(1.0) / denom)

        if return_attn:
            attn_ref[b] = p.astype(attn_ref.dtype)
        out_ref[b] = jnp.dot(p.astype(v.dtype), v,
                             preferred_element_type=f32,
                             precision=hp).astype(out_ref.dtype)
        return carry

    if batch_tile <= 2:
        for b in range(batch_tile):            # tiny static unroll
            body(b, 0)
    else:
        lax.fori_loop(0, batch_tile, body, 0)  # bounds vreg live ranges at big TB


def origin_interaction(q, k, v, fc_weight, fc_bias, temperature,
                       mask=None, st_weight=None, clip_size=3,
                       batch_tile=None, return_attn=True, attn_dtype=None,
                       vmem_limit_bytes=48 * 1024 * 1024):
    q = jnp.asarray(q)
    k = jnp.asarray(k)
    v = jnp.asarray(v)
    B, Lq, dk = q.shape
    _, Lk, _ = k.shape
    dv = v.shape[-1]
    c = clip_size
    assert Lq % c == 0 and Lk % c == 0
    f32 = jnp.float32

    has_st = st_weight is not None
    has_mask = mask is not None
    if has_st:
        st_weight = jnp.asarray(st_weight)     # native dtype, upcast in-kernel
    if has_mask:
        mask_i8 = jnp.broadcast_to(jnp.asarray(mask), (B, Lq, Lk)).astype(jnp.int8)

    # ---- grid-invariant constants (traceable jnp; a few KB, resident in VMEM) --
    # fc.weight is (1, c*c); flattened index (after the torch permute) is
    # a*c + bb with a = q-within-block offset, bb = k-within-block offset.
    wmat = jnp.asarray(fc_weight, f32).reshape(c, c)
    wtile = wmat[(jnp.arange(Lq) % c)[:, None], (jnp.arange(Lk) % c)[None, :]]
    qblk = jnp.arange(Lq) // c
    kblk = jnp.arange(Lk) // c
    bq = (qblk[:, None] == qblk[None, :]).astype(f32)    # (Lq, Lq) block mask
    bk = (kblk[:, None] == kblk[None, :]).astype(f32)    # (Lk, Lk) block mask
    bias_arr = (jnp.asarray(fc_bias, f32).reshape(-1)[:1] * dk)   # (1,) SMEM

    # ---- batch tile: VMEM-budget aware; keep >= 2 grid steps when B >= 2 ------
    per_b = (Lq * dk * q.dtype.itemsize + Lk * dk * k.dtype.itemsize
             + Lk * dv * v.dtype.itemsize + Lq * dv * q.dtype.itemsize)
    if has_st:
        per_b += Lq * Lk * st_weight.dtype.itemsize
    if has_mask:
        per_b += Lq * Lk                                  # int8 mask
    if return_attn:
        per_b += Lq * Lk * q.dtype.itemsize
    if batch_tile is None:
        cap = min(8, max(1, B // 2))                      # >=2 steps -> v7x 2 TCs
        fit = max(1, (vmem_limit_bytes // 2) // max(1, 2 * per_b))  # dbl-buffered
        cap = max(1, min(cap, fit))
        batch_tile = 1
        for t in range(1, cap + 1):
            if B % t == 0:
                batch_tile = t
    TB = batch_tile
    assert B % TB == 0
    grid = (B // TB,)

    inputs = [wtile, bq, bk, bias_arr, q, k, v]
    in_specs = [
        pl.BlockSpec((Lq, Lk), lambda i: (0, 0)),                # wtile (resident)
        pl.BlockSpec((Lq, Lq), lambda i: (0, 0)),                # Bq    (resident)
        pl.BlockSpec((Lk, Lk), lambda i: (0, 0)),                # Bk    (resident)
        pl.BlockSpec(memory_space=pltpu.MemorySpace.SMEM),       # fc bias scalar
        pl.BlockSpec((TB, Lq, dk), lambda i: (i, 0, 0)),         # q
        pl.BlockSpec((TB, Lk, dk), lambda i: (i, 0, 0)),         # k
        pl.BlockSpec((TB, Lk, dv), lambda i: (i, 0, 0)),         # v
    ]
    if has_st:
        inputs.append(st_weight)
        in_specs.append(pl.BlockSpec((TB, Lq, Lk), lambda i: (i, 0, 0)))
    if has_mask:
        inputs.append(mask_i8)
        in_specs.append(pl.BlockSpec((TB, Lq, Lk), lambda i: (i, 0, 0)))

    out_shapes = [jax.ShapeDtypeStruct((B, Lq, dv), q.dtype)]
    out_specs = [pl.BlockSpec((TB, Lq, dv), lambda i: (i, 0, 0))]
    if return_attn:
        adt = q.dtype if attn_dtype is None else jnp.dtype(attn_dtype)
        out_shapes.append(jax.ShapeDtypeStruct((B, Lq, Lk), adt))
        out_specs.append(pl.BlockSpec((TB, Lq, Lk), lambda i: (i, 0, 0)))

    kernel = functools.partial(
        _origin_interaction_kernel,
        inv_temperature=1.0 / float(temperature),
        batch_tile=TB,
        has_st=has_st,
        has_mask=has_mask,
        return_attn=return_attn,
    )

    results = pl.pallas_call(
        kernel,
        out_shape=tuple(out_shapes),
        grid_spec=pltpu.PrefetchScalarGridSpec(
            num_scalar_prefetch=0,
            grid=grid,
            in_specs=in_specs,
            out_specs=out_specs,
        ),
        compiler_params=pltpu.CompilerParams(
            dimension_semantics=("parallel",),
            vmem_limit_bytes=vmem_limit_bytes,
        ),
    )(*inputs)

    if return_attn:
        return results[0], results[1]
    return results[0], None


def reference(q, k, v, fc_w, fc_b, temperature, mask, st_weight, c):
    """Pure-JAX mirror of the torch forward (reshape/permute path)."""
    B, Lq, dk = q.shape
    _, Lk, _ = k.shape
    hp = jax.lax.Precision.HIGHEST
    itr = q[:, :, None, :] * k[:, None, :, :]                       # (B,Lq,Lk,dk)
    global_w = itr.sum(-1)
    l1, l2 = Lq // c, Lk // c
    t = itr.reshape(B, l1, c, l2, c, dk).transpose(0, 1, 3, 5, 2, 4)
    t = t.reshape(B, l1, l2, dk, c * c)
    t = jnp.einsum('blmdj,j->blmd', t, fc_w[0], precision=hp) + fc_b[0]
    t = jnp.broadcast_to(t[..., None], (B, l1, l2, dk, c * c))
    t = t.reshape(B, l1, l2, dk, c, c).transpose(0, 1, 4, 2, 5, 3)
    t = t.reshape(B, Lq, Lk, dk)
    local_w = t.sum(-1)
    attn = global_w + local_w
    if st_weight is not None:
        attn = attn * st_weight
    attn = attn / temperature
    if mask is not None:
        attn = jnp.where(mask, -jnp.inf, attn)
    attn = jax.nn.softmax(attn, axis=2)
    out = jnp.einsum('bqk,bkd->bqd', attn, v, precision=hp)
    return out, attn


if __name__ == "__main__":
    key = jax.random.PRNGKey(0)
    kq, kk, kv, kw, kb, kst = jax.random.split(key, 6)

    B, Lq, Lk, dk, dv, c = 2, 24, 24, 32, 32, 3
    q = jax.random.normal(kq, (B, Lq, dk), jnp.float32)
    k = jax.random.normal(kk, (B, Lk, dk), jnp.float32)
    v = jax.random.normal(kv, (B, Lk, dv), jnp.float32)

    # fc = nn.Linear(c*c, 1): xavier_normal_ weight, default uniform bias.
    xavier_std = float(np.sqrt(2.0 / (c * c + 1)))
    fc_w = jax.random.normal(kw, (1, c * c), jnp.float32) * xavier_std
    bound = 1.0 / float(np.sqrt(c * c))
    fc_b = jax.random.uniform(kb, (1,), jnp.float32, -bound, bound)

    temperature = float(np.sqrt(dk))
    st_weight = jax.random.uniform(kst, (B, Lq, Lk), jnp.float32, 0.5, 1.5)
    mask = jnp.broadcast_to(jnp.arange(Lk)[None, None, :] >= Lk - 4, (B, Lq, Lk))

    # --- with mask + st_weight ---
    out, attn = origin_interaction(q, k, v, fc_w, fc_b, temperature,
                                   mask=mask, st_weight=st_weight, clip_size=c)
    jax.block_until_ready((out, attn))
    ref_out, ref_attn = reference(q, k, v, fc_w, fc_b, temperature,
                                  mask, st_weight, c)
    assert np.allclose(np.asarray(attn), np.asarray(ref_attn), atol=2e-3, rtol=2e-3), \
        float(np.max(np.abs(np.asarray(attn) - np.asarray(ref_attn))))
    assert np.allclose(np.asarray(out), np.asarray(ref_out), atol=2e-3, rtol=2e-3), \
        float(np.max(np.abs(np.asarray(out) - np.asarray(ref_out))))

    # --- without mask / st_weight (exercises the gated fast path) ---
    out2, attn2 = origin_interaction(q, k, v, fc_w, fc_b, temperature,
                                     mask=None, st_weight=None, clip_size=c)
    jax.block_until_ready((out2, attn2))
    ref_out2, ref_attn2 = reference(q, k, v, fc_w, fc_b, temperature,
                                    None, None, c)
    assert np.allclose(np.asarray(attn2), np.asarray(ref_attn2), atol=2e-3, rtol=2e-3)
    assert np.allclose(np.asarray(out2), np.asarray(ref_out2), atol=2e-3, rtol=2e-3)

    print("KERNEL_OK")
</pallas_src>

<mosaic_0001>
module attributes {stable_mosaic.version = 11 : i64} {
  func.func @_origin_interaction_kernel(%arg0: i32, %arg1: memref<24x24xf32, #tpu.memory_space<vmem>>, %arg2: memref<24x24xf32, #tpu.memory_space<vmem>>, %arg3: memref<24x24xf32, #tpu.memory_space<vmem>>, %arg4: memref<1xf32, #tpu.memory_space<smem>>, %arg5: memref<1x24x32xf32, #tpu.memory_space<vmem>>, %arg6: memref<1x24x32xf32, #tpu.memory_space<vmem>>, %arg7: memref<1x24x32xf32, #tpu.memory_space<vmem>>, %arg8: memref<1x24x24xf32, #tpu.memory_space<vmem>>, %arg9: memref<1x24x24xi8, #tpu.memory_space<vmem>>, %arg10: memref<1x24x32xf32, #tpu.memory_space<vmem>>, %arg11: memref<1x24x24xf32, #tpu.memory_space<vmem>>) attributes {dimension_semantics = [#tpu.dimension_semantics<parallel>], iteration_bounds = array<i64: 2>, scalar_prefetch = 0 : i64, scratch_operands = 0 : i64, tpu.core_type = #tpu.core_type<tc>, window_params = [{pipeline_mode = #tpu.pipeline_mode<synchronous>, transform_indices = @transform_0, window_bounds = array<i64: 24, 24>}, {pipeline_mode = #tpu.pipeline_mode<synchronous>, transform_indices = @transform_1, window_bounds = array<i64: 24, 24>}, {pipeline_mode = #tpu.pipeline_mode<synchronous>, transform_indices = @transform_2, window_bounds = array<i64: 24, 24>}, {transform_indices = @transform_3, window_bounds = array<i64: 1>}, {transform_indices = @transform_4, window_bounds = array<i64: 1, 24, 32>}, {transform_indices = @transform_5, window_bounds = array<i64: 1, 24, 32>}, {transform_indices = @transform_6, window_bounds = array<i64: 1, 24, 32>}, {transform_indices = @transform_7, window_bounds = array<i64: 1, 24, 24>}, {transform_indices = @transform_8, window_bounds = array<i64: 1, 24, 24>}, {transform_indices = @transform_9, window_bounds = array<i64: 1, 24, 32>}, {transform_indices = @transform_10, window_bounds = array<i64: 1, 24, 24>}]} {
    %c0 = arith.constant 0 : index
    %c0_0 = arith.constant 0 : index
    %0 = vector.load %arg1[%c0, %c0_0] : memref<24x24xf32, #tpu.memory_space<vmem>>, vector<24x24xf32>
    %c0_1 = arith.constant 0 : index
    %c0_2 = arith.constant 0 : index
    %1 = vector.load %arg2[%c0_1, %c0_2] : memref<24x24xf32, #tpu.memory_space<vmem>>, vector<24x24xf32>
    %c0_3 = arith.constant 0 : index
    %c0_4 = arith.constant 0 : index
    %2 = vector.load %arg3[%c0_3, %c0_4] : memref<24x24xf32, #tpu.memory_space<vmem>>, vector<24x24xf32>
    %c0_5 = arith.constant 0 : index
    %3 = memref.load %arg4[%c0_5] : memref<1xf32, #tpu.memory_space<smem>>
    %c0_6 = arith.constant 0 : index
    %c0_7 = arith.constant 0 : index
    %c0_8 = arith.constant 0 : index
    %4 = vector.load %arg5[%c0_6, %c0_7, %c0_8] : memref<1x24x32xf32, #tpu.memory_space<vmem>>, vector<1x24x32xf32>
    %5 = vector.shape_cast %4 : vector<1x24x32xf32> to vector<24x32xf32>
    %c0_9 = arith.constant 0 : index
    %c0_10 = arith.constant 0 : index
    %c0_11 = arith.constant 0 : index
    %6 = vector.load %arg6[%c0_9, %c0_10, %c0_11] : memref<1x24x32xf32, #tpu.memory_space<vmem>>, vector<1x24x32xf32>
    %7 = vector.shape_cast %6 : vector<1x24x32xf32> to vector<24x32xf32>
    %c0_12 = arith.constant 0 : index
    %c0_13 = arith.constant 0 : index
    %c0_14 = arith.constant 0 : index
    %8 = vector.load %arg7[%c0_12, %c0_13, %c0_14] : memref<1x24x32xf32, #tpu.memory_space<vmem>>, vector<1x24x32xf32>
    %9 = vector.shape_cast %8 : vector<1x24x32xf32> to vector<24x32xf32>
    %cst = arith.constant dense<0.000000e+00> : vector<24x24xf32>
    %10 = tpu.matmul %5, %7, %cst {dimension_numbers = #tpu.dot_dimension_numbers<[1], [1], [0], [0], [0, 0, 1, 0], [], []>, precision = #tpu.contract_precision<fp32>} : vector<24x32xf32>, vector<24x32xf32>, vector<24x24xf32> -> vector<24x24xf32>
    %11 = arith.mulf %10, %0 : vector<24x24xf32>
    %cst_15 = arith.constant dense<0.000000e+00> : vector<24x24xf32>
    %12 = tpu.matmul %1, %11, %cst_15 {dimension_numbers = #tpu.dot_dimension_numbers<[1], [0], [0], [1], [0, 0, 1, 1], [], []>, precision = #tpu.contract_precision<fp32>} : vector<24x24xf32>, vector<24x24xf32>, vector<24x24xf32> -> vector<24x24xf32>
    %cst_16 = arith.constant dense<0.000000e+00> : vector<24x24xf32>
    %13 = tpu.matmul %12, %2, %cst_16 {dimension_numbers = #tpu.dot_dimension_numbers<[1], [0], [0], [1], [0, 0, 1, 1], [], []>, precision = #tpu.contract_precision<fp32>} : vector<24x24xf32>, vector<24x24xf32>, vector<24x24xf32> -> vector<24x24xf32>
    %14 = arith.addf %10, %13 : vector<24x24xf32>
    %15 = vector.broadcast %3 : f32 to vector<24x24xf32>
    %16 = arith.addf %14, %15 : vector<24x24xf32>
    %c0_17 = arith.constant 0 : index
    %c0_18 = arith.constant 0 : index
    %c0_19 = arith.constant 0 : index
    %17 = vector.load %arg8[%c0_17, %c0_18, %c0_19] : memref<1x24x24xf32, #tpu.memory_space<vmem>>, vector<1x24x24xf32>
    %18 = vector.shape_cast %17 : vector<1x24x24xf32> to vector<24x24xf32>
    %19 = arith.mulf %16, %18 : vector<24x24xf32>
    %cst_20 = arith.constant 0.176776692 : f32
    %20 = vector.broadcast %cst_20 : f32 to vector<24x24xf32>
    %21 = arith.mulf %19, %20 : vector<24x24xf32>
    %c0_21 = arith.constant 0 : index
    %c0_22 = arith.constant 0 : index
    %c0_23 = arith.constant 0 : index
    %22 = vector.load %arg9[%c0_21, %c0_22, %c0_23] : memref<1x24x24xi8, #tpu.memory_space<vmem>>, vector<1x24x24xi8>
    %23 = vector.shape_cast %22 : vector<1x24x24xi8> to vector<24x24xi8>
    %c0_i8 = arith.constant 0 : i8
    %24 = vector.broadcast %c0_i8 : i8 to vector<24x24xi8>
    %25 = arith.cmpi ne, %23, %24 : vector<24x24xi8>
    %cst_24 = arith.constant -1.000000e+30 : f32
    %26 = vector.broadcast %cst_24 : f32 to vector<24x24xf32>
    %27 = arith.select %25, %26, %21 : vector<24x24xi1>, vector<24x24xf32>
    %cst_25 = arith.constant dense<0xFF800000> : vector<24xf32>
    %28 = vector.multi_reduction <maximumf>, %27, %cst_25 [1] : vector<24x24xf32> to vector<24xf32>
    %29 = vector.shape_cast %28 : vector<24xf32> to vector<24x1xf32>
    %30 = vector.broadcast %29 : vector<24x1xf32> to vector<24x24xf32>
    %31 = arith.subf %27, %30 : vector<24x24xf32>
    %32 = math.exp %31 : vector<24x24xf32>
    %cst_26 = arith.constant dense<0.000000e+00> : vector<24xf32>
    %33 = vector.multi_reduction <add>, %32, %cst_26 [1] : vector<24x24xf32> to vector<24xf32>
    %34 = vector.shape_cast %33 : vector<24xf32> to vector<24x1xf32>
    %cst_27 = arith.constant 1.000000e+00 : f32
    %35 = vector.broadcast %cst_27 : f32 to vector<24x1xf32>
    %36 = arith.divf %35, %34 : vector<24x1xf32>
    %37 = vector.broadcast %36 : vector<24x1xf32> to vector<24x24xf32>
    %38 = arith.mulf %32, %37 : vector<24x24xf32>
    %c0_28 = arith.constant 0 : index
    %c0_29 = arith.constant 0 : index
    %c0_30 = arith.constant 0 : index
    %39 = vector.load %arg11[%c0_28, %c0_29, %c0_30] : memref<1x24x24xf32, #tpu.memory_space<vmem>>, vector<1x24x24xf32>
    %40 = vector.shape_cast %39 : vector<1x24x24xf32> to vector<24x24xf32>
    %41 = vector.shape_cast %38 : vector<24x24xf32> to vector<1x24x24xf32>
    tpu.vector_store %arg11[%c0_28, %c0_29, %c0_30], %41 {strides = array<i32>} : memref<1x24x24xf32, #tpu.memory_space<vmem>>, vector<1x24x24xf32>,
    %cst_31 = arith.constant dense<0.000000e+00> : vector<24x32xf32>
    %42 = tpu.matmul %38, %9, %cst_31 {dimension_numbers = #tpu.dot_dimension_numbers<[1], [0], [0], [1], [0, 0, 1, 1], [], []>, precision = #tpu.contract_precision<fp32>} : vector<24x24xf32>, vector<24x32xf32>, vector<24x32xf32> -> vector<24x32xf32>
    %c0_32 = arith.constant 0 : index
    %c0_33 = arith.constant 0 : index
    %c0_34 = arith.constant 0 : index
    %43 = vector.load %arg10[%c0_32, %c0_33, %c0_34] : memref<1x24x32xf32, #tpu.memory_space<vmem>>, vector<1x24x32xf32>
    %44 = vector.shape_cast %43 : vector<1x24x32xf32> to vector<24x32xf32>
    %45 = vector.shape_cast %42 : vector<24x32xf32> to vector<1x24x32xf32>
    tpu.vector_store %arg10[%c0_32, %c0_33, %c0_34], %45 {strides = array<i32>} : memref<1x24x32xf32, #tpu.memory_space<vmem>>, vector<1x24x32xf32>,
    return
  }
  func.func @transform_0(%arg0: i32) -> (i32, i32) {
    %c0_i32 = arith.constant 0 : i32
    %c0_i32_0 = arith.constant 0 : i32
    %c0_i32_1 = arith.constant 0 : i32
    return %c0_i32, %c0_i32_0 : i32, i32
  }
  func.func @transform_1(%arg0: i32) -> (i32, i32) {
    %c0_i32 = arith.constant 0 : i32
    %c0_i32_0 = arith.constant 0 : i32
    %c0_i32_1 = arith.constant 0 : i32
    return %c0_i32, %c0_i32_0 : i32, i32
  }
  func.func @transform_2(%arg0: i32) -> (i32, i32) {
    %c0_i32 = arith.constant 0 : i32
    %c0_i32_0 = arith.constant 0 : i32
    %c0_i32_1 = arith.constant 0 : i32
    return %c0_i32, %c0_i32_0 : i32, i32
  }
  func.func @transform_3(%arg0: i32) -> i32 {
    %c0_i32 = arith.constant 0 : i32
    %c0_i32_0 = arith.constant 0 : i32
    return %c0_i32 : i32
  }
  func.func @transform_4(%arg0: i32) -> (i32, i32, i32) {
    %c0_i32 = arith.constant 0 : i32
    %c0_i32_0 = arith.constant 0 : i32
    %c0_i32_1 = arith.constant 0 : i32
    return %arg0, %c0_i32, %c0_i32_0 : i32, i32, i32
  }
  func.func @transform_5(%arg0: i32) -> (i32, i32, i32) {
    %c0_i32 = arith.constant 0 : i32
    %c0_i32_0 = arith.constant 0 : i32
    %c0_i32_1 = arith.constant 0 : i32
    return %arg0, %c0_i32, %c0_i32_0 : i32, i32, i32
  }
  func.func @transform_6(%arg0: i32) -> (i32, i32, i32) {
    %c0_i32 = arith.constant 0 : i32
    %c0_i32_0 = arith.constant 0 : i32
    %c0_i32_1 = arith.constant 0 : i32
    return %arg0, %c0_i32, %c0_i32_0 : i32, i32, i32
  }
  func.func @transform_7(%arg0: i32) -> (i32, i32, i32) {
    %c0_i32 = arith.constant 0 : i32
    %c0_i32_0 = arith.constant 0 : i32
    %c0_i32_1 = arith.constant 0 : i32
    return %arg0, %c0_i32, %c0_i32_0 : i32, i32, i32
  }
  func.func @transform_8(%arg0: i32) -> (i32, i32, i32) {
    %c0_i32 = arith.constant 0 : i32
    %c0_i32_0 = arith.constant 0 : i32
    %c0_i32_1 = arith.constant 0 : i32
    return %arg0, %c0_i32, %c0_i32_0 : i32, i32, i32
  }
  func.func @transform_9(%arg0: i32) -> (i32, i32, i32) {
    %c0_i32 = arith.constant 0 : i32
    %c0_i32_0 = arith.constant 0 : i32
    %c0_i32_1 = arith.constant 0 : i32
    return %arg0, %c0_i32, %c0_i32_0 : i32, i32, i32
  }
  func.func @transform_10(%arg0: i32) -> (i32, i32, i32) {
    %c0_i32 = arith.constant 0 : i32
    %c0_i32_0 = arith.constant 0 : i32
    %c0_i32_1 = arith.constant 0 : i32
    return %arg0, %c0_i32, %c0_i32_0 : i32, i32, i32
  }
}

</mosaic_0001>

<llo_original>
// kernel: tpu_custom_call.1
$region0: #{tpu_custom_call.1}
  #allocation0 [shape = 'u32[]', space=smem, size = 0x4, offset = 0x4, fixed_abs, tag = 'smem constant byte address 0x4 - core index']
  #allocation1 [shape = 'u32[144,128]{1,0:T(1,128)}', space=vmem, size = 0x12000, scoped, tag = 'internal scratch']
  #allocation2 [shape = 'f32[1]{0:T(128)S(6)}', space=smem, size = 0x200, scoped, tag = 'scoped memory for tpu_custom_call.1']
  %s0 = inlined_call_operand.hbm [shape: f32[24,24], index: 0, kind: input, shape index: {}]
  %s1 = inlined_call_operand.hbm [shape: f32[24,24], index: 1, kind: input, shape index: {}]
  %s2 = inlined_call_operand.hbm [shape: f32[24,24], index: 2, kind: input, shape index: {}]
  %s3 = inlined_call_operand.<no memory space> [shape: f32[1], index: 3, kind: input, shape index: {}]
  %s4 = inlined_call_operand.hbm [shape: f32[2,24,32], index: 4, kind: input, shape index: {}]
  %s5 = inlined_call_operand.hbm [shape: f32[2,24,32], index: 5, kind: input, shape index: {}]
  %s6 = inlined_call_operand.hbm [shape: f32[2,24,32], index: 6, kind: input, shape index: {}]
  %s7 = inlined_call_operand.hbm [shape: f32[2,24,24], index: 7, kind: input, shape index: {}]
  %s8 = inlined_call_operand.vmem [shape: s8[2,24,24], index: 8, kind: input, shape index: {}]
  %s9 = inlined_call_operand.hbm [shape: f32[2,24,32], index: 9, kind: output, shape index: {0}]
  %s10 = inlined_call_operand.hbm [shape: f32[2,24,24], index: 10, kind: output, shape index: {1}]
  %11 = xla_tuple %s9, %s10
  %s12 = sld [smem:[#allocation0]]
  $region105: #{tpu_custom_call.1} parent=0
    _
  %s14 = ssub.s32 1, %s12
  %s15 = scalar_select 0, %s14, %s12
  %16 = sst [smem:[#allocation2]] %s3
  $region1: #{tpu_custom_call.1} parent=0
    #allocation3 [shape = 'u8[12288]{0}', space=vmem, size = 0x3000, scoped, tag = 'input window, operand 0, single buffered']
    #allocation4 [shape = 's32[2]{0}', space=sflag, size = 0x8, scoped, tag = 'scoped memory for tpu_custom_call.1']
    #allocation5 [shape = 's32[2]{0}', space=sflag, size = 0x8, scoped, tag = 'scoped memory for tpu_custom_call.1']
    #allocation6 [shape = 'u8[12288]{0}', space=vmem, size = 0x3000, scoped, tag = 'input window, operand 1, single buffered']
    #allocation7 [shape = 's32[1]{0}', space=sflag, size = 0x4, scoped, tag = 'scoped memory for tpu_custom_call.1']
    #allocation8 [shape = 'u8[12288]{0}', space=vmem, size = 0x3000, scoped, tag = 'input window, operand 2, single buffered']
    #allocation9 [shape = 'u8[24576]{0}', space=vmem, size = 0x6000, scoped, tag = 'input window, operand 4']
    #allocation10 [shape = 's32[2]{0}', space=sflag, size = 0x8, scoped, tag = 'scoped memory for tpu_custom_call.1']
    #allocation11 [shape = 'u8[24576]{0}', space=vmem, size = 0x6000, scoped, tag = 'input window, operand 5']
    #allocation12 [shape = 'u8[24576]{0}', space=vmem, size = 0x6000, scoped, tag = 'input window, operand 6']
    #allocation13 [shape = 's32[2]{0}', space=sflag, size = 0x8, scoped, tag = 'scoped memory for tpu_custom_call.1']
    #allocation14 [shape = 'u8[24576]{0}', space=vmem, size = 0x6000, scoped, tag = 'input window, operand 7']
    #allocation15 [shape = 'u8[24576]{0}', space=vmem, size = 0x6000, scoped, tag = 'output window, operand 0']
    #allocation16 [shape = 'u8[24576]{0}', space=vmem, size = 0x6000, scoped, tag = 'output window, operand 1']
    #allocation17 [shape = 's32[2]{0}', space=sflag, size = 0x8, scoped, tag = 'scoped memory for tpu_custom_call.1']
    %17 = vsyncpa [#allocation4], 0
    %18 = vsyncpa [#allocation7], 0
    %19 = vsyncpa [#allocation10], 0
    %s20 = scalar_lea.sflag [#allocation10], 1
    %21 = vsyncpa %s20, 0
    %22 = vsyncpa [#allocation13], 0
    %s23 = scalar_lea.sflag [#allocation13], 1
    %24 = vsyncpa %s23, 0
    %25 = vsyncpa [#allocation5], 0
    %s26 = scalar_lea.sflag [#allocation5], 1
    %27 = vsyncpa %s26, 0
    %28 = vsyncpa [#allocation17], 0
    %s29 = scalar_lea.sflag [#allocation17], 1
    %30 = vsyncpa %s29, 0
    loop: start=0, step=1, limit=4
    $region2: #{tpu_custom_call.1} parent=1 // loop_pre_header
      _
    $region3: #{tpu_custom_call.1} parent=1 // loop_header
      %s32 = sphi 0, %s36
      %p33 = scmp.ge.s32.totalorder %s32, 4
      %s40 = sphi 0, %s40
      %s42 = sphi 0, %s40
      %s43 = sphi 0, %s42
      %s57 = sphi 0, %s43
      %s61 = sphi 0, %s61
      %s63 = sphi 0, %s61
      %s64 = sphi 0, %s63
      %s78 = sphi 0, %s64
      %s82 = sphi 0, %s82
      %s84 = sphi 0, %s82
      %s85 = sphi 0, %s84
      %s99 = sphi 0, %s85
      %s103 = sphi 0, %s103
      %s105 = sphi 0, %s103
      %s106 = sphi 0, %s105
      %s120 = sphi 0, %s106
      %s126 = sphi 0, %s128
      %s129 = sphi 0, %s126
      %s130 = sphi 0, %s129
      %s146 = sphi 0, %s130
      %s152 = sphi 0, %s154
      %s155 = sphi 0, %s152
      %s156 = sphi 0, %s155
      %s172 = sphi 0, %s156
      %s178 = sphi 0, %s180
      %s181 = sphi 0, %s178
      %s182 = sphi 0, %s181
      %s198 = sphi 0, %s182
      %s204 = sphi 0, %s206
      %s207 = sphi 0, %s204
      %s208 = sphi 0, %s207
      %s224 = sphi 0, %s208
      %s230 = sphi 0, %s232
      %s233 = sphi 0, %s230
      %s234 = sphi 0, %s233
      %s250 = sphi 0, %s234
      %s256 = sphi 0, %s258
      %s259 = sphi 0, %s256
      %s260 = sphi 0, %s259
      %s276 = sphi 0, %s260
      %s282 = sphi 0, %s284
      %s285 = sphi 0, %s282
      %s286 = sphi 0, %s285
      %s302 = sphi 0, %s286
    $region4: #{tpu_custom_call.1} parent=1 // loop_header_branch
      %35 = sbr.rel (%p33) target = $region8
    $region5: #{tpu_custom_call.1} parent=1 // loop_body
      %s37 = ssub.s32 %s32, 1
      %s38 = ssub.s32 %s32, 2
      %s39 = sadd.s32 %s32, 1
      %s41 = sadd.s32 %s40, 1
      %p44 = scmp.eq.s32.totalorder %s32, 1
      %p45 = scmp.ne.s32.totalorder %s40, %s42
      %p46 = scmp.eq.s32.totalorder %s32, 0
      %p47 = por %p45, %p46
      %p48 = scmp.ne.s32.totalorder %s40, %s42
      %p49 = scmp.eq.s32.totalorder %s37, 1
      %p50 = por %p48, %p49
      %p51 = scmp.ne.s32.totalorder %s42, %s43
      %p52 = scmp.eq.s32.totalorder %s37, 0
      %p53 = por %p51, %p52
      %p54 = scmp.ne.s32.totalorder %s42, %s43
      %p55 = scmp.eq.s32.totalorder %s38, 1
      %p56 = por %p54, %p55
      %p58 = scmp.ne.s32.totalorder %s43, %s57
      %p59 = scmp.eq.s32.totalorder %s38, 0
      %p60 = por %p58, %p59
      %s62 = sadd.s32 %s61, 1
      %p65 = scmp.eq.s32.totalorder %s32, 1
      %p66 = scmp.ne.s32.totalorder %s61, %s63
      %p67 = scmp.eq.s32.totalorder %s32, 0
      %p68 = por %p66, %p67
      %p69 = scmp.ne.s32.totalorder %s61, %s63
      %p70 = scmp.eq.s32.totalorder %s37, 1
      %p71 = por %p69, %p70
      %p72 = scmp.ne.s32.totalorder %s63, %s64
      %p73 = scmp.eq.s32.totalorder %s37, 0
      %p74 = por %p72, %p73
      %p75 = scmp.ne.s32.totalorder %s63, %s64
      %p76 = scmp.eq.s32.totalorder %s38, 1
      %p77 = por %p75, %p76
      %p79 = scmp.ne.s32.totalorder %s64, %s78
      %p80 = scmp.eq.s32.totalorder %s38, 0
      %p81 = por %p79, %p80
      %s83 = sadd.s32 %s82, 1
      %p86 = scmp.eq.s32.totalorder %s32, 1
      %p87 = scmp.ne.s32.totalorder %s82, %s84
      %p88 = scmp.eq.s32.totalorder %s32, 0
      %p89 = por %p87, %p88
      %p90 = scmp.ne.s32.totalorder %s82, %s84
      %p91 = scmp.eq.s32.totalorder %s37, 1
      %p92 = por %p90, %p91
      %p93 = scmp.ne.s32.totalorder %s84, %s85
      %p94 = scmp.eq.s32.totalorder %s37, 0
      %p95 = por %p93, %p94
      %p96 = scmp.ne.s32.totalorder %s84, %s85
      %p97 = scmp.eq.s32.totalorder %s38, 1
      %p98 = por %p96, %p97
      %p100 = scmp.ne.s32.totalorder %s85, %s99
      %p101 = scmp.eq.s32.totalorder %s38, 0
      %p102 = por %p100, %p101
      %s104 = sadd.s32 %s103, 1
      %p107 = scmp.eq.s32.totalorder %s32, 1
      %p108 = scmp.ne.s32.totalorder %s103, %s105
      %p109 = scmp.eq.s32.totalorder %s32, 0
      %p110 = por %p108, %p109
      %p111 = scmp.ne.s32.totalorder %s103, %s105
      %p112 = scmp.eq.s32.totalorder %s37, 1
      %p113 = por %p111, %p112
      %p114 = scmp.ne.s32.totalorder %s105, %s106
      %p115 = scmp.eq.s32.totalorder %s37, 0
      %p116 = por %p114, %p115
      %p117 = scmp.ne.s32.totalorder %s105, %s106
      %p118 = scmp.eq.s32.totalorder %s38, 1
      %p119 = por %p117, %p118
      %p121 = scmp.ne.s32.totalorder %s106, %s120
      %p122 = scmp.eq.s32.totalorder %s38, 0
      %p123 = por %p121, %p122
      %s124 = ssub.s32 %s32, %s39
      %p125 = scmp.eq.s32.totalorder %s124, 0
      %s127 = sadd.s32 %s126, 1
      %s128 = scalar_select %p125, %s126, %s127
      %p131 = pneg %p125
      %p132 = scmp.eq.s32.totalorder %s32, 1
      %p133 = por %p131, %p132
      %p134 = scmp.ne.s32.totalorder %s126, %s129
      %p135 = scmp.eq.s32.totalorder %s32, 0
      %p136 = por %p134, %p135
      %p137 = scmp.ne.s32.totalorder %s126, %s129
      %p138 = scmp.eq.s32.totalorder %s37, 1
      %p139 = por %p137, %p138
      %p140 = scmp.ne.s32.totalorder %s129, %s130
      %p141 = scmp.eq.s32.totalorder %s37, 0
      %p142 = por %p140, %p141
      %p143 = scmp.ne.s32.totalorder %s129, %s130
      %p144 = scmp.eq.s32.totalorder %s38, 1
      %p145 = por %p143, %p144
      %p147 = scmp.ne.s32.totalorder %s130, %s146
      %p148 = scmp.eq.s32.totalorder %s38, 0
      %p149 = por %p147, %p148
      %s150 = ssub.s32 %s32, %s39
      %p151 = scmp.eq.s32.totalorder %s150, 0
      %s153 = sadd.s32 %s152, 1
      %s154 = scalar_select %p151, %s152, %s153
      %p157 = pneg %p151
      %p158 = scmp.eq.s32.totalorder %s32, 1
      %p159 = por %p157, %p158
      %p160 = scmp.ne.s32.totalorder %s152, %s155
      %p161 = scmp.eq.s32.totalorder %s32, 0
      %p162 = por %p160, %p161
      %p163 = scmp.ne.s32.totalorder %s152, %s155
      %p164 = scmp.eq.s32.totalorder %s37, 1
      %p165 = por %p163, %p164
      %p166 = scmp.ne.s32.totalorder %s155, %s156
      %p167 = scmp.eq.s32.totalorder %s37, 0
      %p168 = por %p166, %p167
      %p169 = scmp.ne.s32.totalorder %s155, %s156
      %p170 = scmp.eq.s32.totalorder %s38, 1
      %p171 = por %p169, %p170
      %p173 = scmp.ne.s32.totalorder %s156, %s172
      %p174 = scmp.eq.s32.totalorder %s38, 0
      %p175 = por %p173, %p174
      %s176 = ssub.s32 %s32, %s39
      %p177 = scmp.eq.s32.totalorder %s176, 0
      %s179 = sadd.s32 %s178, 1
      %s180 = scalar_select %p177, %s178, %s179
      %p183 = pneg %p177
      %p184 = scmp.eq.s32.totalorder %s32, 1
      %p185 = por %p183, %p184
      %p186 = scmp.ne.s32.totalorder %s178, %s181
      %p187 = scmp.eq.s32.totalorder %s32, 0
      %p188 = por %p186, %p187
      %p189 = scmp.ne.s32.totalorder %s178, %s181
      %p190 = scmp.eq.s32.totalorder %s37, 1
      %p191 = por %p189, %p190
      %p192 = scmp.ne.s32.totalorder %s181, %s182
      %p193 = scmp.eq.s32.totalorder %s37, 0
      %p194 = por %p192, %p193
      %p195 = scmp.ne.s32.totalorder %s181, %s182
      %p196 = scmp.eq.s32.totalorder %s38, 1
      %p197 = por %p195, %p196
      %p199 = scmp.ne.s32.totalorder %s182, %s198
      %p200 = scmp.eq.s32.totalorder %s38, 0
      %p201 = por %p199, %p200
      %s202 = ssub.s32 %s32, %s39
      %p203 = scmp.eq.s32.totalorder %s202, 0
      %s205 = sadd.s32 %s204, 1
      %s206 = scalar_select %p203, %s204, %s205
      %p209 = pneg %p203
      %p210 = scmp.eq.s32.totalorder %s32, 1
      %p211 = por %p209, %p210
      %p212 = scmp.ne.s32.totalorder %s204, %s207
      %p213 = scmp.eq.s32.totalorder %s32, 0
      %p214 = por %p212, %p213
      %p215 = scmp.ne.s32.totalorder %s204, %s207
      %p216 = scmp.eq.s32.totalorder %s37, 1
      %p217 = por %p215, %p216
      %p218 = scmp.ne.s32.totalorder %s207, %s208
      %p219 = scmp.eq.s32.totalorder %s37, 0
      %p220 = por %p218, %p219
      %p221 = scmp.ne.s32.totalorder %s207, %s208
      %p222 = scmp.eq.s32.totalorder %s38, 1
      %p223 = por %p221, %p222
      %p225 = scmp.ne.s32.totalorder %s208, %s224
      %p226 = scmp.eq.s32.totalorder %s38, 0
      %p227 = por %p225, %p226
      %s228 = ssub.s32 %s32, %s39
      %p229 = scmp.eq.s32.totalorder %s228, 0
      %s231 = sadd.s32 %s230, 1
      %s232 = scalar_select %p229, %s230, %s231
      %p235 = pneg %p229
      %p236 = scmp.eq.s32.totalorder %s32, 1
      %p237 = por %p235, %p236
      %p238 = scmp.ne.s32.totalorder %s230, %s233
      %p239 = scmp.eq.s32.totalorder %s32, 0
      %p240 = por %p238, %p239
      %p241 = scmp.ne.s32.totalorder %s230, %s233
      %p242 = scmp.eq.s32.totalorder %s37, 1
      %p243 = por %p241, %p242
      %p244 = scmp.ne.s32.totalorder %s233, %s234
      %p245 = scmp.eq.s32.totalorder %s37, 0
      %p246 = por %p244, %p245
      %p247 = scmp.ne.s32.totalorder %s233, %s234
      %p248 = scmp.eq.s32.totalorder %s38, 1
      %p249 = por %p247, %p248
      %p251 = scmp.ne.s32.totalorder %s234, %s250
      %p252 = scmp.eq.s32.totalorder %s38, 0
      %p253 = por %p251, %p252
      %s254 = ssub.s32 %s32, %s39
      %p255 = scmp.eq.s32.totalorder %s254, 0
      %s257 = sadd.s32 %s256, 1
      %s258 = scalar_select %p255, %s256, %s257
      %p261 = pneg %p255
      %p262 = scmp.eq.s32.totalorder %s32, 1
      %p263 = por %p261, %p262
      %p264 = scmp.ne.s32.totalorder %s256, %s259
      %p265 = scmp.eq.s32.totalorder %s32, 0
      %p266 = por %p264, %p265
      %p267 = scmp.ne.s32.totalorder %s256, %s259
      %p268 = scmp.eq.s32.totalorder %s37, 1
      %p269 = por %p267, %p268
      %p270 = scmp.ne.s32.totalorder %s259, %s260
      %p271 = scmp.eq.s32.totalorder %s37, 0
      %p272 = por %p270, %p271
      %p273 = scmp.ne.s32.totalorder %s259, %s260
      %p274 = scmp.eq.s32.totalorder %s38, 1
      %p275 = por %p273, %p274
      %p277 = scmp.ne.s32.totalorder %s260, %s276
      %p278 = scmp.eq.s32.totalorder %s38, 0
      %p279 = por %p277, %p278
      %s280 = ssub.s32 %s32, %s39
      %p281 = scmp.eq.s32.totalorder %s280, 0
      %s283 = sadd.s32 %s282, 1
      %s284 = scalar_select %p281, %s282, %s283
      %p287 = pneg %p281
      %p288 = scmp.eq.s32.totalorder %s32, 1
      %p289 = por %p287, %p288
      %p290 = scmp.ne.s32.totalorder %s282, %s285
      %p291 = scmp.eq.s32.totalorder %s32, 0
      %p292 = por %p290, %p291
      %p293 = scmp.ne.s32.totalorder %s282, %s285
      %p294 = scmp.eq.s32.totalorder %s37, 1
      %p295 = por %p293, %p294
      %p296 = scmp.ne.s32.totalorder %s285, %s286
      %p297 = scmp.eq.s32.totalorder %s37, 0
      %p298 = por %p296, %p297
      %p299 = scmp.ne.s32.totalorder %s285, %s286
      %p300 = scmp.eq.s32.totalorder %s38, 1
      %p301 = por %p299, %p300
      %p303 = scmp.ne.s32.totalorder %s286, %s302
      %p304 = scmp.eq.s32.totalorder %s38, 0
      %p305 = por %p303, %p304
      %p306 = scmp.le.s32.totalorder 1, %s32
      %p307 = scmp.lt.s32.totalorder %s32, 3
      %p308 = pnand %p306, %p307
      %p309 = pneg %p308
      // Predicated region
      $region9: #{tpu_custom_call.1} parent=5 // pred_check
        _
      $region10: #{tpu_custom_call.1} parent=5 // pred_check_branch
        %311 = sbr.rel (%p308) target = $region12
      $region11: #{tpu_custom_call.1} parent=5 // pred_region
        %s312 = ssub.s32 %s32, 1
        // Predicated region
        $region13: #{tpu_custom_call.1} parent=11 // pred_check
          %p313 = pneg %p53
        $region14: #{tpu_custom_call.1} parent=11 // pred_check_branch
          %315 = sbr.rel (%p313) target = $region16
        $region15: #{tpu_custom_call.1} parent=11 // pred_region
          %s317 = ssub.s32 384, 384
          %318 = vsyncadd [#allocation4], %s317
          %s319 = sshll.u32 [#allocation3], 4
          %s320 = int_to_ptr.vmem [resolvable:$true] %s319
          %325 = dma.hbm_to_vmem [thread:$0]  %s0, 384, %s320, [#allocation4], 128, 128, 8
        $region16: #{tpu_custom_call.1} parent=11 // pred_fallthru
          _
        // Predicated region
        $region17: #{tpu_custom_call.1} parent=11 // pred_check
          %p326 = pneg %p74
        $region18: #{tpu_custom_call.1} parent=11 // pred_check_branch
          %328 = sbr.rel (%p326) target = $region20
        $region19: #{tpu_custom_call.1} parent=11 // pred_region
          %s330 = ssub.s32 384, 384
          %331 = vsyncadd [#allocation7], %s330
          %s332 = sshll.u32 [#allocation6], 4
          %s333 = int_to_ptr.vmem [resolvable:$true] %s332
          %338 = dma.hbm_to_vmem [thread:$0]  %s1, 384, %s333, [#allocation7], 128, 128, 8
        $region20: #{tpu_custom_call.1} parent=11 // pred_fallthru
          _
        // Predicated region
        $region21: #{tpu_custom_call.1} parent=11 // pred_check
          %p339 = pneg %p95
        $region22: #{tpu_custom_call.1} parent=11 // pred_check_branch
          %341 = sbr.rel (%p339) target = $region24
        $region23: #{tpu_custom_call.1} parent=11 // pred_region
          %s343 = ssub.s32 384, 384
          %344 = vsyncadd [#allocation7], %s343
          %s345 = sshll.u32 [#allocation8], 4
          %s346 = int_to_ptr.vmem [resolvable:$true] %s345
          %351 = dma.hbm_to_vmem [thread:$0]  %s2, 384, %s346, [#allocation7], 128, 128, 8
        $region24: #{tpu_custom_call.1} parent=11 // pred_fallthru
          _
        // Predicated region
        $region25: #{tpu_custom_call.1} parent=11 // pred_check
          %p352 = pneg %p116
        $region26: #{tpu_custom_call.1} parent=11 // pred_check_branch
          %354 = sbr.rel (%p352) target = $region28
        $region27: #{tpu_custom_call.1} parent=11 // pred_region
          _
        $region28: #{tpu_custom_call.1} parent=11 // pred_fallthru
          _
      $region12: #{tpu_custom_call.1} parent=5 // pred_fallthru
        _
      %p355 = scmp.lt.s32.totalorder %s32, 2
      // Predicated region
      $region29: #{tpu_custom_call.1} parent=5 // pred_check
        %p356 = pneg %p355
      $region30: #{tpu_custom_call.1} parent=5 // pred_check_branch
        %358 = sbr.rel (%p356) target = $region32
      $region31: #{tpu_custom_call.1} parent=5 // pred_region
        // Predicated region
        $region33: #{tpu_custom_call.1} parent=31 // pred_check
          %p359 = pneg %p136
        $region34: #{tpu_custom_call.1} parent=31 // pred_check_branch
          %361 = sbr.rel (%p359) target = $region36
        $region35: #{tpu_custom_call.1} parent=31 // pred_region
          %s362 = sand.u32 %s32, 1
          %s363 = scalar_lea.sflag [#allocation10], %s362
          %s364 = sand.u32 %s126, 1
          %s365 = smul.addr %s364, 24
          %s366 = scalar_lea.vmem [#allocation9], %s365
          %s368 = ssub.s32 384, 384
          %369 = vsyncadd %s363, %s368
          %s370 = smul.addr %s32, 3
          %s371 = smul.addr %s370, 128
          %s372 = scalar_lea.hbm %s4, %s371
          %s373 = sshll.u32 %s366, 4
          %s374 = int_to_ptr.vmem [resolvable:$true] %s373
          %379 = dma.hbm_to_vmem [thread:$0]  %s372, 384, %s374, %s363, 128, 128, 8
        $region36: #{tpu_custom_call.1} parent=31 // pred_fallthru
          _
        // Predicated region
        $region37: #{tpu_custom_call.1} parent=31 // pred_check
          %p380 = pneg %p162
        $region38: #{tpu_custom_call.1} parent=31 // pred_check_branch
          %382 = sbr.rel (%p380) target = $region40
        $region39: #{tpu_custom_call.1} parent=31 // pred_region
          %s383 = sand.u32 %s32, 1
          %s384 = scalar_lea.sflag [#allocation10], %s383
          %s385 = sand.u32 %s152, 1
          %s386 = smul.addr %s385, 24
          %s387 = scalar_lea.vmem [#allocation11], %s386
          %s389 = ssub.s32 384, 384
          %390 = vsyncadd %s384, %s389
          %s391 = smul.addr %s32, 3
          %s392 = smul.addr %s391, 128
          %s393 = scalar_lea.hbm %s5, %s392
          %s394 = sshll.u32 %s387, 4
          %s395 = int_to_ptr.vmem [resolvable:$true] %s394
          %400 = dma.hbm_to_vmem [thread:$0]  %s393, 384, %s395, %s384, 128, 128, 8
        $region40: #{tpu_custom_call.1} parent=31 // pred_fallthru
          _
        // Predicated region
        $region41: #{tpu_custom_call.1} parent=31 // pred_check
          %p401 = pneg %p188
        $region42: #{tpu_custom_call.1} parent=31 // pred_check_branch
          %403 = sbr.rel (%p401) target = $region44
        $region43: #{tpu_custom_call.1} parent=31 // pred_region
          %s404 = sand.u32 %s32, 1
          %s405 = scalar_lea.sflag [#allocation13], %s404
          %s406 = sand.u32 %s178, 1
          %s407 = smul.addr %s406, 24
          %s408 = scalar_lea.vmem [#allocation12], %s407
          %s410 = ssub.s32 384, 384
          %411 = vsyncadd %s405, %s410
          %s412 = smul.addr %s32, 3
          %s413 = smul.addr %s412, 128
          %s414 = scalar_lea.hbm %s6, %s413
          %s415 = sshll.u32 %s408, 4
          %s416 = int_to_ptr.vmem [resolvable:$true] %s415
          %421 = dma.hbm_to_vmem [thread:$0]  %s414, 384, %s416, %s405, 128, 128, 8
        $region44: #{tpu_custom_call.1} parent=31 // pred_fallthru
          _
        // Predicated region
        $region45: #{tpu_custom_call.1} parent=31 // pred_check
          %p422 = pneg %p214
        $region46: #{tpu_custom_call.1} parent=31 // pred_check_branch
          %424 = sbr.rel (%p422) target = $region48
        $region47: #{tpu_custom_call.1} parent=31 // pred_region
          %s425 = sand.u32 %s32, 1
          %s426 = scalar_lea.sflag [#allocation13], %s425
          %s427 = sand.u32 %s204, 1
          %s428 = smul.addr %s427, 24
          %s429 = scalar_lea.vmem [#allocation14], %s428
          %s431 = ssub.s32 384, 384
          %432 = vsyncadd %s426, %s431
          %s433 = smul.addr %s32, 3
          %s434 = smul.addr %s433, 128
          %s435 = scalar_lea.hbm %s7, %s434
          %s436 = sshll.u32 %s429, 4
          %s437 = int_to_ptr.vmem [resolvable:$true] %s436
          %442 = dma.hbm_to_vmem [thread:$0]  %s435, 384, %s437, %s426, 128, 128, 8
        $region48: #{tpu_custom_call.1} parent=31 // pred_fallthru
          _
        // Predicated region
        $region49: #{tpu_custom_call.1} parent=31 // pred_check
          %p443 = pneg %p240
        $region50: #{tpu_custom_call.1} parent=31 // pred_check_branch
          %445 = sbr.rel (%p443) target = $region52
        $region51: #{tpu_custom_call.1} parent=31 // pred_region
          %p446 = scmp.lt.s32.totalorder %s32, 1
          %s447 = scalar_select %p446, %s32, 1
          %s448 = smul.addr %s447, 3
          %s449 = smul.addr %s448, 2
          %s450 = scalar_lea.vmem %s8, %s449
        $region52: #{tpu_custom_call.1} parent=31 // pred_fallthru
          _
      $region32: #{tpu_custom_call.1} parent=5 // pred_fallthru
        _
      %p451 = scmp.le.s32.totalorder 1, %s32
      %p452 = scmp.lt.s32.totalorder %s32, 3
      %p453 = pnand %p451, %p452
      %p454 = pneg %p453
      // Predicated region
      $region53: #{tpu_custom_call.1} parent=5 // pred_check
        _
      $region54: #{tpu_custom_call.1} parent=5 // pred_check_branch
        %456 = sbr.rel (%p453) target = $region56
      $region55: #{tpu_custom_call.1} parent=5 // pred_region
        %s457 = ssub.s32 %s32, 1
        // Predicated region
        $region57: #{tpu_custom_call.1} parent=55 // pred_check
          %p458 = pneg %p53
        $region58: #{tpu_custom_call.1} parent=55 // pred_check_branch
          %460 = sbr.rel (%p458) target = $region60
        $region59: #{tpu_custom_call.1} parent=55 // pred_region
          %461 = dma.done [#allocation4], 384
        $region60: #{tpu_custom_call.1} parent=55 // pred_fallthru
          _
        // Predicated region
        $region61: #{tpu_custom_call.1} parent=55 // pred_check
          %p462 = pneg %p74
        $region62: #{tpu_custom_call.1} parent=55 // pred_check_branch
          %464 = sbr.rel (%p462) target = $region64
        $region63: #{tpu_custom_call.1} parent=55 // pred_region
          %465 = dma.done [#allocation7], 384
        $region64: #{tpu_custom_call.1} parent=55 // pred_fallthru
          _
        // Predicated region
        $region65: #{tpu_custom_call.1} parent=55 // pred_check
          %p466 = pneg %p95
        $region66: #{tpu_custom_call.1} parent=55 // pred_check_branch
          %468 = sbr.rel (%p466) target = $region68
        $region67: #{tpu_custom_call.1} parent=55 // pred_region
          %469 = dma.done [#allocation7], 384
        $region68: #{tpu_custom_call.1} parent=55 // pred_fallthru
          _
        %s470 = sand.u32 %s37, 1
        %s471 = scalar_lea.sflag [#allocation10], %s470
        %s472 = sand.u32 %s129, 1
        %s473 = smul.addr %s472, 24
        %s474 = scalar_lea.vmem [#allocation9], %s473
        // Predicated region
        $region69: #{tpu_custom_call.1} parent=55 // pred_check
          %p475 = pneg %p142
        $region70: #{tpu_custom_call.1} parent=55 // pred_check_branch
          %477 = sbr.rel (%p475) target = $region72
        $region71: #{tpu_custom_call.1} parent=55 // pred_region
          %478 = dma.done %s471, 384
        $region72: #{tpu_custom_call.1} parent=55 // pred_fallthru
          _
        %s479 = sand.u32 %s37, 1
        %s480 = scalar_lea.sflag [#allocation10], %s479
        %s481 = sand.u32 %s155, 1
        %s482 = smul.addr %s481, 24
        %s483 = scalar_lea.vmem [#allocation11], %s482
        // Predicated region
        $region73: #{tpu_custom_call.1} parent=55 // pred_check
          %p484 = pneg %p168
        $region74: #{tpu_custom_call.1} parent=55 // pred_check_branch
          %486 = sbr.rel (%p484) target = $region76
        $region75: #{tpu_custom_call.1} parent=55 // pred_region
          %487 = dma.done %s480, 384
        $region76: #{tpu_custom_call.1} parent=55 // pred_fallthru
          _
        %s488 = sand.u32 %s37, 1
        %s489 = scalar_lea.sflag [#allocation13], %s488
        %s490 = sand.u32 %s181, 1
        %s491 = smul.addr %s490, 24
        %s492 = scalar_lea.vmem [#allocation12], %s491
        // Predicated region
        $region77: #{tpu_custom_call.1} parent=55 // pred_check
          %p493 = pneg %p194
        $region78: #{tpu_custom_call.1} parent=55 // pred_check_branch
          %495 = sbr.rel (%p493) target = $region80
        $region79: #{tpu_custom_call.1} parent=55 // pred_region
          %496 = dma.done %s489, 384
        $region80: #{tpu_custom_call.1} parent=55 // pred_fallthru
          _
        %s497 = sand.u32 %s37, 1
        %s498 = scalar_lea.sflag [#allocation13], %s497
        %s499 = sand.u32 %s207, 1
        %s500 = smul.addr %s499, 24
        %s501 = scalar_lea.vmem [#allocation14], %s500
        // Predicated region
        $region81: #{tpu_custom_call.1} parent=55 // pred_check
          %p502 = pneg %p220
        $region82: #{tpu_custom_call.1} parent=55 // pred_check_branch
          %504 = sbr.rel (%p502) target = $region84
        $region83: #{tpu_custom_call.1} parent=55 // pred_region
          %505 = dma.done %s498, 384
        $region84: #{tpu_custom_call.1} parent=55 // pred_fallthru
          _
        %p506 = pneg %p53
        %p507 = pneg %p50
        %p508 = pneg %p74
        %p509 = pneg %p71
        %p510 = pneg %p95
        %p511 = pneg %p92
        %p512 = pneg %p116
        %p513 = pneg %p113
        %s514 = sand.u32 %s37, 1
        %s515 = scalar_lea.sflag [#allocation10], %s514
        %s516 = sand.u32 %s129, 1
        %s517 = smul.addr %s516, 24
        %s518 = scalar_lea.vmem [#allocation9], %s517
        %p519 = pneg %p142
        %p520 = pneg %p139
        %s521 = sand.u32 %s37, 1
        %s522 = scalar_lea.sflag [#allocation10], %s521
        %s523 = sand.u32 %s155, 1
        %s524 = smul.addr %s523, 24
        %s525 = scalar_lea.vmem [#allocation11], %s524
        %p526 = pneg %p168
        %p527 = pneg %p165
        %s528 = sand.u32 %s37, 1
        %s529 = scalar_lea.sflag [#allocation13], %s528
        %s530 = sand.u32 %s181, 1
        %s531 = smul.addr %s530, 24
        %s532 = scalar_lea.vmem [#allocation12], %s531
        %p533 = pneg %p194
        %p534 = pneg %p191
        %s535 = sand.u32 %s37, 1
        %s536 = scalar_lea.sflag [#allocation13], %s535
        %s537 = sand.u32 %s207, 1
        %s538 = smul.addr %s537, 24
        %s539 = scalar_lea.vmem [#allocation14], %s538
        %p540 = pneg %p220
        %p541 = pneg %p217
        %p542 = scmp.lt.s32.totalorder %s37, 1
        %s543 = scalar_select %p542, %s37, 1
        %s544 = smul.addr %s543, 3
        %s545 = smul.addr %s544, 2
        %s546 = scalar_lea.vmem %s8, %s545
        %p547 = pneg %p246
        %p548 = pneg %p243
        %p549 = pneg %p272
        %p550 = pneg %p269
        %s551 = sand.u32 %s259, 1
        %s552 = scalar_lea.sflag [#allocation5], %s551
        %s553 = sand.u32 %s259, 1
        %s554 = smul.addr %s553, 24
        %s555 = scalar_lea.vmem [#allocation15], %s554
        %p556 = pneg %p298
        %p557 = pneg %p295
        %s558 = sand.u32 %s285, 1
        %s559 = scalar_lea.sflag [#allocation17], %s558
        %s560 = sand.u32 %s285, 1
        %s561 = smul.addr %s560, 24
        %s562 = scalar_lea.vmem [#allocation16], %s561
        %p563 = scmp.lt.s32.totalorder %s37, 1
        %s564 = scalar_select %p563, %s37, 1
        %s565 = smul.addr %s564, 3
        %s566 = smul.addr %s565, 2
        %s567 = scalar_lea.vmem %s8, %s566
        %v570 = vld [vmem:[#allocation3] sm:$0xff]
        %v571 = vld [vmem:[#allocation3 + $0x8] sm:$0xff]
        %v572 = vld [vmem:[#allocation3 + $0x10] sm:$0xff]
        %v573 = vld [vmem:[#allocation6] sm:$0xff]
        %v574 = vld [vmem:[#allocation6 + $0x8] sm:$0xff]
        %v575 = vld [vmem:[#allocation6 + $0x10] sm:$0xff]
        %v576 = vld [vmem:[#allocation8] sm:$0xff]
        %v577 = vld [vmem:[#allocation8 + $0x8] sm:$0xff]
        %v578 = vld [vmem:[#allocation8 + $0x10] sm:$0xff]
        %s579 = sld [smem:[#allocation2]]
        %v580 = vld [vmem:[%s474] sm:$0xff]
        %v581 = vld [vmem:[%s474 + $0x8] sm:$0xff]
        %v582 = vld [vmem:[%s474 + $0x10] sm:$0xff]
        %v583 = vld [vmem:[%s483] sm:$0xff]
        %v584 = vld [vmem:[%s483 + $0x8] sm:$0xff]
        %v585 = vld [vmem:[%s483 + $0x10] sm:$0xff]
        %v586 = vld [vmem:[%s492] sm:$0xff]
        %v587 = vld [vmem:[%s492 + $0x8] sm:$0xff]
        %v588 = vld [vmem:[%s492 + $0x10] sm:$0xff]
        %vm589 = vcmask 261120
        %v591 = vsel %vm589, %v580, 0
        %v594 = vsel %vm589, %v581, 0
        %v597 = vsel %vm589, %v582, 0
        %v600 = vsel %vm589, %v583, 0
        %v603 = vsel %vm589, %v584, 0
        %v606 = vsel %vm589, %v585, 0
        %608 = vmatprep.subr.mxu0 0.0
        %v609 = vand.u32 %v600, 4294901760
        %610 = vmatpush1.xpose.msra.mxu0 %v609
        %611 = vmatprep.subr.mxu0 0.0
        %v612 = vand.u32 %v603, 4294901760
        %613 = vmatpush1.xpose.msra.mxu0 %v612
        %614 = vmatprep.subr.mxu0 0.0
        %v615 = vand.u32 %v606, 4294901760
        %616 = vmatpush1.xpose.msra.mxu0 %v615
        %617 = vmatprep.subr.mxu0 0.0
        %618 = vmatpush1.xpose.msra.mxu0 0.0
        %619 = vmatprep.subr.mxu0 0.0
        %620 = vmatpush1.xpose.msra.mxu0 0.0
        %621 = vmatprep.subr.mxu0 0.0
        %622 = vmatpush1.xpose.msra.mxu0 0.0
        %623 = vmatprep.subr.mxu0 0.0
        %624 = vmatpush1.xpose.msra.mxu0 0.0
        %625 = vmatprep.subr.mxu0 0.0
        %626 = vmatpush1.xpose.msra.mxu0 0.0
        %627 = vmatprep.subr.mxu0 0.0
        %628 = vmatpush1.xpose.msra.mxu0 0.0
        %629 = vmatprep.subr.mxu0 0.0
        %630 = vmatpush1.xpose.msra.mxu0 0.0
        %631 = vmatprep.subr.mxu0 0.0
        %632 = vmatpush1.xpose.msra.mxu0 0.0
        %633 = vmatprep.subr.mxu0 0.0
        %634 = vmatpush1.xpose.msra.mxu0 0.0
        %635 = vmatprep.subr.mxu0 0.0
        %636 = vmatpush1.xpose.msra.mxu0 0.0
        %637 = vmatprep.subr.mxu0 0.0
        %638 = vmatpush1.xpose.msra.mxu0 0.0
        %639 = vmatprep.subr.mxu0 0.0
        %640 = vmatpush1.xpose.msra.mxu0 0.0
        %641 = vmatprep.subr.mxu0 0.0
        %642 = vmatpush1.xpose.msra.mxu0 0.0
        %643 = vmatprep.subr.mxu0 0.0
        %644 = vmatpush1.xpose.msra.mxu0 0.0
        %645 = vmatprep.subr.mxu0 0.0
        %646 = vmatpush1.xpose.msra.mxu0 0.0
        %647 = vmatprep.subr.mxu0 0.0
        %648 = vmatpush1.xpose.msra.mxu0 0.0
        %649 = vmatprep.subr.mxu0 0.0
        %650 = vmatpush1.xpose.msra.mxu0 0.0
        %651 = vmatprep.subr.mxu0 0.0
        %652 = vmatpush1.xpose.msra.mxu0 0.0
        %653 = vmatprep.subr.mxu0 0.0
        %654 = vmatpush1.xpose.msra.mxu0 0.0
        %655 = vmatprep.subr.mxu0 0.0
        %656 = vmatpush1.xpose.msra.mxu0 0.0
        %657 = vmatprep.subr.mxu0 0.0
        %658 = vmatpush1.xpose.msra.mxu0 0.0
        %659 = vmatprep.subr.mxu0 0.0
        %660 = vmatpush1.xpose.msra.mxu0 0.0
        %661 = vmatprep.subr.mxu0 0.0
        %662 = vmatpush1.xpose.msra.mxu0 0.0
        %663 = vmatprep.subr.mxu0 0.0
        %664 = vmatpush1.xpose.msra.mxu0 0.0
        %665 = vmatprep.subr.mxu0 0.0
        %666 = vmatpush1.xpose.msra.mxu0 0.0
        %667 = vmatprep.subr.mxu0 0.0
        %668 = vmatpush1.xpose.msra.mxu0 0.0
        %669 = vmatprep.subr.mxu0 0.0
        %670 = vmatpush1.xpose.msra.mxu0 0.0
        %671 = vmatprep.subr.mxu0 0.0
        %672 = vmatpush1.xpose.msra.mxu0 0.0
        %673 = vmatprep.subr.mxu0 0.0
        %674 = vmatpush1.xpose.msra.mxu0 0.0
        %675 = vmatprep.mubr.f32.mxu0 0.0
        %v676 = vand.u32 %v591, 4294901760
        %v677 = vsub.f32 %v591, %v676
        %v678 = vand.u32 %v677, 4294901760
        %v679 = vsub.f32 %v677, %v678
        %v680 = vand.u32 %v679, 4294901760
        %681 = vmatmul.mubr.f32.gmra.mrb[0].mxu0 %v680
        %v682 = vpop.f32.mrb[0].mxu0
        %v683 = vadd.f32 0.0, %v682
        %v684 = vpop.f32.mrb[0].mxu0
        %685 = vmatprep.mubr.f32.mxu0 0.0
        %v686 = vand.u32 %v594, 4294901760
        %v687 = vsub.f32 %v594, %v686
        %v688 = vand.u32 %v687, 4294901760
        %v689 = vsub.f32 %v687, %v688
        %v690 = vand.u32 %v689, 4294901760
        %691 = vmatmul.mubr.f32.gmra.mrb[0].mxu0 %v690
        %v692 = vpop.f32.mrb[0].mxu0
        %v693 = vadd.f32 0.0, %v692
        %v694 = vpop.f32.mrb[0].mxu0
        %695 = vmatprep.mubr.f32.mxu0 0.0
        %v696 = vand.u32 %v597, 4294901760
        %v697 = vsub.f32 %v597, %v696
        %v698 = vand.u32 %v697, 4294901760
        %v699 = vsub.f32 %v697, %v698
        %v700 = vand.u32 %v699, 4294901760
        %701 = vmatmul.mubr.f32.gmra.mrb[0].mxu0 %v700
        %v702 = vpop.f32.mrb[0].mxu0
        %v703 = vadd.f32 0.0, %v702
        %v704 = vpop.f32.mrb[0].mxu0
        %705 = vdwg.mxu0
        %706 = vmatprep.subr.mxu0 0.0
        %v707 = vand.u32 %v600, 4294901760
        %v708 = vsub.f32 %v600, %v707
        %v709 = vand.u32 %v708, 4294901760
        %v710 = vsub.f32 %v708, %v709
        %v711 = vand.u32 %v710, 4294901760
        %712 = vmatpush1.xpose.msra.mxu0 %v711
        %713 = vmatprep.subr.mxu0 0.0
        %v714 = vand.u32 %v603, 4294901760
        %v715 = vsub.f32 %v603, %v714
        %v716 = vand.u32 %v715, 4294901760
        %v717 = vsub.f32 %v715, %v716
        %v718 = vand.u32 %v717, 4294901760
        %719 = vmatpush1.xpose.msra.mxu0 %v718
        %720 = vmatprep.subr.mxu0 0.0
        %v721 = vand.u32 %v606, 4294901760
        %v722 = vsub.f32 %v606, %v721
        %v723 = vand.u32 %v722, 4294901760
        %v724 = vsub.f32 %v722, %v723
        %v725 = vand.u32 %v724, 4294901760
        %726 = vmatpush1.xpose.msra.mxu0 %v725
        %727 = vmatprep.subr.mxu0 0.0
        %728 = vmatpush1.xpose.msra.mxu0 0.0
        %729 = vmatprep.subr.mxu0 0.0
        %730 = vmatpush1.xpose.msra.mxu0 0.0
        %731 = vmatprep.subr.mxu0 0.0
        %732 = vmatpush1.xpose.msra.mxu0 0.0
        %733 = vmatprep.subr.mxu0 0.0
        %734 = vmatpush1.xpose.msra.mxu0 0.0
        %735 = vmatprep.subr.mxu0 0.0
        %736 = vmatpush1.xpose.msra.mxu0 0.0
        %737 = vmatprep.subr.mxu0 0.0
        %738 = vmatpush1.xpose.msra.mxu0 0.0
        %739 = vmatprep.subr.mxu0 0.0
        %740 = vmatpush1.xpose.msra.mxu0 0.0
        %741 = vmatprep.subr.mxu0 0.0
        %742 = vmatpush1.xpose.msra.mxu0 0.0
        %743 = vmatprep.subr.mxu0 0.0
        %744 = vmatpush1.xpose.msra.mxu0 0.0
        %745 = vmatprep.subr.mxu0 0.0
        %746 = vmatpush1.xpose.msra.mxu0 0.0
        %747 = vmatprep.subr.mxu0 0.0
        %748 = vmatpush1.xpose.msra.mxu0 0.0
        %749 = vmatprep.subr.mxu0 0.0
        %750 = vmatpush1.xpose.msra.mxu0 0.0
        %751 = vmatprep.subr.mxu0 0.0
        %752 = vmatpush1.xpose.msra.mxu0 0.0
        %753 = vmatprep.subr.mxu0 0.0
        %754 = vmatpush1.xpose.msra.mxu0 0.0
        %755 = vmatprep.subr.mxu0 0.0
        %756 = vmatpush1.xpose.msra.mxu0 0.0
        %757 = vmatprep.subr.mxu0 0.0
        %758 = vmatpush1.xpose.msra.mxu0 0.0
        %759 = vmatprep.subr.mxu0 0.0
        %760 = vmatpush1.xpose.msra.mxu0 0.0
        %761 = vmatprep.subr.mxu0 0.0
        %762 = vmatpush1.xpose.msra.mxu0 0.0
        %763 = vmatprep.subr.mxu0 0.0
        %764 = vmatpush1.xpose.msra.mxu0 0.0
        %765 = vmatprep.subr.mxu0 0.0
        %766 = vmatpush1.xpose.msra.mxu0 0.0
        %767 = vmatprep.subr.mxu0 0.0
        %768 = vmatpush1.xpose.msra.mxu0 0.0
        %769 = vmatprep.subr.mxu0 0.0
        %770 = vmatpush1.xpose.msra.mxu0 0.0
        %771 = vmatprep.subr.mxu0 0.0
        %772 = vmatpush1.xpose.msra.mxu0 0.0
        %773 = vmatprep.subr.mxu0 0.0
        %774 = vmatpush1.xpose.msra.mxu0 0.0
        %775 = vmatprep.subr.mxu0 0.0
        %776 = vmatpush1.xpose.msra.mxu0 0.0
        %777 = vmatprep.subr.mxu0 0.0
        %778 = vmatpush1.xpose.msra.mxu0 0.0
        %779 = vmatprep.subr.mxu0 0.0
        %780 = vmatpush1.xpose.msra.mxu0 0.0
        %781 = vmatprep.subr.mxu0 0.0
        %782 = vmatpush1.xpose.msra.mxu0 0.0
        %783 = vmatprep.subr.mxu0 0.0
        %784 = vmatpush1.xpose.msra.mxu0 0.0
        %785 = vmatprep.mubr.f32.mxu0 0.0
        %v786 = vand.u32 %v591, 4294901760
        %787 = vmatmul.mubr.f32.gmra.mrb[0].mxu0 %v786
        %v788 = vpop.f32.mrb[0].mxu0
        %v789 = vadd.f32 %v683, %v788
        %v790 = vpop.f32.mrb[0].mxu0
        %791 = vmatprep.mubr.f32.mxu0 0.0
        %v792 = vand.u32 %v594, 4294901760
        %793 = vmatmul.mubr.f32.gmra.mrb[0].mxu0 %v792
        %v794 = vpop.f32.mrb[0].mxu0
        %v795 = vadd.f32 %v693, %v794
        %v796 = vpop.f32.mrb[0].mxu0
        %797 = vmatprep.mubr.f32.mxu0 0.0
        %v798 = vand.u32 %v597, 4294901760
        %799 = vmatmul.mubr.f32.gmra.mrb[0].mxu0 %v798
        %v800 = vpop.f32.mrb[0].mxu0
        %v801 = vadd.f32 %v703, %v800
        %v802 = vpop.f32.mrb[0].mxu0
        %803 = vdwg.mxu0
        %804 = vmatprep.subr.mxu0 0.0
        %v805 = vand.u32 %v600, 4294901760
        %v806 = vsub.f32 %v600, %v805
        %807 = vmatpush1.xpose.msra.mxu0 %v806
        %808 = vmatprep.subr.mxu0 0.0
        %v809 = vand.u32 %v603, 4294901760
        %v810 = vsub.f32 %v603, %v809
        %811 = vmatpush1.xpose.msra.mxu0 %v810
        %812 = vmatprep.subr.mxu0 0.0
        %v813 = vand.u32 %v606, 4294901760
        %v814 = vsub.f32 %v606, %v813
        %815 = vmatpush1.xpose.msra.mxu0 %v814
        %816 = vmatprep.subr.mxu0 0.0
        %817 = vmatpush1.xpose.msra.mxu0 0.0
        %818 = vmatprep.subr.mxu0 0.0
        %819 = vmatpush1.xpose.msra.mxu0 0.0
        %820 = vmatprep.subr.mxu0 0.0
        %821 = vmatpush1.xpose.msra.mxu0 0.0
        %822 = vmatprep.subr.mxu0 0.0
        %823 = vmatpush1.xpose.msra.mxu0 0.0
        %824 = vmatprep.subr.mxu0 0.0
        %825 = vmatpush1.xpose.msra.mxu0 0.0
        %826 = vmatprep.subr.mxu0 0.0
        %827 = vmatpush1.xpose.msra.mxu0 0.0
        %828 = vmatprep.subr.mxu0 0.0
        %829 = vmatpush1.xpose.msra.mxu0 0.0
        %830 = vmatprep.subr.mxu0 0.0
        %831 = vmatpush1.xpose.msra.mxu0 0.0
        %832 = vmatprep.subr.mxu0 0.0
        %833 = vmatpush1.xpose.msra.mxu0 0.0
        %834 = vmatprep.subr.mxu0 0.0
        %835 = vmatpush1.xpose.msra.mxu0 0.0
        %836 = vmatprep.subr.mxu0 0.0
        %837 = vmatpush1.xpose.msra.mxu0 0.0
        %838 = vmatprep.subr.mxu0 0.0
        %839 = vmatpush1.xpose.msra.mxu0 0.0
        %840 = vmatprep.subr.mxu0 0.0
        %841 = vmatpush1.xpose.msra.mxu0 0.0
        %842 = vmatprep.subr.mxu0 0.0
        %843 = vmatpush1.xpose.msra.mxu0 0.0
        %844 = vmatprep.subr.mxu0 0.0
        %845 = vmatpush1.xpose.msra.mxu0 0.0
        %846 = vmatprep.subr.mxu0 0.0
        %847 = vmatpush1.xpose.msra.mxu0 0.0
        %848 = vmatprep.subr.mxu0 0.0
        %849 = vmatpush1.xpose.msra.mxu0 0.0
        %850 = vmatprep.subr.mxu0 0.0
        %851 = vmatpush1.xpose.msra.mxu0 0.0
        %852 = vmatprep.subr.mxu0 0.0
        %853 = vmatpush1.xpose.msra.mxu0 0.0
        %854 = vmatprep.subr.mxu0 0.0
        %855 = vmatpush1.xpose.msra.mxu0 0.0
        %856 = vmatprep.subr.mxu0 0.0
        %857 = vmatpush1.xpose.msra.mxu0 0.0
        %858 = vmatprep.subr.mxu0 0.0
        %859 = vmatpush1.xpose.msra.mxu0 0.0
        %860 = vmatprep.subr.mxu0 0.0
        %861 = vmatpush1.xpose.msra.mxu0 0.0
        %862 = vmatprep.subr.mxu0 0.0
        %863 = vmatpush1.xpose.msra.mxu0 0.0
        %864 = vmatprep.subr.mxu0 0.0
        %865 = vmatpush1.xpose.msra.mxu0 0.0
        %866 = vmatprep.subr.mxu0 0.0
        %867 = vmatpush1.xpose.msra.mxu0 0.0
        %868 = vmatprep.subr.mxu0 0.0
        %869 = vmatpush1.xpose.msra.mxu0 0.0
        %870 = vmatprep.subr.mxu0 0.0
        %871 = vmatpush1.xpose.msra.mxu0 0.0
        %872 = vmatprep.subr.mxu0 0.0
        %873 = vmatpush1.xpose.msra.mxu0 0.0
        %874 = vmatprep.mubr.f32.mxu0 0.0
        %v875 = vand.u32 %v591, 4294901760
        %v876 = vsub.f32 %v591, %v875
        %877 = vmatmul.mubr.f32.gmra.mrb[0].mxu0 %v876
        %v878 = vpop.f32.mrb[0].mxu0
        %v879 = vadd.f32 %v789, %v878
        %v880 = vpop.f32.mrb[0].mxu0
        %881 = vmatprep.mubr.f32.mxu0 0.0
        %v882 = vand.u32 %v594, 4294901760
        %v883 = vsub.f32 %v594, %v882
        %884 = vmatmul.mubr.f32.gmra.mrb[0].mxu0 %v883
        %v885 = vpop.f32.mrb[0].mxu0
        %v886 = vadd.f32 %v795, %v885
        %v887 = vpop.f32.mrb[0].mxu0
        %888 = vmatprep.mubr.f32.mxu0 0.0
        %v889 = vand.u32 %v597, 4294901760
        %v890 = vsub.f32 %v597, %v889
        %891 = vmatmul.mubr.f32.gmra.mrb[0].mxu0 %v890
        %v892 = vpop.f32.mrb[0].mxu0
        %v893 = vadd.f32 %v801, %v892
        %v894 = vpop.f32.mrb[0].mxu0
        %895 = vdwg.mxu0
        %896 = vmatprep.subr.mxu0 0.0
        %v897 = vand.u32 %v600, 4294901760
        %898 = vmatpush1.xpose.msra.mxu0 %v897
        %899 = vmatprep.subr.mxu0 0.0
        %v900 = vand.u32 %v603, 4294901760
        %901 = vmatpush1.xpose.msra.mxu0 %v900
        %902 = vmatprep.subr.mxu0 0.0
        %v903 = vand.u32 %v606, 4294901760
        %904 = vmatpush1.xpose.msra.mxu0 %v903
        %905 = vmatprep.subr.mxu0 0.0
        %906 = vmatpush1.xpose.msra.mxu0 0.0
        %907 = vmatprep.subr.mxu0 0.0
        %908 = vmatpush1.xpose.msra.mxu0 0.0
        %909 = vmatprep.subr.mxu0 0.0
        %910 = vmatpush1.xpose.msra.mxu0 0.0
        %911 = vmatprep.subr.mxu0 0.0
        %912 = vmatpush1.xpose.msra.mxu0 0.0
        %913 = vmatprep.subr.mxu0 0.0
        %914 = vmatpush1.xpose.msra.mxu0 0.0
        %915 = vmatprep.subr.mxu0 0.0
        %916 = vmatpush1.xpose.msra.mxu0 0.0
        %917 = vmatprep.subr.mxu0 0.0
        %918 = vmatpush1.xpose.msra.mxu0 0.0
        %919 = vmatprep.subr.mxu0 0.0
        %920 = vmatpush1.xpose.msra.mxu0 0.0
        %921 = vmatprep.subr.mxu0 0.0
        %922 = vmatpush1.xpose.msra.mxu0 0.0
        %923 = vmatprep.subr.mxu0 0.0
        %924 = vmatpush1.xpose.msra.mxu0 0.0
        %925 = vmatprep.subr.mxu0 0.0
        %926 = vmatpush1.xpose.msra.mxu0 0.0
        %927 = vmatprep.subr.mxu0 0.0
        %928 = vmatpush1.xpose.msra.mxu0 0.0
        %929 = vmatprep.subr.mxu0 0.0
        %930 = vmatpush1.xpose.msra.mxu0 0.0
        %931 = vmatprep.subr.mxu0 0.0
        %932 = vmatpush1.xpose.msra.mxu0 0.0
        %933 = vmatprep.subr.mxu0 0.0
        %934 = vmatpush1.xpose.msra.mxu0 0.0
        %935 = vmatprep.subr.mxu0 0.0
        %936 = vmatpush1.xpose.msra.mxu0 0.0
        %937 = vmatprep.subr.mxu0 0.0
        %938 = vmatpush1.xpose.msra.mxu0 0.0
        %939 = vmatprep.subr.mxu0 0.0
        %940 = vmatpush1.xpose.msra.mxu0 0.0
        %941 = vmatprep.subr.mxu0 0.0
        %942 = vmatpush1.xpose.msra.mxu0 0.0
        %943 = vmatprep.subr.mxu0 0.0
        %944 = vmatpush1.xpose.msra.mxu0 0.0
        %945 = vmatprep.subr.mxu0 0.0
        %946 = vmatpush1.xpose.msra.mxu0 0.0
        %947 = vmatprep.subr.mxu0 0.0
        %948 = vmatpush1.xpose.msra.mxu0 0.0
        %949 = vmatprep.subr.mxu0 0.0
        %950 = vmatpush1.xpose.msra.mxu0 0.0
        %951 = vmatprep.subr.mxu0 0.0
        %952 = vmatpush1.xpose.msra.mxu0 0.0
        %953 = vmatprep.subr.mxu0 0.0
        %954 = vmatpush1.xpose.msra.mxu0 0.0
        %955 = vmatprep.subr.mxu0 0.0
        %956 = vmatpush1.xpose.msra.mxu0 0.0
        %957 = vmatprep.subr.mxu0 0.0
        %958 = vmatpush1.xpose.msra.mxu0 0.0
        %959 = vmatprep.subr.mxu0 0.0
        %960 = vmatpush1.xpose.msra.mxu0 0.0
        %961 = vmatprep.subr.mxu0 0.0
        %962 = vmatpush1.xpose.msra.mxu0 0.0
        %963 = vmatprep.mubr.f32.mxu0 0.0
        %v964 = vand.u32 %v591, 4294901760
        %v965 = vsub.f32 %v591, %v964
        %v966 = vand.u32 %v965, 4294901760
        %967 = vmatmul.mubr.f32.gmra.mrb[0].mxu0 %v966
        %v968 = vpop.f32.mrb[0].mxu0
        %v969 = vadd.f32 %v879, %v968
        %v970 = vpop.f32.mrb[0].mxu0
        %971 = vmatprep.mubr.f32.mxu0 0.0
        %v972 = vand.u32 %v594, 4294901760
        %v973 = vsub.f32 %v594, %v972
        %v974 = vand.u32 %v973, 4294901760
        %975 = vmatmul.mubr.f32.gmra.mrb[0].mxu0 %v974
        %v976 = vpop.f32.mrb[0].mxu0
        %v977 = vadd.f32 %v886, %v976
        %v978 = vpop.f32.mrb[0].mxu0
        %979 = vmatprep.mubr.f32.mxu0 0.0
        %v980 = vand.u32 %v597, 4294901760
        %v981 = vsub.f32 %v597, %v980
        %v982 = vand.u32 %v981, 4294901760
        %983 = vmatmul.mubr.f32.gmra.mrb[0].mxu0 %v982
        %v984 = vpop.f32.mrb[0].mxu0
        %v985 = vadd.f32 %v893, %v984
        %v986 = vpop.f32.mrb[0].mxu0
        %987 = vdwg.mxu0
        %988 = vmatprep.subr.mxu0 0.0
        %v989 = vand.u32 %v600, 4294901760
        %v990 = vsub.f32 %v600, %v989
        %v991 = vand.u32 %v990, 4294901760
        %992 = vmatpush1.xpose.msra.mxu0 %v991
        %993 = vmatprep.subr.mxu0 0.0
        %v994 = vand.u32 %v603, 4294901760
        %v995 = vsub.f32 %v603, %v994
        %v996 = vand.u32 %v995, 4294901760
        %997 = vmatpush1.xpose.msra.mxu0 %v996
        %998 = vmatprep.subr.mxu0 0.0
        %v999 = vand.u32 %v606, 4294901760
        %v1000 = vsub.f32 %v606, %v999
        %v1001 = vand.u32 %v1000, 4294901760
        %1002 = vmatpush1.xpose.msra.mxu0 %v1001
        %1003 = vmatprep.subr.mxu0 0.0
        %1004 = vmatpush1.xpose.msra.mxu0 0.0
        %1005 = vmatprep.subr.mxu0 0.0
        %1006 = vmatpush1.xpose.msra.mxu0 0.0
        %1007 = vmatprep.subr.mxu0 0.0
        %1008 = vmatpush1.xpose.msra.mxu0 0.0
        %1009 = vmatprep.subr.mxu0 0.0
        %1010 = vmatpush1.xpose.msra.mxu0 0.0
        %1011 = vmatprep.subr.mxu0 0.0
        %1012 = vmatpush1.xpose.msra.mxu0 0.0
        %1013 = vmatprep.subr.mxu0 0.0
        %1014 = vmatpush1.xpose.msra.mxu0 0.0
        %1015 = vmatprep.subr.mxu0 0.0
        %1016 = vmatpush1.xpose.msra.mxu0 0.0
        %1017 = vmatprep.subr.mxu0 0.0
        %1018 = vmatpush1.xpose.msra.mxu0 0.0
        %1019 = vmatprep.subr.mxu0 0.0
        %1020 = vmatpush1.xpose.msra.mxu0 0.0
        %1021 = vmatprep.subr.mxu0 0.0
        %1022 = vmatpush1.xpose.msra.mxu0 0.0
        %1023 = vmatprep.subr.mxu0 0.0
        %1024 = vmatpush1.xpose.msra.mxu0 0.0
        %1025 = vmatprep.subr.mxu0 0.0
        %1026 = vmatpush1.xpose.msra.mxu0 0.0
        %1027 = vmatprep.subr.mxu0 0.0
        %1028 = vmatpush1.xpose.msra.mxu0 0.0
        %1029 = vmatprep.subr.mxu0 0.0
        %1030 = vmatpush1.xpose.msra.mxu0 0.0
        %1031 = vmatprep.subr.mxu0 0.0
        %1032 = vmatpush1.xpose.msra.mxu0 0.0
        %1033 = vmatprep.subr.mxu0 0.0
        %1034 = vmatpush1.xpose.msra.mxu0 0.0
        %1035 = vmatprep.subr.mxu0 0.0
        %1036 = vmatpush1.xpose.msra.mxu0 0.0
        %1037 = vmatprep.subr.mxu0 0.0
        %1038 = vmatpush1.xpose.msra.mxu0 0.0
        %1039 = vmatprep.subr.mxu0 0.0
        %1040 = vmatpush1.xpose.msra.mxu0 0.0
        %1041 = vmatprep.subr.mxu0 0.0
        %1042 = vmatpush1.xpose.msra.mxu0 0.0
        %1043 = vmatprep.subr.mxu0 0.0
        %1044 = vmatpush1.xpose.msra.mxu0 0.0
        %1045 = vmatprep.subr.mxu0 0.0
        %1046 = vmatpush1.xpose.msra.mxu0 0.0
        %1047 = vmatprep.subr.mxu0 0.0
        %1048 = vmatpush1.xpose.msra.mxu0 0.0
        %1049 = vmatprep.subr.mxu0 0.0
        %1050 = vmatpush1.xpose.msra.mxu0 0.0
        %1051 = vmatprep.subr.mxu0 0.0
        %1052 = vmatpush1.xpose.msra.mxu0 0.0
        %1053 = vmatprep.subr.mxu0 0.0
        %1054 = vmatpush1.xpose.msra.mxu0 0.0
        %1055 = vmatprep.subr.mxu0 0.0
        %1056 = vmatpush1.xpose.msra.mxu0 0.0
        %1057 = vmatprep.subr.mxu0 0.0
        %1058 = vmatpush1.xpose.msra.mxu0 0.0
        %1059 = vmatprep.subr.mxu0 0.0
        %1060 = vmatpush1.xpose.msra.mxu0 0.0
        %1061 = vmatprep.mubr.f32.mxu0 0.0
        %v1062 = vand.u32 %v591, 4294901760
        %1063 = vmatmul.mubr.f32.gmra.mrb[0].mxu0 %v1062
        %v1064 = vpop.f32.mrb[0].mxu0
        %v1065 = vadd.f32 %v969, %v1064
        %v1066 = vpop.f32.mrb[0].mxu0
        %1067 = vmatprep.mubr.f32.mxu0 0.0
        %v1068 = vand.u32 %v594, 4294901760
        %1069 = vmatmul.mubr.f32.gmra.mrb[0].mxu0 %v1068
        %v1070 = vpop.f32.mrb[0].mxu0
        %v1071 = vadd.f32 %v977, %v1070
        %v1072 = vpop.f32.mrb[0].mxu0
        %1073 = vmatprep.mubr.f32.mxu0 0.0
        %v1074 = vand.u32 %v597, 4294901760
        %1075 = vmatmul.mubr.f32.gmra.mrb[0].mxu0 %v1074
        %v1076 = vpop.f32.mrb[0].mxu0
        %v1077 = vadd.f32 %v985, %v1076
        %v1078 = vpop.f32.mrb[0].mxu0
        %1079 = vdwg.mxu0
        %1080 = vmatprep.subr.mxu0 0.0
        %v1081 = vand.u32 %v600, 4294901760
        %1082 = vmatpush1.xpose.msra.mxu0 %v1081
        %1083 = vmatprep.subr.mxu0 0.0
        %v1084 = vand.u32 %v603, 4294901760
        %1085 = vmatpush1.xpose.msra.mxu0 %v1084
        %1086 = vmatprep.subr.mxu0 0.0
        %v1087 = vand.u32 %v606, 4294901760
        %1088 = vmatpush1.xpose.msra.mxu0 %v1087
        %1089 = vmatprep.subr.mxu0 0.0
        %1090 = vmatpush1.xpose.msra.mxu0 0.0
        %1091 = vmatprep.subr.mxu0 0.0
        %1092 = vmatpush1.xpose.msra.mxu0 0.0
        %1093 = vmatprep.subr.mxu0 0.0
        %1094 = vmatpush1.xpose.msra.mxu0 0.0
        %1095 = vmatprep.subr.mxu0 0.0
        %1096 = vmatpush1.xpose.msra.mxu0 0.0
        %1097 = vmatprep.subr.mxu0 0.0
        %1098 = vmatpush1.xpose.msra.mxu0 0.0
        %1099 = vmatprep.subr.mxu0 0.0
        %1100 = vmatpush1.xpose.msra.mxu0 0.0
        %1101 = vmatprep.subr.mxu0 0.0
        %1102 = vmatpush1.xpose.msra.mxu0 0.0
        %1103 = vmatprep.subr.mxu0 0.0
        %1104 = vmatpush1.xpose.msra.mxu0 0.0
        %1105 = vmatprep.subr.mxu0 0.0
        %1106 = vmatpush1.xpose.msra.mxu0 0.0
        %1107 = vmatprep.subr.mxu0 0.0
        %1108 = vmatpush1.xpose.msra.mxu0 0.0
        %1109 = vmatprep.subr.mxu0 0.0
        %1110 = vmatpush1.xpose.msra.mxu0 0.0
        %1111 = vmatprep.subr.mxu0 0.0
        %1112 = vmatpush1.xpose.msra.mxu0 0.0
        %1113 = vmatprep.subr.mxu0 0.0
        %1114 = vmatpush1.xpose.msra.mxu0 0.0
        %1115 = vmatprep.subr.mxu0 0.0
        %1116 = vmatpush1.xpose.msra.mxu0 0.0
        %1117 = vmatprep.subr.mxu0 0.0
        %1118 = vmatpush1.xpose.msra.mxu0 0.0
        %1119 = vmatprep.subr.mxu0 0.0
        %1120 = vmatpush1.xpose.msra.mxu0 0.0
        %1121 = vmatprep.subr.mxu0 0.0
        %1122 = vmatpush1.xpose.msra.mxu0 0.0
        %1123 = vmatprep.subr.mxu0 0.0
        %1124 = vmatpush1.xpose.msra.mxu0 0.0
        %1125 = vmatprep.subr.mxu0 0.0
        %1126 = vmatpush1.xpose.msra.mxu0 0.0
        %1127 = vmatprep.subr.mxu0 0.0
        %1128 = vmatpush1.xpose.msra.mxu0 0.0
        %1129 = vmatprep.subr.mxu0 0.0
        %1130 = vmatpush1.xpose.msra.mxu0 0.0
        %1131 = vmatprep.subr.mxu0 0.0
        %1132 = vmatpush1.xpose.msra.mxu0 0.0
        %1133 = vmatprep.subr.mxu0 0.0
        %1134 = vmatpush1.xpose.msra.mxu0 0.0
        %1135 = vmatprep.subr.mxu0 0.0
        %1136 = vmatpush1.xpose.msra.mxu0 0.0
        %1137 = vmatprep.subr.mxu0 0.0
        %1138 = vmatpush1.xpose.msra.mxu0 0.0
        %1139 = vmatprep.subr.mxu0 0.0
        %1140 = vmatpush1.xpose.msra.mxu0 0.0
        %1141 = vmatprep.subr.mxu0 0.0
        %1142 = vmatpush1.xpose.msra.mxu0 0.0
        %1143 = vmatprep.subr.mxu0 0.0
        %1144 = vmatpush1.xpose.msra.mxu0 0.0
        %1145 = vmatprep.subr.mxu0 0.0
        %1146 = vmatpush1.xpose.msra.mxu0 0.0
        %1147 = vmatprep.mubr.f32.mxu0 0.0
        %v1148 = vand.u32 %v591, 4294901760
        %1149 = vmatmul.mubr.f32.gmra.mrb[0].mxu0 %v1148
        %v1150 = vpop.f32.mrb[0].mxu0
        %v1151 = vadd.f32 %v1065, %v1150
        %v1152 = vpop.f32.mrb[0].mxu0
        %1153 = vmatprep.mubr.f32.mxu0 0.0
        %v1154 = vand.u32 %v594, 4294901760
        %1155 = vmatmul.mubr.f32.gmra.mrb[0].mxu0 %v1154
        %v1156 = vpop.f32.mrb[0].mxu0
        %v1157 = vadd.f32 %v1071, %v1156
        %v1158 = vpop.f32.mrb[0].mxu0
        %1159 = vmatprep.mubr.f32.mxu0 0.0
        %v1160 = vand.u32 %v597, 4294901760
        %1161 = vmatmul.mubr.f32.gmra.mrb[0].mxu0 %v1160
        %v1162 = vpop.f32.mrb[0].mxu0
        %v1163 = vadd.f32 %v1077, %v1162
        %v1164 = vpop.f32.mrb[0].mxu0
        %1165 = vdwg.mxu0
        %v1166 = vmul.f32 %v1151, %v570
        %v1167 = vmul.f32 %v1157, %v571
        %v1168 = vmul.f32 %v1163, %v572
        %vm1169 = vcmask 195584
        %v1171 = vsel %vm1169, %v573, 0
        %v1174 = vsel %vm1169, %v574, 0
        %v1177 = vsel %vm1169, %v575, 0
        %1179 = vmatprep.subr.mxu0 0.0
        %v1180 = vand.u32 %v1166, 4294901760
        %1181 = vmatpush1.msra.mxu0 %v1180
        %1182 = vmatprep.subr.mxu0 0.0
        %v1183 = vand.u32 %v1167, 4294901760
        %1184 = vmatpush1.msra.mxu0 %v1183
        %1185 = vmatprep.subr.mxu0 0.0
        %v1186 = vand.u32 %v1168, 4294901760
        %1187 = vmatpush1.msra.mxu0 %v1186
        %1188 = vmatprep.subr.mxu0 0.0
        %1189 = vmatpush1.msra.mxu0 0.0
        %1190 = vmatprep.subr.mxu0 0.0
        %1191 = vmatpush1.msra.mxu0 0.0
        %1192 = vmatprep.subr.mxu0 0.0
        %1193 = vmatpush1.msra.mxu0 0.0
        %1194 = vmatprep.subr.mxu0 0.0
        %1195 = vmatpush1.msra.mxu0 0.0
        %1196 = vmatprep.subr.mxu0 0.0
        %1197 = vmatpush1.msra.mxu0 0.0
        %1198 = vmatprep.subr.mxu0 0.0
        %1199 = vmatpush1.msra.mxu0 0.0
        %1200 = vmatprep.subr.mxu0 0.0
        %1201 = vmatpush1.msra.mxu0 0.0
        %1202 = vmatprep.subr.mxu0 0.0
        %1203 = vmatpush1.msra.mxu0 0.0
        %1204 = vmatprep.subr.mxu0 0.0
        %1205 = vmatpush1.msra.mxu0 0.0
        %1206 = vmatprep.subr.mxu0 0.0
        %1207 = vmatpush1.msra.mxu0 0.0
        %1208 = vmatprep.subr.mxu0 0.0
        %1209 = vmatpush1.msra.mxu0 0.0
        %1210 = vmatprep.subr.mxu0 0.0
        %1211 = vmatpush1.msra.mxu0 0.0
        %1212 = vmatprep.subr.mxu0 0.0
        %1213 = vmatpush1.msra.mxu0 0.0
        %1214 = vmatprep.subr.mxu0 0.0
        %1215 = vmatpush1.msra.mxu0 0.0
        %1216 = vmatprep.subr.mxu0 0.0
        %1217 = vmatpush1.msra.mxu0 0.0
        %1218 = vmatprep.subr.mxu0 0.0
        %1219 = vmatpush1.msra.mxu0 0.0
        %1220 = vmatprep.subr.mxu0 0.0
        %1221 = vmatpush1.msra.mxu0 0.0
        %1222 = vmatprep.subr.mxu0 0.0
        %1223 = vmatpush1.msra.mxu0 0.0
        %1224 = vmatprep.subr.mxu0 0.0
        %1225 = vmatpush1.msra.mxu0 0.0
        %1226 = vmatprep.subr.mxu0 0.0
        %1227 = vmatpush1.msra.mxu0 0.0
        %1228 = vmatprep.subr.mxu0 0.0
        %1229 = vmatpush1.msra.mxu0 0.0
        %1230 = vmatprep.subr.mxu0 0.0
        %1231 = vmatpush1.msra.mxu0 0.0
        %1232 = vmatprep.subr.mxu0 0.0
        %1233 = vmatpush1.msra.mxu0 0.0
        %1234 = vmatprep.subr.mxu0 0.0
        %1235 = vmatpush1.msra.mxu0 0.0
        %1236 = vmatprep.subr.mxu0 0.0
        %1237 = vmatpush1.msra.mxu0 0.0
        %1238 = vmatprep.subr.mxu0 0.0
        %1239 = vmatpush1.msra.mxu0 0.0
        %1240 = vmatprep.subr.mxu0 0.0
        %1241 = vmatpush1.msra.mxu0 0.0
        %1242 = vmatprep.subr.mxu0 0.0
        %1243 = vmatpush1.msra.mxu0 0.0
        %1244 = vmatprep.subr.mxu0 0.0
        %1245 = vmatpush1.msra.mxu0 0.0
        %1246 = vmatprep.mubr.f32.mxu0 0.0
        %v1247 = vand.u32 %v1171, 4294901760
        %v1248 = vsub.f32 %v1171, %v1247
        %v1249 = vand.u32 %v1248, 4294901760
        %v1250 = vsub.f32 %v1248, %v1249
        %v1251 = vand.u32 %v1250, 4294901760
        %1252 = vmatmul.mubr.f32.gmra.mrb[0].mxu0 %v1251
        %v1253 = vpop.f32.mrb[0].mxu0
        %v1254 = vadd.f32 0.0, %v1253
        %v1255 = vpop.f32.mrb[0].mxu0
        %1256 = vmatprep.mubr.f32.mxu0 0.0
        %v1257 = vand.u32 %v1174, 4294901760
        %v1258 = vsub.f32 %v1174, %v1257
        %v1259 = vand.u32 %v1258, 4294901760
        %v1260 = vsub.f32 %v1258, %v1259
        %v1261 = vand.u32 %v1260, 4294901760
        %1262 = vmatmul.mubr.f32.gmra.mrb[0].mxu0 %v1261
        %v1263 = vpop.f32.mrb[0].mxu0
        %v1264 = vadd.f32 0.0, %v1263
        %v1265 = vpop.f32.mrb[0].mxu0
        %1266 = vmatprep.mubr.f32.mxu0 0.0
        %v1267 = vand.u32 %v1177, 4294901760
        %v1268 = vsub.f32 %v1177, %v1267
        %v1269 = vand.u32 %v1268, 4294901760
        %v1270 = vsub.f32 %v1268, %v1269
        %v1271 = vand.u32 %v1270, 4294901760
        %1272 = vmatmul.mubr.f32.gmra.mrb[0].mxu0 %v1271
        %v1273 = vpop.f32.mrb[0].mxu0
        %v1274 = vadd.f32 0.0, %v1273
        %v1275 = vpop.f32.mrb[0].mxu0
        %1276 = vdwg.mxu0
        %1277 = vmatprep.subr.mxu0 0.0
        %v1278 = vand.u32 %v1166, 4294901760
        %v1279 = vsub.f32 %v1166, %v1278
        %v1280 = vand.u32 %v1279, 4294901760
        %v1281 = vsub.f32 %v1279, %v1280
        %v1282 = vand.u32 %v1281, 4294901760
        %1283 = vmatpush1.msra.mxu0 %v1282
        %1284 = vmatprep.subr.mxu0 0.0
        %v1285 = vand.u32 %v1167, 4294901760
        %v1286 = vsub.f32 %v1167, %v1285
        %v1287 = vand.u32 %v1286, 4294901760
        %v1288 = vsub.f32 %v1286, %v1287
        %v1289 = vand.u32 %v1288, 4294901760
        %1290 = vmatpush1.msra.mxu0 %v1289
        %1291 = vmatprep.subr.mxu0 0.0
        %v1292 = vand.u32 %v1168, 4294901760
        %v1293 = vsub.f32 %v1168, %v1292
        %v1294 = vand.u32 %v1293, 4294901760
        %v1295 = vsub.f32 %v1293, %v1294
        %v1296 = vand.u32 %v1295, 4294901760
        %1297 = vmatpush1.msra.mxu0 %v1296
        %1298 = vmatprep.subr.mxu0 0.0
        %1299 = vmatpush1.msra.mxu0 0.0
        %1300 = vmatprep.subr.mxu0 0.0
        %1301 = vmatpush1.msra.mxu0 0.0
        %1302 = vmatprep.subr.mxu0 0.0
        %1303 = vmatpush1.msra.mxu0 0.0
        %1304 = vmatprep.subr.mxu0 0.0
        %1305 = vmatpush1.msra.mxu0 0.0
        %1306 = vmatprep.subr.mxu0 0.0
        %1307 = vmatpush1.msra.mxu0 0.0
        %1308 = vmatprep.subr.mxu0 0.0
        %1309 = vmatpush1.msra.mxu0 0.0
        %1310 = vmatprep.subr.mxu0 0.0
        %1311 = vmatpush1.msra.mxu0 0.0
        %1312 = vmatprep.subr.mxu0 0.0
        %1313 = vmatpush1.msra.mxu0 0.0
        %1314 = vmatprep.subr.mxu0 0.0
        %1315 = vmatpush1.msra.mxu0 0.0
        %1316 = vmatprep.subr.mxu0 0.0
        %1317 = vmatpush1.msra.mxu0 0.0
        %1318 = vmatprep.subr.mxu0 0.0
        %1319 = vmatpush1.msra.mxu0 0.0
        %1320 = vmatprep.subr.mxu0 0.0
        %1321 = vmatpush1.msra.mxu0 0.0
        %1322 = vmatprep.subr.mxu0 0.0
        %1323 = vmatpush1.msra.mxu0 0.0
        %1324 = vmatprep.subr.mxu0 0.0
        %1325 = vmatpush1.msra.mxu0 0.0
        %1326 = vmatprep.subr.mxu0 0.0
        %1327 = vmatpush1.msra.mxu0 0.0
        %1328 = vmatprep.subr.mxu0 0.0
        %1329 = vmatpush1.msra.mxu0 0.0
        %1330 = vmatprep.subr.mxu0 0.0
        %1331 = vmatpush1.msra.mxu0 0.0
        %1332 = vmatprep.subr.mxu0 0.0
        %1333 = vmatpush1.msra.mxu0 0.0
        %1334 = vmatprep.subr.mxu0 0.0
        %1335 = vmatpush1.msra.mxu0 0.0
        %1336 = vmatprep.subr.mxu0 0.0
        %1337 = vmatpush1.msra.mxu0 0.0
        %1338 = vmatprep.subr.mxu0 0.0
        %1339 = vmatpush1.msra.mxu0 0.0
        %1340 = vmatprep.subr.mxu0 0.0
        %1341 = vmatpush1.msra.mxu0 0.0
        %1342 = vmatprep.subr.mxu0 0.0
        %1343 = vmatpush1.msra.mxu0 0.0
        %1344 = vmatprep.subr.mxu0 0.0
        %1345 = vmatpush1.msra.mxu0 0.0
        %1346 = vmatprep.subr.mxu0 0.0
        %1347 = vmatpush1.msra.mxu0 0.0
        %1348 = vmatprep.subr.mxu0 0.0
        %1349 = vmatpush1.msra.mxu0 0.0
        %1350 = vmatprep.subr.mxu0 0.0
        %1351 = vmatpush1.msra.mxu0 0.0
        %1352 = vmatprep.subr.mxu0 0.0
        %1353 = vmatpush1.msra.mxu0 0.0
        %1354 = vmatprep.subr.mxu0 0.0
        %1355 = vmatpush1.msra.mxu0 0.0
        %1356 = vmatprep.mubr.f32.mxu0 0.0
        %v1357 = vand.u32 %v1171, 4294901760
        %1358 = vmatmul.mubr.f32.gmra.mrb[0].mxu0 %v1357
        %v1359 = vpop.f32.mrb[0].mxu0
        %v1360 = vadd.f32 %v1254, %v1359
        %v1361 = vpop.f32.mrb[0].mxu0
        %1362 = vmatprep.mubr.f32.mxu0 0.0
        %v1363 = vand.u32 %v1174, 4294901760
        %1364 = vmatmul.mubr.f32.gmra.mrb[0].mxu0 %v1363
        %v1365 = vpop.f32.mrb[0].mxu0
        %v1366 = vadd.f32 %v1264, %v1365
        %v1367 = vpop.f32.mrb[0].mxu0
        %1368 = vmatprep.mubr.f32.mxu0 0.0
        %v1369 = vand.u32 %v1177, 4294901760
        %1370 = vmatmul.mubr.f32.gmra.mrb[0].mxu0 %v1369
        %v1371 = vpop.f32.mrb[0].mxu0
        %v1372 = vadd.f32 %v1274, %v1371
        %v1373 = vpop.f32.mrb[0].mxu0
        %1374 = vdwg.mxu0
        %1375 = vmatprep.subr.mxu0 0.0
        %v1376 = vand.u32 %v1166, 4294901760
        %v1377 = vsub.f32 %v1166, %v1376
        %1378 = vmatpush1.msra.mxu0 %v1377
        %1379 = vmatprep.subr.mxu0 0.0
        %v1380 = vand.u32 %v1167, 4294901760
        %v1381 = vsub.f32 %v1167, %v1380
        %1382 = vmatpush1.msra.mxu0 %v1381
        %1383 = vmatprep.subr.mxu0 0.0
        %v1384 = vand.u32 %v1168, 4294901760
        %v1385 = vsub.f32 %v1168, %v1384
        %1386 = vmatpush1.msra.mxu0 %v1385
        %1387 = vmatprep.subr.mxu0 0.0
        %1388 = vmatpush1.msra.mxu0 0.0
        %1389 = vmatprep.subr.mxu0 0.0
        %1390 = vmatpush1.msra.mxu0 0.0
        %1391 = vmatprep.subr.mxu0 0.0
        %1392 = vmatpush1.msra.mxu0 0.0
        %1393 = vmatprep.subr.mxu0 0.0
        %1394 = vmatpush1.msra.mxu0 0.0
        %1395 = vmatprep.subr.mxu0 0.0
        %1396 = vmatpush1.msra.mxu0 0.0
        %1397 = vmatprep.subr.mxu0 0.0
        %1398 = vmatpush1.msra.mxu0 0.0
        %1399 = vmatprep.subr.mxu0 0.0
        %1400 = vmatpush1.msra.mxu0 0.0
        %1401 = vmatprep.subr.mxu0 0.0
        %1402 = vmatpush1.msra.mxu0 0.0
        %1403 = vmatprep.subr.mxu0 0.0
        %1404 = vmatpush1.msra.mxu0 0.0
        %1405 = vmatprep.subr.mxu0 0.0
        %1406 = vmatpush1.msra.mxu0 0.0
        %1407 = vmatprep.subr.mxu0 0.0
        %1408 = vmatpush1.msra.mxu0 0.0
        %1409 = vmatprep.subr.mxu0 0.0
        %1410 = vmatpush1.msra.mxu0 0.0
        %1411 = vmatprep.subr.mxu0 0.0
        %1412 = vmatpush1.msra.mxu0 0.0
        %1413 = vmatprep.subr.mxu0 0.0
        %1414 = vmatpush1.msra.mxu0 0.0
        %1415 = vmatprep.subr.mxu0 0.0
        %1416 = vmatpush1.msra.mxu0 0.0
        %1417 = vmatprep.subr.mxu0 0.0
        %1418 = vmatpush1.msra.mxu0 0.0
        %1419 = vmatprep.subr.mxu0 0.0
        %1420 = vmatpush1.msra.mxu0 0.0
        %1421 = vmatprep.subr.mxu0 0.0
        %1422 = vmatpush1.msra.mxu0 0.0
        %1423 = vmatprep.subr.mxu0 0.0
        %1424 = vmatpush1.msra.mxu0 0.0
        %1425 = vmatprep.subr.mxu0 0.0
        %1426 = vmatpush1.msra.mxu0 0.0
        %1427 = vmatprep.subr.mxu0 0.0
        %1428 = vmatpush1.msra.mxu0 0.0
        %1429 = vmatprep.subr.mxu0 0.0
        %1430 = vmatpush1.msra.mxu0 0.0
        %1431 = vmatprep.subr.mxu0 0.0
        %1432 = vmatpush1.msra.mxu0 0.0
        %1433 = vmatprep.subr.mxu0 0.0
        %1434 = vmatpush1.msra.mxu0 0.0
        %1435 = vmatprep.subr.mxu0 0.0
        %1436 = vmatpush1.msra.mxu0 0.0
        %1437 = vmatprep.subr.mxu0 0.0
        %1438 = vmatpush1.msra.mxu0 0.0
        %1439 = vmatprep.subr.mxu0 0.0
        %1440 = vmatpush1.msra.mxu0 0.0
        %1441 = vmatprep.subr.mxu0 0.0
        %1442 = vmatpush1.msra.mxu0 0.0
        %1443 = vmatprep.subr.mxu0 0.0
        %1444 = vmatpush1.msra.mxu0 0.0
        %1445 = vmatprep.mubr.f32.mxu0 0.0
        %v1446 = vand.u32 %v1171, 4294901760
        %v1447 = vsub.f32 %v1171, %v1446
        %1448 = vmatmul.mubr.f32.gmra.mrb[0].mxu0 %v1447
        %v1449 = vpop.f32.mrb[0].mxu0
        %v1450 = vadd.f32 %v1360, %v1449
        %v1451 = vpop.f32.mrb[0].mxu0
        %1452 = vmatprep.mubr.f32.mxu0 0.0
        %v1453 = vand.u32 %v1174, 4294901760
        %v1454 = vsub.f32 %v1174, %v1453
        %1455 = vmatmul.mubr.f32.gmra.mrb[0].mxu0 %v1454
        %v1456 = vpop.f32.mrb[0].mxu0
        %v1457 = vadd.f32 %v1366, %v1456
        %v1458 = vpop.f32.mrb[0].mxu0
        %1459 = vmatprep.mubr.f32.mxu0 0.0
        %v1460 = vand.u32 %v1177, 4294901760
        %v1461 = vsub.f32 %v1177, %v1460
        %1462 = vmatmul.mubr.f32.gmra.mrb[0].mxu0 %v1461
        %v1463 = vpop.f32.mrb[0].mxu0
        %v1464 = vadd.f32 %v1372, %v1463
        %v1465 = vpop.f32.mrb[0].mxu0
        %1466 = vdwg.mxu0
        %1467 = vmatprep.subr.mxu0 0.0
        %v1468 = vand.u32 %v1166, 4294901760
        %1469 = vmatpush1.msra.mxu0 %v1468
        %1470 = vmatprep.subr.mxu0 0.0
        %v1471 = vand.u32 %v1167, 4294901760
        %1472 = vmatpush1.msra.mxu0 %v1471
        %1473 = vmatprep.subr.mxu0 0.0
        %v1474 = vand.u32 %v1168, 4294901760
        %1475 = vmatpush1.msra.mxu0 %v1474
        %1476 = vmatprep.subr.mxu0 0.0
        %1477 = vmatpush1.msra.mxu0 0.0
        %1478 = vmatprep.subr.mxu0 0.0
        %1479 = vmatpush1.msra.mxu0 0.0
        %1480 = vmatprep.subr.mxu0 0.0
        %1481 = vmatpush1.msra.mxu0 0.0
        %1482 = vmatprep.subr.mxu0 0.0
        %1483 = vmatpush1.msra.mxu0 0.0
        %1484 = vmatprep.subr.mxu0 0.0
        %1485 = vmatpush1.msra.mxu0 0.0
        %1486 = vmatprep.subr.mxu0 0.0
        %1487 = vmatpush1.msra.mxu0 0.0
        %1488 = vmatprep.subr.mxu0 0.0
        %1489 = vmatpush1.msra.mxu0 0.0
        %1490 = vmatprep.subr.mxu0 0.0
        %1491 = vmatpush1.msra.mxu0 0.0
        %1492 = vmatprep.subr.mxu0 0.0
        %1493 = vmatpush1.msra.mxu0 0.0
        %1494 = vmatprep.subr.mxu0 0.0
        %1495 = vmatpush1.msra.mxu0 0.0
        %1496 = vmatprep.subr.mxu0 0.0
        %1497 = vmatpush1.msra.mxu0 0.0
        %1498 = vmatprep.subr.mxu0 0.0
        %1499 = vmatpush1.msra.mxu0 0.0
        %1500 = vmatprep.subr.mxu0 0.0
        %1501 = vmatpush1.msra.mxu0 0.0
        %1502 = vmatprep.subr.mxu0 0.0
        %1503 = vmatpush1.msra.mxu0 0.0
        %1504 = vmatprep.subr.mxu0 0.0
        %1505 = vmatpush1.msra.mxu0 0.0
        %1506 = vmatprep.subr.mxu0 0.0
        %1507 = vmatpush1.msra.mxu0 0.0
        %1508 = vmatprep.subr.mxu0 0.0
        %1509 = vmatpush1.msra.mxu0 0.0
        %1510 = vmatprep.subr.mxu0 0.0
        %1511 = vmatpush1.msra.mxu0 0.0
        %1512 = vmatprep.subr.mxu0 0.0
        %1513 = vmatpush1.msra.mxu0 0.0
        %1514 = vmatprep.subr.mxu0 0.0
        %1515 = vmatpush1.msra.mxu0 0.0
        %1516 = vmatprep.subr.mxu0 0.0
        %1517 = vmatpush1.msra.mxu0 0.0
        %1518 = vmatprep.subr.mxu0 0.0
        %1519 = vmatpush1.msra.mxu0 0.0
        %1520 = vmatprep.subr.mxu0 0.0
        %1521 = vmatpush1.msra.mxu0 0.0
        %1522 = vmatprep.subr.mxu0 0.0
        %1523 = vmatpush1.msra.mxu0 0.0
        %1524 = vmatprep.subr.mxu0 0.0
        %1525 = vmatpush1.msra.mxu0 0.0
        %1526 = vmatprep.subr.mxu0 0.0
        %1527 = vmatpush1.msra.mxu0 0.0
        %1528 = vmatprep.subr.mxu0 0.0
        %1529 = vmatpush1.msra.mxu0 0.0
        %1530 = vmatprep.subr.mxu0 0.0
        %1531 = vmatpush1.msra.mxu0 0.0
        %1532 = vmatprep.subr.mxu0 0.0
        %1533 = vmatpush1.msra.mxu0 0.0
        %1534 = vmatprep.mubr.f32.mxu0 0.0
        %v1535 = vand.u32 %v1171, 4294901760
        %v1536 = vsub.f32 %v1171, %v1535
        %v1537 = vand.u32 %v1536, 4294901760
        %1538 = vmatmul.mubr.f32.gmra.mrb[0].mxu0 %v1537
        %v1539 = vpop.f32.mrb[0].mxu0
        %v1540 = vadd.f32 %v1450, %v1539
        %v1541 = vpop.f32.mrb[0].mxu0
        %1542 = vmatprep.mubr.f32.mxu0 0.0
        %v1543 = vand.u32 %v1174, 4294901760
        %v1544 = vsub.f32 %v1174, %v1543
        %v1545 = vand.u32 %v1544, 4294901760
        %1546 = vmatmul.mubr.f32.gmra.mrb[0].mxu0 %v1545
        %v1547 = vpop.f32.mrb[0].mxu0
        %v1548 = vadd.f32 %v1457, %v1547
        %v1549 = vpop.f32.mrb[0].mxu0
        %1550 = vmatprep.mubr.f32.mxu0 0.0
        %v1551 = vand.u32 %v1177, 4294901760
        %v1552 = vsub.f32 %v1177, %v1551
        %v1553 = vand.u32 %v1552, 4294901760
        %1554 = vmatmul.mubr.f32.gmra.mrb[0].mxu0 %v1553
        %v1555 = vpop.f32.mrb[0].mxu0
        %v1556 = vadd.f32 %v1464, %v1555
        %v1557 = vpop.f32.mrb[0].mxu0
        %1558 = vdwg.mxu0
        %1559 = vmatprep.subr.mxu0 0.0
        %v1560 = vand.u32 %v1166, 4294901760
        %v1561 = vsub.f32 %v1166, %v1560
        %v1562 = vand.u32 %v1561, 4294901760
        %1563 = vmatpush1.msra.mxu0 %v1562
        %1564 = vmatprep.subr.mxu0 0.0
        %v1565 = vand.u32 %v1167, 4294901760
        %v1566 = vsub.f32 %v1167, %v1565
        %v1567 = vand.u32 %v1566, 4294901760
        %1568 = vmatpush1.msra.mxu0 %v1567
        %1569 = vmatprep.subr.mxu0 0.0
        %v1570 = vand.u32 %v1168, 4294901760
        %v1571 = vsub.f32 %v1168, %v1570
        %v1572 = vand.u32 %v1571, 4294901760
        %1573 = vmatpush1.msra.mxu0 %v1572
        %1574 = vmatprep.subr.mxu0 0.0
        %1575 = vmatpush1.msra.mxu0 0.0
        %1576 = vmatprep.subr.mxu0 0.0
        %1577 = vmatpush1.msra.mxu0 0.0
        %1578 = vmatprep.subr.mxu0 0.0
        %1579 = vmatpush1.msra.mxu0 0.0
        %1580 = vmatprep.subr.mxu0 0.0
        %1581 = vmatpush1.msra.mxu0 0.0
        %1582 = vmatprep.subr.mxu0 0.0
        %1583 = vmatpush1.msra.mxu0 0.0
        %1584 = vmatprep.subr.mxu0 0.0
        %1585 = vmatpush1.msra.mxu0 0.0
        %1586 = vmatprep.subr.mxu0 0.0
        %1587 = vmatpush1.msra.mxu0 0.0
        %1588 = vmatprep.subr.mxu0 0.0
        %1589 = vmatpush1.msra.mxu0 0.0
        %1590 = vmatprep.subr.mxu0 0.0
        %1591 = vmatpush1.msra.mxu0 0.0
        %1592 = vmatprep.subr.mxu0 0.0
        %1593 = vmatpush1.msra.mxu0 0.0
        %1594 = vmatprep.subr.mxu0 0.0
        %1595 = vmatpush1.msra.mxu0 0.0
        %1596 = vmatprep.subr.mxu0 0.0
        %1597 = vmatpush1.msra.mxu0 0.0
        %1598 = vmatprep.subr.mxu0 0.0
        %1599 = vmatpush1.msra.mxu0 0.0
        %1600 = vmatprep.subr.mxu0 0.0
        %1601 = vmatpush1.msra.mxu0 0.0
        %1602 = vmatprep.subr.mxu0 0.0
        %1603 = vmatpush1.msra.mxu0 0.0
        %1604 = vmatprep.subr.mxu0 0.0
        %1605 = vmatpush1.msra.mxu0 0.0
        %1606 = vmatprep.subr.mxu0 0.0
        %1607 = vmatpush1.msra.mxu0 0.0
        %1608 = vmatprep.subr.mxu0 0.0
        %1609 = vmatpush1.msra.mxu0 0.0
        %1610 = vmatprep.subr.mxu0 0.0
        %1611 = vmatpush1.msra.mxu0 0.0
        %1612 = vmatprep.subr.mxu0 0.0
        %1613 = vmatpush1.msra.mxu0 0.0
        %1614 = vmatprep.subr.mxu0 0.0
        %1615 = vmatpush1.msra.mxu0 0.0
        %1616 = vmatprep.subr.mxu0 0.0
        %1617 = vmatpush1.msra.mxu0 0.0
        %1618 = vmatprep.subr.mxu0 0.0
        %1619 = vmatpush1.msra.mxu0 0.0
        %1620 = vmatprep.subr.mxu0 0.0
        %1621 = vmatpush1.msra.mxu0 0.0
        %1622 = vmatprep.subr.mxu0 0.0
        %1623 = vmatpush1.msra.mxu0 0.0
        %1624 = vmatprep.subr.mxu0 0.0
        %1625 = vmatpush1.msra.mxu0 0.0
        %1626 = vmatprep.subr.mxu0 0.0
        %1627 = vmatpush1.msra.mxu0 0.0
        %1628 = vmatprep.subr.mxu0 0.0
        %1629 = vmatpush1.msra.mxu0 0.0
        %1630 = vmatprep.subr.mxu0 0.0
        %1631 = vmatpush1.msra.mxu0 0.0
        %1632 = vmatprep.mubr.f32.mxu0 0.0
        %v1633 = vand.u32 %v1171, 4294901760
        %1634 = vmatmul.mubr.f32.gmra.mrb[0].mxu0 %v1633
        %v1635 = vpop.f32.mrb[0].mxu0
        %v1636 = vadd.f32 %v1540, %v1635
        %v1637 = vpop.f32.mrb[0].mxu0
        %1638 = vmatprep.mubr.f32.mxu0 0.0
        %v1639 = vand.u32 %v1174, 4294901760
        %1640 = vmatmul.mubr.f32.gmra.mrb[0].mxu0 %v1639
        %v1641 = vpop.f32.mrb[0].mxu0
        %v1642 = vadd.f32 %v1548, %v1641
        %v1643 = vpop.f32.mrb[0].mxu0
        %1644 = vmatprep.mubr.f32.mxu0 0.0
        %v1645 = vand.u32 %v1177, 4294901760
        %1646 = vmatmul.mubr.f32.gmra.mrb[0].mxu0 %v1645
        %v1647 = vpop.f32.mrb[0].mxu0
        %v1648 = vadd.f32 %v1556, %v1647
        %v1649 = vpop.f32.mrb[0].mxu0
        %1650 = vdwg.mxu0
        %1651 = vmatprep.subr.mxu0 0.0
        %v1652 = vand.u32 %v1166, 4294901760
        %1653 = vmatpush1.msra.mxu0 %v1652
        %1654 = vmatprep.subr.mxu0 0.0
        %v1655 = vand.u32 %v1167, 4294901760
        %1656 = vmatpush1.msra.mxu0 %v1655
        %1657 = vmatprep.subr.mxu0 0.0
        %v1658 = vand.u32 %v1168, 4294901760
        %1659 = vmatpush1.msra.mxu0 %v1658
        %1660 = vmatprep.subr.mxu0 0.0
        %1661 = vmatpush1.msra.mxu0 0.0
        %1662 = vmatprep.subr.mxu0 0.0
        %1663 = vmatpush1.msra.mxu0 0.0
        %1664 = vmatprep.subr.mxu0 0.0
        %1665 = vmatpush1.msra.mxu0 0.0
        %1666 = vmatprep.subr.mxu0 0.0
        %1667 = vmatpush1.msra.mxu0 0.0
        %1668 = vmatprep.subr.mxu0 0.0
        %1669 = vmatpush1.msra.mxu0 0.0
        %1670 = vmatprep.subr.mxu0 0.0
        %1671 = vmatpush1.msra.mxu0 0.0
        %1672 = vmatprep.subr.mxu0 0.0
        %1673 = vmatpush1.msra.mxu0 0.0
        %1674 = vmatprep.subr.mxu0 0.0
        %1675 = vmatpush1.msra.mxu0 0.0
        %1676 = vmatprep.subr.mxu0 0.0
        %1677 = vmatpush1.msra.mxu0 0.0
        %1678 = vmatprep.subr.mxu0 0.0
        %1679 = vmatpush1.msra.mxu0 0.0
        %1680 = vmatprep.subr.mxu0 0.0
        %1681 = vmatpush1.msra.mxu0 0.0
        %1682 = vmatprep.subr.mxu0 0.0
        %1683 = vmatpush1.msra.mxu0 0.0
        %1684 = vmatprep.subr.mxu0 0.0
        %1685 = vmatpush1.msra.mxu0 0.0
        %1686 = vmatprep.subr.mxu0 0.0
        %1687 = vmatpush1.msra.mxu0 0.0
        %1688 = vmatprep.subr.mxu0 0.0
        %1689 = vmatpush1.msra.mxu0 0.0
        %1690 = vmatprep.subr.mxu0 0.0
        %1691 = vmatpush1.msra.mxu0 0.0
        %1692 = vmatprep.subr.mxu0 0.0
        %1693 = vmatpush1.msra.mxu0 0.0
        %1694 = vmatprep.subr.mxu0 0.0
        %1695 = vmatpush1.msra.mxu0 0.0
        %1696 = vmatprep.subr.mxu0 0.0
        %1697 = vmatpush1.msra.mxu0 0.0
        %1698 = vmatprep.subr.mxu0 0.0
        %1699 = vmatpush1.msra.mxu0 0.0
        %1700 = vmatprep.subr.mxu0 0.0
        %1701 = vmatpush1.msra.mxu0 0.0
        %1702 = vmatprep.subr.mxu0 0.0
        %1703 = vmatpush1.msra.mxu0 0.0
        %1704 = vmatprep.subr.mxu0 0.0
        %1705 = vmatpush1.msra.mxu0 0.0
        %1706 = vmatprep.subr.mxu0 0.0
        %1707 = vmatpush1.msra.mxu0 0.0
        %1708 = vmatprep.subr.mxu0 0.0
        %1709 = vmatpush1.msra.mxu0 0.0
        %1710 = vmatprep.subr.mxu0 0.0
        %1711 = vmatpush1.msra.mxu0 0.0
        %1712 = vmatprep.subr.mxu0 0.0
        %1713 = vmatpush1.msra.mxu0 0.0
        %1714 = vmatprep.subr.mxu0 0.0
        %1715 = vmatpush1.msra.mxu0 0.0
        %1716 = vmatprep.subr.mxu0 0.0
        %1717 = vmatpush1.msra.mxu0 0.0
        %1718 = vmatprep.mubr.f32.mxu0 0.0
        %v1719 = vand.u32 %v1171, 4294901760
        %1720 = vmatmul.mubr.f32.gmra.mrb[0].mxu0 %v1719
        %v1721 = vpop.f32.mrb[0].mxu0
        %v1722 = vadd.f32 %v1636, %v1721
        %v1723 = vpop.f32.mrb[0].mxu0
        %1724 = vmatprep.mubr.f32.mxu0 0.0
        %v1725 = vand.u32 %v1174, 4294901760
        %1726 = vmatmul.mubr.f32.gmra.mrb[0].mxu0 %v1725
        %v1727 = vpop.f32.mrb[0].mxu0
        %v1728 = vadd.f32 %v1642, %v1727
        %v1729 = vpop.f32.mrb[0].mxu0
        %1730 = vmatprep.mubr.f32.mxu0 0.0
        %v1731 = vand.u32 %v1177, 4294901760
        %1732 = vmatmul.mubr.f32.gmra.mrb[0].mxu0 %v1731
        %v1733 = vpop.f32.mrb[0].mxu0
        %v1734 = vadd.f32 %v1648, %v1733
        %v1735 = vpop.f32.mrb[0].mxu0
        %1736 = vdwg.mxu0
        %v1738 = vsel %vm1169, %v1722, 0
        %v1741 = vsel %vm1169, %v1728, 0
        %v1744 = vsel %vm1169, %v1734, 0
        %1746 = vmatprep.subr.mxu0 0.0
        %v1747 = vand.u32 %v576, 4294901760
        %1748 = vmatpush1.msra.mxu0 %v1747
        %1749 = vmatprep.subr.mxu0 0.0
        %v1750 = vand.u32 %v577, 4294901760
        %1751 = vmatpush1.msra.mxu0 %v1750
        %1752 = vmatprep.subr.mxu0 0.0
        %v1753 = vand.u32 %v578, 4294901760
        %1754 = vmatpush1.msra.mxu0 %v1753
        %1755 = vmatprep.subr.mxu0 0.0
        %1756 = vmatpush1.msra.mxu0 0.0
        %1757 = vmatprep.subr.mxu0 0.0
        %1758 = vmatpush1.msra.mxu0 0.0
        %1759 = vmatprep.subr.mxu0 0.0
        %1760 = vmatpush1.msra.mxu0 0.0
        %1761 = vmatprep.subr.mxu0 0.0
        %1762 = vmatpush1.msra.mxu0 0.0
        %1763 = vmatprep.subr.mxu0 0.0
        %1764 = vmatpush1.msra.mxu0 0.0
        %1765 = vmatprep.subr.mxu0 0.0
        %1766 = vmatpush1.msra.mxu0 0.0
        %1767 = vmatprep.subr.mxu0 0.0
        %1768 = vmatpush1.msra.mxu0 0.0
        %1769 = vmatprep.subr.mxu0 0.0
        %1770 = vmatpush1.msra.mxu0 0.0
        %1771 = vmatprep.subr.mxu0 0.0
        %1772 = vmatpush1.msra.mxu0 0.0
        %1773 = vmatprep.subr.mxu0 0.0
        %1774 = vmatpush1.msra.mxu0 0.0
        %1775 = vmatprep.subr.mxu0 0.0
        %1776 = vmatpush1.msra.mxu0 0.0
        %1777 = vmatprep.subr.mxu0 0.0
        %1778 = vmatpush1.msra.mxu0 0.0
        %1779 = vmatprep.subr.mxu0 0.0
        %1780 = vmatpush1.msra.mxu0 0.0
        %1781 = vmatprep.subr.mxu0 0.0
        %1782 = vmatpush1.msra.mxu0 0.0
        %1783 = vmatprep.subr.mxu0 0.0
        %1784 = vmatpush1.msra.mxu0 0.0
        %1785 = vmatprep.subr.mxu0 0.0
        %1786 = vmatpush1.msra.mxu0 0.0
        %1787 = vmatprep.subr.mxu0 0.0
        %1788 = vmatpush1.msra.mxu0 0.0
        %1789 = vmatprep.subr.mxu0 0.0
        %1790 = vmatpush1.msra.mxu0 0.0
        %1791 = vmatprep.subr.mxu0 0.0
        %1792 = vmatpush1.msra.mxu0 0.0
        %1793 = vmatprep.subr.mxu0 0.0
        %1794 = vmatpush1.msra.mxu0 0.0
        %1795 = vmatprep.subr.mxu0 0.0
        %1796 = vmatpush1.msra.mxu0 0.0
        %1797 = vmatprep.subr.mxu0 0.0
        %1798 = vmatpush1.msra.mxu0 0.0
        %1799 = vmatprep.subr.mxu0 0.0
        %1800 = vmatpush1.msra.mxu0 0.0
        %1801 = vmatprep.subr.mxu0 0.0
        %1802 = vmatpush1.msra.mxu0 0.0
        %1803 = vmatprep.subr.mxu0 0.0
        %1804 = vmatpush1.msra.mxu0 0.0
        %1805 = vmatprep.subr.mxu0 0.0
        %1806 = vmatpush1.msra.mxu0 0.0
        %1807 = vmatprep.subr.mxu0 0.0
        %1808 = vmatpush1.msra.mxu0 0.0
        %1809 = vmatprep.subr.mxu0 0.0
        %1810 = vmatpush1.msra.mxu0 0.0
        %1811 = vmatprep.subr.mxu0 0.0
        %1812 = vmatpush1.msra.mxu0 0.0
        %1813 = vmatprep.mubr.f32.mxu0 0.0
        %v1814 = vand.u32 %v1738, 4294901760
        %v1815 = vsub.f32 %v1738, %v1814
        %v1816 = vand.u32 %v1815, 4294901760
        %v1817 = vsub.f32 %v1815, %v1816
        %v1818 = vand.u32 %v1817, 4294901760
        %1819 = vmatmul.mubr.f32.gmra.mrb[0].mxu0 %v1818
        %v1820 = vpop.f32.mrb[0].mxu0
        %v1821 = vadd.f32 0.0, %v1820
        %v1822 = vpop.f32.mrb[0].mxu0
        %1823 = vmatprep.mubr.f32.mxu0 0.0
        %v1824 = vand.u32 %v1741, 4294901760
        %v1825 = vsub.f32 %v1741, %v1824
        %v1826 = vand.u32 %v1825, 4294901760
        %v1827 = vsub.f32 %v1825, %v1826
        %v1828 = vand.u32 %v1827, 4294901760
        %1829 = vmatmul.mubr.f32.gmra.mrb[0].mxu0 %v1828
        %v1830 = vpop.f32.mrb[0].mxu0
        %v1831 = vadd.f32 0.0, %v1830
        %v1832 = vpop.f32.mrb[0].mxu0
        %1833 = vmatprep.mubr.f32.mxu0 0.0
        %v1834 = vand.u32 %v1744, 4294901760
        %v1835 = vsub.f32 %v1744, %v1834
        %v1836 = vand.u32 %v1835, 4294901760
        %v1837 = vsub.f32 %v1835, %v1836
        %v1838 = vand.u32 %v1837, 4294901760
        %1839 = vmatmul.mubr.f32.gmra.mrb[0].mxu0 %v1838
        %v1840 = vpop.f32.mrb[0].mxu0
        %v1841 = vadd.f32 0.0, %v1840
        %v1842 = vpop.f32.mrb[0].mxu0
        %1843 = vdwg.mxu0
        %1844 = vmatprep.subr.mxu0 0.0
        %v1845 = vand.u32 %v576, 4294901760
        %v1846 = vsub.f32 %v576, %v1845
        %v1847 = vand.u32 %v1846, 4294901760
        %v1848 = vsub.f32 %v1846, %v1847
        %v1849 = vand.u32 %v1848, 4294901760
        %1850 = vmatpush1.msra.mxu0 %v1849
        %1851 = vmatprep.subr.mxu0 0.0
        %v1852 = vand.u32 %v577, 4294901760
        %v1853 = vsub.f32 %v577, %v1852
        %v1854 = vand.u32 %v1853, 4294901760
        %v1855 = vsub.f32 %v1853, %v1854
        %v1856 = vand.u32 %v1855, 4294901760
        %1857 = vmatpush1.msra.mxu0 %v1856
        %1858 = vmatprep.subr.mxu0 0.0
        %v1859 = vand.u32 %v578, 4294901760
        %v1860 = vsub.f32 %v578, %v1859
        %v1861 = vand.u32 %v1860, 4294901760
        %v1862 = vsub.f32 %v1860, %v1861
        %v1863 = vand.u32 %v1862, 4294901760
        %1864 = vmatpush1.msra.mxu0 %v1863
        %1865 = vmatprep.subr.mxu0 0.0
        %1866 = vmatpush1.msra.mxu0 0.0
        %1867 = vmatprep.subr.mxu0 0.0
        %1868 = vmatpush1.msra.mxu0 0.0
        %1869 = vmatprep.subr.mxu0 0.0
        %1870 = vmatpush1.msra.mxu0 0.0
        %1871 = vmatprep.subr.mxu0 0.0
        %1872 = vmatpush1.msra.mxu0 0.0
        %1873 = vmatprep.subr.mxu0 0.0
        %1874 = vmatpush1.msra.mxu0 0.0
        %1875 = vmatprep.subr.mxu0 0.0
        %1876 = vmatpush1.msra.mxu0 0.0
        %1877 = vmatprep.subr.mxu0 0.0
        %1878 = vmatpush1.msra.mxu0 0.0
        %1879 = vmatprep.subr.mxu0 0.0
        %1880 = vmatpush1.msra.mxu0 0.0
        %1881 = vmatprep.subr.mxu0 0.0
        %1882 = vmatpush1.msra.mxu0 0.0
        %1883 = vmatprep.subr.mxu0 0.0
        %1884 = vmatpush1.msra.mxu0 0.0
        %1885 = vmatprep.subr.mxu0 0.0
        %1886 = vmatpush1.msra.mxu0 0.0
        %1887 = vmatprep.subr.mxu0 0.0
        %1888 = vmatpush1.msra.mxu0 0.0
        %1889 = vmatprep.subr.mxu0 0.0
        %1890 = vmatpush1.msra.mxu0 0.0
        %1891 = vmatprep.subr.mxu0 0.0
        %1892 = vmatpush1.msra.mxu0 0.0
        %1893 = vmatprep.subr.mxu0 0.0
        %1894 = vmatpush1.msra.mxu0 0.0
        %1895 = vmatprep.subr.mxu0 0.0
        %1896 = vmatpush1.msra.mxu0 0.0
        %1897 = vmatprep.subr.mxu0 0.0
        %1898 = vmatpush1.msra.mxu0 0.0
        %1899 = vmatprep.subr.mxu0 0.0
        %1900 = vmatpush1.msra.mxu0 0.0
        %1901 = vmatprep.subr.mxu0 0.0
        %1902 = vmatpush1.msra.mxu0 0.0
        %1903 = vmatprep.subr.mxu0 0.0
        %1904 = vmatpush1.msra.mxu0 0.0
        %1905 = vmatprep.subr.mxu0 0.0
        %1906 = vmatpush1.msra.mxu0 0.0
        %1907 = vmatprep.subr.mxu0 0.0
        %1908 = vmatpush1.msra.mxu0 0.0
        %1909 = vmatprep.subr.mxu0 0.0
        %1910 = vmatpush1.msra.mxu0 0.0
        %1911 = vmatprep.subr.mxu0 0.0
        %1912 = vmatpush1.msra.mxu0 0.0
        %1913 = vmatprep.subr.mxu0 0.0
        %1914 = vmatpush1.msra.mxu0 0.0
        %1915 = vmatprep.subr.mxu0 0.0
        %1916 = vmatpush1.msra.mxu0 0.0
        %1917 = vmatprep.subr.mxu0 0.0
        %1918 = vmatpush1.msra.mxu0 0.0
        %1919 = vmatprep.subr.mxu0 0.0
        %1920 = vmatpush1.msra.mxu0 0.0
        %1921 = vmatprep.subr.mxu0 0.0
        %1922 = vmatpush1.msra.mxu0 0.0
        %1923 = vmatprep.mubr.f32.mxu0 0.0
        %v1924 = vand.u32 %v1738, 4294901760
        %1925 = vmatmul.mubr.f32.gmra.mrb[0].mxu0 %v1924
        %v1926 = vpop.f32.mrb[0].mxu0
        %v1927 = vadd.f32 %v1821, %v1926
        %v1928 = vpop.f32.mrb[0].mxu0
        %1929 = vmatprep.mubr.f32.mxu0 0.0
        %v1930 = vand.u32 %v1741, 4294901760
        %1931 = vmatmul.mubr.f32.gmra.mrb[0].mxu0 %v1930
        %v1932 = vpop.f32.mrb[0].mxu0
        %v1933 = vadd.f32 %v1831, %v1932
        %v1934 = vpop.f32.mrb[0].mxu0
        %1935 = vmatprep.mubr.f32.mxu0 0.0
        %v1936 = vand.u32 %v1744, 4294901760
        %1937 = vmatmul.mubr.f32.gmra.mrb[0].mxu0 %v1936
        %v1938 = vpop.f32.mrb[0].mxu0
        %v1939 = vadd.f32 %v1841, %v1938
        %v1940 = vpop.f32.mrb[0].mxu0
        %1941 = vdwg.mxu0
        %1942 = vmatprep.subr.mxu0 0.0
        %v1943 = vand.u32 %v576, 4294901760
        %v1944 = vsub.f32 %v576, %v1943
        %1945 = vmatpush1.msra.mxu0 %v1944
        %1946 = vmatprep.subr.mxu0 0.0
        %v1947 = vand.u32 %v577, 4294901760
        %v1948 = vsub.f32 %v577, %v1947
        %1949 = vmatpush1.msra.mxu0 %v1948
        %1950 = vmatprep.subr.mxu0 0.0
        %v1951 = vand.u32 %v578, 4294901760
        %v1952 = vsub.f32 %v578, %v1951
        %1953 = vmatpush1.msra.mxu0 %v1952
        %1954 = vmatprep.subr.mxu0 0.0
        %1955 = vmatpush1.msra.mxu0 0.0
        %1956 = vmatprep.subr.mxu0 0.0
        %1957 = vmatpush1.msra.mxu0 0.0
        %1958 = vmatprep.subr.mxu0 0.0
        %1959 = vmatpush1.msra.mxu0 0.0
        %1960 = vmatprep.subr.mxu0 0.0
        %1961 = vmatpush1.msra.mxu0 0.0
        %1962 = vmatprep.subr.mxu0 0.0
        %1963 = vmatpush1.msra.mxu0 0.0
        %1964 = vmatprep.subr.mxu0 0.0
        %1965 = vmatpush1.msra.mxu0 0.0
        %1966 = vmatprep.subr.mxu0 0.0
        %1967 = vmatpush1.msra.mxu0 0.0
        %1968 = vmatprep.subr.mxu0 0.0
        %1969 = vmatpush1.msra.mxu0 0.0
        %1970 = vmatprep.subr.mxu0 0.0
        %1971 = vmatpush1.msra.mxu0 0.0
        %1972 = vmatprep.subr.mxu0 0.0
        %1973 = vmatpush1.msra.mxu0 0.0
        %1974 = vmatprep.subr.mxu0 0.0
        %1975 = vmatpush1.msra.mxu0 0.0
        %1976 = vmatprep.subr.mxu0 0.0
        %1977 = vmatpush1.msra.mxu0 0.0
        %1978 = vmatprep.subr.mxu0 0.0
        %1979 = vmatpush1.msra.mxu0 0.0
        %1980 = vmatprep.subr.mxu0 0.0
        %1981 = vmatpush1.msra.mxu0 0.0
        %1982 = vmatprep.subr.mxu0 0.0
        %1983 = vmatpush1.msra.mxu0 0.0
        %1984 = vmatprep.subr.mxu0 0.0
        %1985 = vmatpush1.msra.mxu0 0.0
        %1986 = vmatprep.subr.mxu0 0.0
        %1987 = vmatpush1.msra.mxu0 0.0
        %1988 = vmatprep.subr.mxu0 0.0
        %1989 = vmatpush1.msra.mxu0 0.0
        %1990 = vmatprep.subr.mxu0 0.0
        %1991 = vmatpush1.msra.mxu0 0.0
        %1992 = vmatprep.subr.mxu0 0.0
        %1993 = vmatpush1.msra.mxu0 0.0
        %1994 = vmatprep.subr.mxu0 0.0
        %1995 = vmatpush1.msra.mxu0 0.0
        %1996 = vmatprep.subr.mxu0 0.0
        %1997 = vmatpush1.msra.mxu0 0.0
        %1998 = vmatprep.subr.mxu0 0.0
        %1999 = vmatpush1.msra.mxu0 0.0
        %2000 = vmatprep.subr.mxu0 0.0
        %2001 = vmatpush1.msra.mxu0 0.0
        %2002 = vmatprep.subr.mxu0 0.0
        %2003 = vmatpush1.msra.mxu0 0.0
        %2004 = vmatprep.subr.mxu0 0.0
        %2005 = vmatpush1.msra.mxu0 0.0
        %2006 = vmatprep.subr.mxu0 0.0
        %2007 = vmatpush1.msra.mxu0 0.0
        %2008 = vmatprep.subr.mxu0 0.0
        %2009 = vmatpush1.msra.mxu0 0.0
        %2010 = vmatprep.subr.mxu0 0.0
        %2011 = vmatpush1.msra.mxu0 0.0
        %2012 = vmatprep.mubr.f32.mxu0 0.0
        %v2013 = vand.u32 %v1738, 4294901760
        %v2014 = vsub.f32 %v1738, %v2013
        %2015 = vmatmul.mubr.f32.gmra.mrb[0].mxu0 %v2014
        %v2016 = vpop.f32.mrb[0].mxu0
        %v2017 = vadd.f32 %v1927, %v2016
        %v2018 = vpop.f32.mrb[0].mxu0
        %2019 = vmatprep.mubr.f32.mxu0 0.0
        %v2020 = vand.u32 %v1741, 4294901760
        %v2021 = vsub.f32 %v1741, %v2020
        %2022 = vmatmul.mubr.f32.gmra.mrb[0].mxu0 %v2021
        %v2023 = vpop.f32.mrb[0].mxu0
        %v2024 = vadd.f32 %v1933, %v2023
        %v2025 = vpop.f32.mrb[0].mxu0
        %2026 = vmatprep.mubr.f32.mxu0 0.0
        %v2027 = vand.u32 %v1744, 4294901760
        %v2028 = vsub.f32 %v1744, %v2027
        %2029 = vmatmul.mubr.f32.gmra.mrb[0].mxu0 %v2028
        %v2030 = vpop.f32.mrb[0].mxu0
        %v2031 = vadd.f32 %v1939, %v2030
        %v2032 = vpop.f32.mrb[0].mxu0
        %2033 = vdwg.mxu0
        %2034 = vmatprep.subr.mxu0 0.0
        %v2035 = vand.u32 %v576, 4294901760
        %2036 = vmatpush1.msra.mxu0 %v2035
        %2037 = vmatprep.subr.mxu0 0.0
        %v2038 = vand.u32 %v577, 4294901760
        %2039 = vmatpush1.msra.mxu0 %v2038
        %2040 = vmatprep.subr.mxu0 0.0
        %v2041 = vand.u32 %v578, 4294901760
        %2042 = vmatpush1.msra.mxu0 %v2041
        %2043 = vmatprep.subr.mxu0 0.0
        %2044 = vmatpush1.msra.mxu0 0.0
        %2045 = vmatprep.subr.mxu0 0.0
        %2046 = vmatpush1.msra.mxu0 0.0
        %2047 = vmatprep.subr.mxu0 0.0
        %2048 = vmatpush1.msra.mxu0 0.0
        %2049 = vmatprep.subr.mxu0 0.0
        %2050 = vmatpush1.msra.mxu0 0.0
        %2051 = vmatprep.subr.mxu0 0.0
        %2052 = vmatpush1.msra.mxu0 0.0
        %2053 = vmatprep.subr.mxu0 0.0
        %2054 = vmatpush1.msra.mxu0 0.0
        %2055 = vmatprep.subr.mxu0 0.0
        %2056 = vmatpush1.msra.mxu0 0.0
        %2057 = vmatprep.subr.mxu0 0.0
        %2058 = vmatpush1.msra.mxu0 0.0
        %2059 = vmatprep.subr.mxu0 0.0
        %2060 = vmatpush1.msra.mxu0 0.0
        %2061 = vmatprep.subr.mxu0 0.0
        %2062 = vmatpush1.msra.mxu0 0.0
        %2063 = vmatprep.subr.mxu0 0.0
        %2064 = vmatpush1.msra.mxu0 0.0
        %2065 = vmatprep.subr.mxu0 0.0
        %2066 = vmatpush1.msra.mxu0 0.0
        %2067 = vmatprep.subr.mxu0 0.0
        %2068 = vmatpush1.msra.mxu0 0.0
        %2069 = vmatprep.subr.mxu0 0.0
        %2070 = vmatpush1.msra.mxu0 0.0
        %2071 = vmatprep.subr.mxu0 0.0
        %2072 = vmatpush1.msra.mxu0 0.0
        %2073 = vmatprep.subr.mxu0 0.0
        %2074 = vmatpush1.msra.mxu0 0.0
        %2075 = vmatprep.subr.mxu0 0.0
        %2076 = vmatpush1.msra.mxu0 0.0
        %2077 = vmatprep.subr.mxu0 0.0
        %2078 = vmatpush1.msra.mxu0 0.0
        %2079 = vmatprep.subr.mxu0 0.0
        %2080 = vmatpush1.msra.mxu0 0.0
        %2081 = vmatprep.subr.mxu0 0.0
        %2082 = vmatpush1.msra.mxu0 0.0
        %2083 = vmatprep.subr.mxu0 0.0
        %2084 = vmatpush1.msra.mxu0 0.0
        %2085 = vmatprep.subr.mxu0 0.0
        %2086 = vmatpush1.msra.mxu0 0.0
        %2087 = vmatprep.subr.mxu0 0.0
        %2088 = vmatpush1.msra.mxu0 0.0
        %2089 = vmatprep.subr.mxu0 0.0
        %2090 = vmatpush1.msra.mxu0 0.0
        %2091 = vmatprep.subr.mxu0 0.0
        %2092 = vmatpush1.msra.mxu0 0.0
        %2093 = vmatprep.subr.mxu0 0.0
        %2094 = vmatpush1.msra.mxu0 0.0
        %2095 = vmatprep.subr.mxu0 0.0
        %2096 = vmatpush1.msra.mxu0 0.0
        %2097 = vmatprep.subr.mxu0 0.0
        %2098 = vmatpush1.msra.mxu0 0.0
        %2099 = vmatprep.subr.mxu0 0.0
        %2100 = vmatpush1.msra.mxu0 0.0
        %2101 = vmatprep.mubr.f32.mxu0 0.0
        %v2102 = vand.u32 %v1738, 4294901760
        %v2103 = vsub.f32 %v1738, %v2102
        %v2104 = vand.u32 %v2103, 4294901760
        %2105 = vmatmul.mubr.f32.gmra.mrb[0].mxu0 %v2104
        %v2106 = vpop.f32.mrb[0].mxu0
        %v2107 = vadd.f32 %v2017, %v2106
        %v2108 = vpop.f32.mrb[0].mxu0
        %2109 = vmatprep.mubr.f32.mxu0 0.0
        %v2110 = vand.u32 %v1741, 4294901760
        %v2111 = vsub.f32 %v1741, %v2110
        %v2112 = vand.u32 %v2111, 4294901760
        %2113 = vmatmul.mubr.f32.gmra.mrb[0].mxu0 %v2112
        %v2114 = vpop.f32.mrb[0].mxu0
        %v2115 = vadd.f32 %v2024, %v2114
        %v2116 = vpop.f32.mrb[0].mxu0
        %2117 = vmatprep.mubr.f32.mxu0 0.0
        %v2118 = vand.u32 %v1744, 4294901760
        %v2119 = vsub.f32 %v1744, %v2118
        %v2120 = vand.u32 %v2119, 4294901760
        %2121 = vmatmul.mubr.f32.gmra.mrb[0].mxu0 %v2120
        %v2122 = vpop.f32.mrb[0].mxu0
        %v2123 = vadd.f32 %v2031, %v2122
        %v2124 = vpop.f32.mrb[0].mxu0
        %2125 = vdwg.mxu0
        %2126 = vmatprep.subr.mxu0 0.0
        %v2127 = vand.u32 %v576, 4294901760
        %v2128 = vsub.f32 %v576, %v2127
        %v2129 = vand.u32 %v2128, 4294901760
        %2130 = vmatpush1.msra.mxu0 %v2129
        %2131 = vmatprep.subr.mxu0 0.0
        %v2132 = vand.u32 %v577, 4294901760
        %v2133 = vsub.f32 %v577, %v2132
        %v2134 = vand.u32 %v2133, 4294901760
        %2135 = vmatpush1.msra.mxu0 %v2134
        %2136 = vmatprep.subr.mxu0 0.0
        %v2137 = vand.u32 %v578, 4294901760
        %v2138 = vsub.f32 %v578, %v2137
        %v2139 = vand.u32 %v2138, 4294901760
        %2140 = vmatpush1.msra.mxu0 %v2139
        %2141 = vmatprep.subr.mxu0 0.0
        %2142 = vmatpush1.msra.mxu0 0.0
        %2143 = vmatprep.subr.mxu0 0.0
        %2144 = vmatpush1.msra.mxu0 0.0
        %2145 = vmatprep.subr.mxu0 0.0
        %2146 = vmatpush1.msra.mxu0 0.0
        %2147 = vmatprep.subr.mxu0 0.0
        %2148 = vmatpush1.msra.mxu0 0.0
        %2149 = vmatprep.subr.mxu0 0.0
        %2150 = vmatpush1.msra.mxu0 0.0
        %2151 = vmatprep.subr.mxu0 0.0
        %2152 = vmatpush1.msra.mxu0 0.0
        %2153 = vmatprep.subr.mxu0 0.0
        %2154 = vmatpush1.msra.mxu0 0.0
        %2155 = vmatprep.subr.mxu0 0.0
        %2156 = vmatpush1.msra.mxu0 0.0
        %2157 = vmatprep.subr.mxu0 0.0
        %2158 = vmatpush1.msra.mxu0 0.0
        %2159 = vmatprep.subr.mxu0 0.0
        %2160 = vmatpush1.msra.mxu0 0.0
        %2161 = vmatprep.subr.mxu0 0.0
        %2162 = vmatpush1.msra.mxu0 0.0
        %2163 = vmatprep.subr.mxu0 0.0
        %2164 = vmatpush1.msra.mxu0 0.0
        %2165 = vmatprep.subr.mxu0 0.0
        %2166 = vmatpush1.msra.mxu0 0.0
        %2167 = vmatprep.subr.mxu0 0.0
        %2168 = vmatpush1.msra.mxu0 0.0
        %2169 = vmatprep.subr.mxu0 0.0
        %2170 = vmatpush1.msra.mxu0 0.0
        %2171 = vmatprep.subr.mxu0 0.0
        %2172 = vmatpush1.msra.mxu0 0.0
        %2173 = vmatprep.subr.mxu0 0.0
        %2174 = vmatpush1.msra.mxu0 0.0
        %2175 = vmatprep.subr.mxu0 0.0
        %2176 = vmatpush1.msra.mxu0 0.0
        %2177 = vmatprep.subr.mxu0 0.0
        %2178 = vmatpush1.msra.mxu0 0.0
        %2179 = vmatprep.subr.mxu0 0.0
        %2180 = vmatpush1.msra.mxu0 0.0
        %2181 = vmatprep.subr.mxu0 0.0
        %2182 = vmatpush1.msra.mxu0 0.0
        %2183 = vmatprep.subr.mxu0 0.0
        %2184 = vmatpush1.msra.mxu0 0.0
        %2185 = vmatprep.subr.mxu0 0.0
        %2186 = vmatpush1.msra.mxu0 0.0
        %2187 = vmatprep.subr.mxu0 0.0
        %2188 = vmatpush1.msra.mxu0 0.0
        %2189 = vmatprep.subr.mxu0 0.0
        %2190 = vmatpush1.msra.mxu0 0.0
        %2191 = vmatprep.subr.mxu0 0.0
        %2192 = vmatpush1.msra.mxu0 0.0
        %2193 = vmatprep.subr.mxu0 0.0
        %2194 = vmatpush1.msra.mxu0 0.0
        %2195 = vmatprep.subr.mxu0 0.0
        %2196 = vmatpush1.msra.mxu0 0.0
        %2197 = vmatprep.subr.mxu0 0.0
        %2198 = vmatpush1.msra.mxu0 0.0
        %2199 = vmatprep.mubr.f32.mxu0 0.0
        %v2200 = vand.u32 %v1738, 4294901760
        %2201 = vmatmul.mubr.f32.gmra.mrb[0].mxu0 %v2200
        %v2202 = vpop.f32.mrb[0].mxu0
        %v2203 = vadd.f32 %v2107, %v2202
        %v2204 = vpop.f32.mrb[0].mxu0
        %2205 = vmatprep.mubr.f32.mxu0 0.0
        %v2206 = vand.u32 %v1741, 4294901760
        %2207 = vmatmul.mubr.f32.gmra.mrb[0].mxu0 %v2206
        %v2208 = vpop.f32.mrb[0].mxu0
        %v2209 = vadd.f32 %v2115, %v2208
        %v2210 = vpop.f32.mrb[0].mxu0
        %2211 = vmatprep.mubr.f32.mxu0 0.0
        %v2212 = vand.u32 %v1744, 4294901760
        %2213 = vmatmul.mubr.f32.gmra.mrb[0].mxu0 %v2212
        %v2214 = vpop.f32.mrb[0].mxu0
        %v2215 = vadd.f32 %v2123, %v2214
        %v2216 = vpop.f32.mrb[0].mxu0
        %2217 = vdwg.mxu0
        %2218 = vmatprep.subr.mxu0 0.0
        %v2219 = vand.u32 %v576, 4294901760
        %2220 = vmatpush1.msra.mxu0 %v2219
        %2221 = vmatprep.subr.mxu0 0.0
        %v2222 = vand.u32 %v577, 4294901760
        %2223 = vmatpush1.msra.mxu0 %v2222
        %2224 = vmatprep.subr.mxu0 0.0
        %v2225 = vand.u32 %v578, 4294901760
        %2226 = vmatpush1.msra.mxu0 %v2225
        %2227 = vmatprep.subr.mxu0 0.0
        %2228 = vmatpush1.msra.mxu0 0.0
        %2229 = vmatprep.subr.mxu0 0.0
        %2230 = vmatpush1.msra.mxu0 0.0
        %2231 = vmatprep.subr.mxu0 0.0
        %2232 = vmatpush1.msra.mxu0 0.0
        %2233 = vmatprep.subr.mxu0 0.0
        %2234 = vmatpush1.msra.mxu0 0.0
        %2235 = vmatprep.subr.mxu0 0.0
        %2236 = vmatpush1.msra.mxu0 0.0
        %2237 = vmatprep.subr.mxu0 0.0
        %2238 = vmatpush1.msra.mxu0 0.0
        %2239 = vmatprep.subr.mxu0 0.0
        %2240 = vmatpush1.msra.mxu0 0.0
        %2241 = vmatprep.subr.mxu0 0.0
        %2242 = vmatpush1.msra.mxu0 0.0
        %2243 = vmatprep.subr.mxu0 0.0
        %2244 = vmatpush1.msra.mxu0 0.0
        %2245 = vmatprep.subr.mxu0 0.0
        %2246 = vmatpush1.msra.mxu0 0.0
        %2247 = vmatprep.subr.mxu0 0.0
        %2248 = vmatpush1.msra.mxu0 0.0
        %2249 = vmatprep.subr.mxu0 0.0
        %2250 = vmatpush1.msra.mxu0 0.0
        %2251 = vmatprep.subr.mxu0 0.0
        %2252 = vmatpush1.msra.mxu0 0.0
        %2253 = vmatprep.subr.mxu0 0.0
        %2254 = vmatpush1.msra.mxu0 0.0
        %2255 = vmatprep.subr.mxu0 0.0
        %2256 = vmatpush1.msra.mxu0 0.0
        %2257 = vmatprep.subr.mxu0 0.0
        %2258 = vmatpush1.msra.mxu0 0.0
        %2259 = vmatprep.subr.mxu0 0.0
        %2260 = vmatpush1.msra.mxu0 0.0
        %2261 = vmatprep.subr.mxu0 0.0
        %2262 = vmatpush1.msra.mxu0 0.0
        %2263 = vmatprep.subr.mxu0 0.0
        %2264 = vmatpush1.msra.mxu0 0.0
        %2265 = vmatprep.subr.mxu0 0.0
        %2266 = vmatpush1.msra.mxu0 0.0
        %2267 = vmatprep.subr.mxu0 0.0
        %2268 = vmatpush1.msra.mxu0 0.0
        %2269 = vmatprep.subr.mxu0 0.0
        %2270 = vmatpush1.msra.mxu0 0.0
        %2271 = vmatprep.subr.mxu0 0.0
        %2272 = vmatpush1.msra.mxu0 0.0
        %2273 = vmatprep.subr.mxu0 0.0
        %2274 = vmatpush1.msra.mxu0 0.0
        %2275 = vmatprep.subr.mxu0 0.0
        %2276 = vmatpush1.msra.mxu0 0.0
        %2277 = vmatprep.subr.mxu0 0.0
        %2278 = vmatpush1.msra.mxu0 0.0
        %2279 = vmatprep.subr.mxu0 0.0
        %2280 = vmatpush1.msra.mxu0 0.0
        %2281 = vmatprep.subr.mxu0 0.0
        %2282 = vmatpush1.msra.mxu0 0.0
        %2283 = vmatprep.subr.mxu0 0.0
        %2284 = vmatpush1.msra.mxu0 0.0
        %2285 = vmatprep.mubr.f32.mxu0 0.0
        %v2286 = vand.u32 %v1738, 4294901760
        %2287 = vmatmul.mubr.f32.gmra.mrb[0].mxu0 %v2286
        %v2288 = vpop.f32.mrb[0].mxu0
        %v2289 = vadd.f32 %v2203, %v2288
        %v2290 = vpop.f32.mrb[0].mxu0
        %2291 = vmatprep.mubr.f32.mxu0 0.0
        %v2292 = vand.u32 %v1741, 4294901760
        %2293 = vmatmul.mubr.f32.gmra.mrb[0].mxu0 %v2292
        %v2294 = vpop.f32.mrb[0].mxu0
        %v2295 = vadd.f32 %v2209, %v2294
        %v2296 = vpop.f32.mrb[0].mxu0
        %2297 = vmatprep.mubr.f32.mxu0 0.0
        %v2298 = vand.u32 %v1744, 4294901760
        %2299 = vmatmul.mubr.f32.gmra.mrb[0].mxu0 %v2298
        %v2300 = vpop.f32.mrb[0].mxu0
        %v2301 = vadd.f32 %v2215, %v2300
        %v2302 = vpop.f32.mrb[0].mxu0
        %2303 = vdwg.mxu0
        %v2304 = vadd.f32 %v1151, %v2289
        %v2305 = vadd.f32 %v1157, %v2295
        %v2306 = vadd.f32 %v1163, %v2301
        %v2307 = vstv %s579
        %v2308 = vadd.f32 %v2304, %v2307
        %v2309 = vadd.f32 %v2305, %v2307
        %v2310 = vadd.f32 %v2306, %v2307
        %v2311 = vld [vmem:[%s501] sm:$0xff]
        %v2312 = vld [vmem:[%s501 + $0x8] sm:$0xff]
        %v2313 = vld [vmem:[%s501 + $0x10] sm:$0xff]
        %v2314 = vmul.f32 %v2308, %v2311
        %v2315 = vmul.f32 %v2309, %v2312
        %v2316 = vmul.f32 %v2310, %v2313
        %v2317 = vmul.f32 %v2314, 0.17677669
        %v2318 = vmul.f32 %v2315, 0.17677669
        %v2319 = vmul.f32 %v2316, 0.17677669
        %v2320 = vld [vmem:[%s567] sm:$0x3]
        %v2321 = vld [vmem:[%s567 + $0x2] sm:$0x3]
        %v2322 = vld [vmem:[%s567 + $0x4] sm:$0x3]
        %vm2323 = vnez %v2320
        %vm2324 = vnez %v2321
        %vm2325 = vnez %v2322
        %v2326 = vsel %vm2323, 16843009, 0
        %v2327 = vsel %vm2324, 16843009, 0
        %v2328 = vsel %vm2325, 16843009, 0
        %v2329 = vunpack.c.0.s8 %v2326
        %v2330 = vunpack.c.0.s8 %v2327
        %v2331 = vunpack.c.0.s8 %v2328
        %vm2332 = vcmp.ne.s32.totalorder %v2329, 0
        %vm2333 = vcmp.ne.s32.totalorder %v2330, 0
        %vm2334 = vcmp.ne.s32.totalorder %v2331, 0
        %v2335 = vsel %vm2332, -1e+30, %v2317
        %v2336 = vsel %vm2333, -1e+30, %v2318
        %v2337 = vsel %vm2334, -1e+30, %v2319
        %v2338 = vsel %vm1169, %v2335, -inf
        %2339 = vmax.xlane.f32.xlu0 %v2338
        %v2340 = vpop.xlane.xlu0 %2339
        %v2341 = vsel %vm1169, %v2336, -inf
        %2342 = vmax.xlane.f32.xlu0 %v2341
        %v2343 = vpop.xlane.xlu0 %2342
        %v2344 = vsel %vm1169, %v2337, -inf
        %2345 = vmax.xlane.f32.xlu0 %v2344
        %v2346 = vpop.xlane.xlu0 %2345
        %v2347 = vsub.f32 %v2335, %v2340
        %v2348 = vsub.f32 %v2336, %v2343
        %v2349 = vsub.f32 %v2337, %v2346
        %v2350 = vmul.f32 %v2347, 1.442695
        %v2351 = vpow.pop %v2350
        %v2352 = vmul.f32 %v2348, 1.442695
        %v2353 = vpow.pop %v2352
        %v2354 = vmul.f32 %v2349, 1.442695
        %v2355 = vpow.pop %v2354
        %v2356 = vsel %vm1169, %v2351, 0.0
        %2357 = vadd.xlane.f32.xlu0 %v2356
        %v2358 = vpop.xlane.xlu0 %2357
        %v2359 = vsel %vm1169, %v2353, 0.0
        %2360 = vadd.xlane.f32.xlu0 %v2359
        %v2361 = vpop.xlane.xlu0 %2360
        %v2362 = vsel %vm1169, %v2355, 0.0
        %2363 = vadd.xlane.f32.xlu0 %v2362
        %v2364 = vpop.xlane.xlu0 %2363
        %v2365 = vrcp.pop %v2358
        %v2366 = vmul.f32 1.0, %v2365
        %v2367 = vrcp.pop %v2361
        %v2368 = vmul.f32 1.0, %v2367
        %v2369 = vrcp.pop %v2364
        %v2370 = vmul.f32 1.0, %v2369
        %v2371 = vmul.f32 %v2351, %v2366
        %v2372 = vmul.f32 %v2353, %v2368
        %v2373 = vmul.f32 %v2355, %v2370
        %2374 = vst.msk [vmem:[%s562] sm:$0xff] %vm1169, %v2371
        %2375 = vst.msk [vmem:[%s562 + $0x8] sm:$0xff] %vm1169, %v2372
        %2376 = vst.msk [vmem:[%s562 + $0x10] sm:$0xff] %vm1169, %v2373
        %v2378 = vsel %vm1169, %v2371, 0
        %v2381 = vsel %vm1169, %v2372, 0
        %v2384 = vsel %vm1169, %v2373, 0
        %2386 = vmatprep.subr.mxu0 0.0
        %v2387 = vand.u32 %v586, 4294901760
        %2388 = vmatpush1.msra.mxu0 %v2387
        %2389 = vmatprep.subr.mxu0 0.0
        %v2390 = vand.u32 %v587, 4294901760
        %2391 = vmatpush1.msra.mxu0 %v2390
        %2392 = vmatprep.subr.mxu0 0.0
        %v2393 = vand.u32 %v588, 4294901760
        %2394 = vmatpush1.msra.mxu0 %v2393
        %2395 = vmatprep.subr.mxu0 0.0
        %2396 = vmatpush1.msra.mxu0 0.0
        %2397 = vmatprep.subr.mxu0 0.0
        %2398 = vmatpush1.msra.mxu0 0.0
        %2399 = vmatprep.subr.mxu0 0.0
        %2400 = vmatpush1.msra.mxu0 0.0
        %2401 = vmatprep.subr.mxu0 0.0
        %2402 = vmatpush1.msra.mxu0 0.0
        %2403 = vmatprep.subr.mxu0 0.0
        %2404 = vmatpush1.msra.mxu0 0.0
        %2405 = vmatprep.subr.mxu0 0.0
        %2406 = vmatpush1.msra.mxu0 0.0
        %2407 = vmatprep.subr.mxu0 0.0
        %2408 = vmatpush1.msra.mxu0 0.0
        %2409 = vmatprep.subr.mxu0 0.0
        %2410 = vmatpush1.msra.mxu0 0.0
        %2411 = vmatprep.subr.mxu0 0.0
        %2412 = vmatpush1.msra.mxu0 0.0
        %2413 = vmatprep.subr.mxu0 0.0
        %2414 = vmatpush1.msra.mxu0 0.0
        %2415 = vmatprep.subr.mxu0 0.0
        %2416 = vmatpush1.msra.mxu0 0.0
        %2417 = vmatprep.subr.mxu0 0.0
        %2418 = vmatpush1.msra.mxu0 0.0
        %2419 = vmatprep.subr.mxu0 0.0
        %2420 = vmatpush1.msra.mxu0 0.0
        %2421 = vmatprep.subr.mxu0 0.0
        %2422 = vmatpush1.msra.mxu0 0.0
        %2423 = vmatprep.subr.mxu0 0.0
        %2424 = vmatpush1.msra.mxu0 0.0
        %2425 = vmatprep.subr.mxu0 0.0
        %2426 = vmatpush1.msra.mxu0 0.0
        %2427 = vmatprep.subr.mxu0 0.0
        %2428 = vmatpush1.msra.mxu0 0.0
        %2429 = vmatprep.subr.mxu0 0.0
        %2430 = vmatpush1.msra.mxu0 0.0
        %2431 = vmatprep.subr.mxu0 0.0
        %2432 = vmatpush1.msra.mxu0 0.0
        %2433 = vmatprep.subr.mxu0 0.0
        %2434 = vmatpush1.msra.mxu0 0.0
        %2435 = vmatprep.subr.mxu0 0.0
        %2436 = vmatpush1.msra.mxu0 0.0
        %2437 = vmatprep.subr.mxu0 0.0
        %2438 = vmatpush1.msra.mxu0 0.0
        %2439 = vmatprep.subr.mxu0 0.0
        %2440 = vmatpush1.msra.mxu0 0.0
        %2441 = vmatprep.subr.mxu0 0.0
        %2442 = vmatpush1.msra.mxu0 0.0
        %2443 = vmatprep.subr.mxu0 0.0
        %2444 = vmatpush1.msra.mxu0 0.0
        %2445 = vmatprep.subr.mxu0 0.0
        %2446 = vmatpush1.msra.mxu0 0.0
        %2447 = vmatprep.subr.mxu0 0.0
        %2448 = vmatpush1.msra.mxu0 0.0
        %2449 = vmatprep.subr.mxu0 0.0
        %2450 = vmatpush1.msra.mxu0 0.0
        %2451 = vmatprep.subr.mxu0 0.0
        %2452 = vmatpush1.msra.mxu0 0.0
        %2453 = vmatprep.mubr.f32.mxu0 0.0
        %v2454 = vand.u32 %v2378, 4294901760
        %v2455 = vsub.f32 %v2378, %v2454
        %v2456 = vand.u32 %v2455, 4294901760
        %v2457 = vsub.f32 %v2455, %v2456
        %v2458 = vand.u32 %v2457, 4294901760
        %2459 = vmatmul.mubr.f32.gmra.mrb[0].mxu0 %v2458
        %v2460 = vpop.f32.mrb[0].mxu0
        %v2461 = vadd.f32 0.0, %v2460
        %v2462 = vpop.f32.mrb[0].mxu0
        %2463 = vmatprep.mubr.f32.mxu0 0.0
        %v2464 = vand.u32 %v2381, 4294901760
        %v2465 = vsub.f32 %v2381, %v2464
        %v2466 = vand.u32 %v2465, 4294901760
        %v2467 = vsub.f32 %v2465, %v2466
        %v2468 = vand.u32 %v2467, 4294901760
        %2469 = vmatmul.mubr.f32.gmra.mrb[0].mxu0 %v2468
        %v2470 = vpop.f32.mrb[0].mxu0
        %v2471 = vadd.f32 0.0, %v2470
        %v2472 = vpop.f32.mrb[0].mxu0
        %2473 = vmatprep.mubr.f32.mxu0 0.0
        %v2474 = vand.u32 %v2384, 4294901760
        %v2475 = vsub.f32 %v2384, %v2474
        %v2476 = vand.u32 %v2475, 4294901760
        %v2477 = vsub.f32 %v2475, %v2476
        %v2478 = vand.u32 %v2477, 4294901760
        %2479 = vmatmul.mubr.f32.gmra.mrb[0].mxu0 %v2478
        %v2480 = vpop.f32.mrb[0].mxu0
        %v2481 = vadd.f32 0.0, %v2480
        %v2482 = vpop.f32.mrb[0].mxu0
        %2483 = vdwg.mxu0
        %2484 = vmatprep.subr.mxu0 0.0
        %v2485 = vand.u32 %v586, 4294901760
        %v2486 = vsub.f32 %v586, %v2485
        %v2487 = vand.u32 %v2486, 4294901760
        %v2488 = vsub.f32 %v2486, %v2487
        %v2489 = vand.u32 %v2488, 4294901760
        %2490 = vmatpush1.msra.mxu0 %v2489
        %2491 = vmatprep.subr.mxu0 0.0
        %v2492 = vand.u32 %v587, 4294901760
        %v2493 = vsub.f32 %v587, %v2492
        %v2494 = vand.u32 %v2493, 4294901760
        %v2495 = vsub.f32 %v2493, %v2494
        %v2496 = vand.u32 %v2495, 4294901760
        %2497 = vmatpush1.msra.mxu0 %v2496
        %2498 = vmatprep.subr.mxu0 0.0
        %v2499 = vand.u32 %v588, 4294901760
        %v2500 = vsub.f32 %v588, %v2499
        %v2501 = vand.u32 %v2500, 4294901760
        %v2502 = vsub.f32 %v2500, %v2501
        %v2503 = vand.u32 %v2502, 4294901760
        %2504 = vmatpush1.msra.mxu0 %v2503
        %2505 = vmatprep.subr.mxu0 0.0
        %2506 = vmatpush1.msra.mxu0 0.0
        %2507 = vmatprep.subr.mxu0 0.0
        %2508 = vmatpush1.msra.mxu0 0.0
        %2509 = vmatprep.subr.mxu0 0.0
        %2510 = vmatpush1.msra.mxu0 0.0
        %2511 = vmatprep.subr.mxu0 0.0
        %2512 = vmatpush1.msra.mxu0 0.0
        %2513 = vmatprep.subr.mxu0 0.0
        %2514 = vmatpush1.msra.mxu0 0.0
        %2515 = vmatprep.subr.mxu0 0.0
        %2516 = vmatpush1.msra.mxu0 0.0
        %2517 = vmatprep.subr.mxu0 0.0
        %2518 = vmatpush1.msra.mxu0 0.0
        %2519 = vmatprep.subr.mxu0 0.0
        %2520 = vmatpush1.msra.mxu0 0.0
        %2521 = vmatprep.subr.mxu0 0.0
        %2522 = vmatpush1.msra.mxu0 0.0
        %2523 = vmatprep.subr.mxu0 0.0
        %2524 = vmatpush1.msra.mxu0 0.0
        %2525 = vmatprep.subr.mxu0 0.0
        %2526 = vmatpush1.msra.mxu0 0.0
        %2527 = vmatprep.subr.mxu0 0.0
        %2528 = vmatpush1.msra.mxu0 0.0
        %2529 = vmatprep.subr.mxu0 0.0
        %2530 = vmatpush1.msra.mxu0 0.0
        %2531 = vmatprep.subr.mxu0 0.0
        %2532 = vmatpush1.msra.mxu0 0.0
        %2533 = vmatprep.subr.mxu0 0.0
        %2534 = vmatpush1.msra.mxu0 0.0
        %2535 = vmatprep.subr.mxu0 0.0
        %2536 = vmatpush1.msra.mxu0 0.0
        %2537 = vmatprep.subr.mxu0 0.0
        %2538 = vmatpush1.msra.mxu0 0.0
        %2539 = vmatprep.subr.mxu0 0.0
        %2540 = vmatpush1.msra.mxu0 0.0
        %2541 = vmatprep.subr.mxu0 0.0
        %2542 = vmatpush1.msra.mxu0 0.0
        %2543 = vmatprep.subr.mxu0 0.0
        %2544 = vmatpush1.msra.mxu0 0.0
        %2545 = vmatprep.subr.mxu0 0.0
        %2546 = vmatpush1.msra.mxu0 0.0
        %2547 = vmatprep.subr.mxu0 0.0
        %2548 = vmatpush1.msra.mxu0 0.0
        %2549 = vmatprep.subr.mxu0 0.0
        %2550 = vmatpush1.msra.mxu0 0.0
        %2551 = vmatprep.subr.mxu0 0.0
        %2552 = vmatpush1.msra.mxu0 0.0
        %2553 = vmatprep.subr.mxu0 0.0
        %2554 = vmatpush1.msra.mxu0 0.0
        %2555 = vmatprep.subr.mxu0 0.0
        %2556 = vmatpush1.msra.mxu0 0.0
        %2557 = vmatprep.subr.mxu0 0.0
        %2558 = vmatpush1.msra.mxu0 0.0
        %2559 = vmatprep.subr.mxu0 0.0
        %2560 = vmatpush1.msra.mxu0 0.0
        %2561 = vmatprep.subr.mxu0 0.0
        %2562 = vmatpush1.msra.mxu0 0.0
        %2563 = vmatprep.mubr.f32.mxu0 0.0
        %v2564 = vand.u32 %v2378, 4294901760
        %2565 = vmatmul.mubr.f32.gmra.mrb[0].mxu0 %v2564
        %v2566 = vpop.f32.mrb[0].mxu0
        %v2567 = vadd.f32 %v2461, %v2566
        %v2568 = vpop.f32.mrb[0].mxu0
        %2569 = vmatprep.mubr.f32.mxu0 0.0
        %v2570 = vand.u32 %v2381, 4294901760
        %2571 = vmatmul.mubr.f32.gmra.mrb[0].mxu0 %v2570
        %v2572 = vpop.f32.mrb[0].mxu0
        %v2573 = vadd.f32 %v2471, %v2572
        %v2574 = vpop.f32.mrb[0].mxu0
        %2575 = vmatprep.mubr.f32.mxu0 0.0
        %v2576 = vand.u32 %v2384, 4294901760
        %2577 = vmatmul.mubr.f32.gmra.mrb[0].mxu0 %v2576
        %v2578 = vpop.f32.mrb[0].mxu0
        %v2579 = vadd.f32 %v2481, %v2578
        %v2580 = vpop.f32.mrb[0].mxu0
        %2581 = vdwg.mxu0
        %2582 = vmatprep.subr.mxu0 0.0
        %v2583 = vand.u32 %v586, 4294901760
        %v2584 = vsub.f32 %v586, %v2583
        %2585 = vmatpush1.msra.mxu0 %v2584
        %2586 = vmatprep.subr.mxu0 0.0
        %v2587 = vand.u32 %v587, 4294901760
        %v2588 = vsub.f32 %v587, %v2587
        %2589 = vmatpush1.msra.mxu0 %v2588
        %2590 = vmatprep.subr.mxu0 0.0
        %v2591 = vand.u32 %v588, 4294901760
        %v2592 = vsub.f32 %v588, %v2591
        %2593 = vmatpush1.msra.mxu0 %v2592
        %2594 = vmatprep.subr.mxu0 0.0
        %2595 = vmatpush1.msra.mxu0 0.0
        %2596 = vmatprep.subr.mxu0 0.0
        %2597 = vmatpush1.msra.mxu0 0.0
        %2598 = vmatprep.subr.mxu0 0.0
        %2599 = vmatpush1.msra.mxu0 0.0
        %2600 = vmatprep.subr.mxu0 0.0
        %2601 = vmatpush1.msra.mxu0 0.0
        %2602 = vmatprep.subr.mxu0 0.0
        %2603 = vmatpush1.msra.mxu0 0.0
        %2604 = vmatprep.subr.mxu0 0.0
        %2605 = vmatpush1.msra.mxu0 0.0
        %2606 = vmatprep.subr.mxu0 0.0
        %2607 = vmatpush1.msra.mxu0 0.0
        %2608 = vmatprep.subr.mxu0 0.0
        %2609 = vmatpush1.msra.mxu0 0.0
        %2610 = vmatprep.subr.mxu0 0.0
        %2611 = vmatpush1.msra.mxu0 0.0
        %2612 = vmatprep.subr.mxu0 0.0
        %2613 = vmatpush1.msra.mxu0 0.0
        %2614 = vmatprep.subr.mxu0 0.0
        %2615 = vmatpush1.msra.mxu0 0.0
        %2616 = vmatprep.subr.mxu0 0.0
        %2617 = vmatpush1.msra.mxu0 0.0
        %2618 = vmatprep.subr.mxu0 0.0
        %2619 = vmatpush1.msra.mxu0 0.0
        %2620 = vmatprep.subr.mxu0 0.0
        %2621 = vmatpush1.msra.mxu0 0.0
        %2622 = vmatprep.subr.mxu0 0.0
        %2623 = vmatpush1.msra.mxu0 0.0
        %2624 = vmatprep.subr.mxu0 0.0
        %2625 = vmatpush1.msra.mxu0 0.0
        %2626 = vmatprep.subr.mxu0 0.0
        %2627 = vmatpush1.msra.mxu0 0.0
        %2628 = vmatprep.subr.mxu0 0.0
        %2629 = vmatpush1.msra.mxu0 0.0
        %2630 = vmatprep.subr.mxu0 0.0
        %2631 = vmatpush1.msra.mxu0 0.0
        %2632 = vmatprep.subr.mxu0 0.0
        %2633 = vmatpush1.msra.mxu0 0.0
        %2634 = vmatprep.subr.mxu0 0.0
        %2635 = vmatpush1.msra.mxu0 0.0
        %2636 = vmatprep.subr.mxu0 0.0
        %2637 = vmatpush1.msra.mxu0 0.0
        %2638 = vmatprep.subr.mxu0 0.0
        %2639 = vmatpush1.msra.mxu0 0.0
        %2640 = vmatprep.subr.mxu0 0.0
        %2641 = vmatpush1.msra.mxu0 0.0
        %2642 = vmatprep.subr.mxu0 0.0
        %2643 = vmatpush1.msra.mxu0 0.0
        %2644 = vmatprep.subr.mxu0 0.0
        %2645 = vmatpush1.msra.mxu0 0.0
        %2646 = vmatprep.subr.mxu0 0.0
        %2647 = vmatpush1.msra.mxu0 0.0
        %2648 = vmatprep.subr.mxu0 0.0
        %2649 = vmatpush1.msra.mxu0 0.0
        %2650 = vmatprep.subr.mxu0 0.0
        %2651 = vmatpush1.msra.mxu0 0.0
        %2652 = vmatprep.mubr.f32.mxu0 0.0
        %v2653 = vand.u32 %v2378, 4294901760
        %v2654 = vsub.f32 %v2378, %v2653
        %2655 = vmatmul.mubr.f32.gmra.mrb[0].mxu0 %v2654
        %v2656 = vpop.f32.mrb[0].mxu0
        %v2657 = vadd.f32 %v2567, %v2656
        %v2658 = vpop.f32.mrb[0].mxu0
        %2659 = vmatprep.mubr.f32.mxu0 0.0
        %v2660 = vand.u32 %v2381, 4294901760
        %v2661 = vsub.f32 %v2381, %v2660
        %2662 = vmatmul.mubr.f32.gmra.mrb[0].mxu0 %v2661
        %v2663 = vpop.f32.mrb[0].mxu0
        %v2664 = vadd.f32 %v2573, %v2663
        %v2665 = vpop.f32.mrb[0].mxu0
        %2666 = vmatprep.mubr.f32.mxu0 0.0
        %v2667 = vand.u32 %v2384, 4294901760
        %v2668 = vsub.f32 %v2384, %v2667
        %2669 = vmatmul.mubr.f32.gmra.mrb[0].mxu0 %v2668
        %v2670 = vpop.f32.mrb[0].mxu0
        %v2671 = vadd.f32 %v2579, %v2670
        %v2672 = vpop.f32.mrb[0].mxu0
        %2673 = vdwg.mxu0
        %2674 = vmatprep.subr.mxu0 0.0
        %v2675 = vand.u32 %v586, 4294901760
        %2676 = vmatpush1.msra.mxu0 %v2675
        %2677 = vmatprep.subr.mxu0 0.0
        %v2678 = vand.u32 %v587, 4294901760
        %2679 = vmatpush1.msra.mxu0 %v2678
        %2680 = vmatprep.subr.mxu0 0.0
        %v2681 = vand.u32 %v588, 4294901760
        %2682 = vmatpush1.msra.mxu0 %v2681
        %2683 = vmatprep.subr.mxu0 0.0
        %2684 = vmatpush1.msra.mxu0 0.0
        %2685 = vmatprep.subr.mxu0 0.0
        %2686 = vmatpush1.msra.mxu0 0.0
        %2687 = vmatprep.subr.mxu0 0.0
        %2688 = vmatpush1.msra.mxu0 0.0
        %2689 = vmatprep.subr.mxu0 0.0
        %2690 = vmatpush1.msra.mxu0 0.0
        %2691 = vmatprep.subr.mxu0 0.0
        %2692 = vmatpush1.msra.mxu0 0.0
        %2693 = vmatprep.subr.mxu0 0.0
        %2694 = vmatpush1.msra.mxu0 0.0
        %2695 = vmatprep.subr.mxu0 0.0
        %2696 = vmatpush1.msra.mxu0 0.0
        %2697 = vmatprep.subr.mxu0 0.0
        %2698 = vmatpush1.msra.mxu0 0.0
        %2699 = vmatprep.subr.mxu0 0.0
        %2700 = vmatpush1.msra.mxu0 0.0
        %2701 = vmatprep.subr.mxu0 0.0
        %2702 = vmatpush1.msra.mxu0 0.0
        %2703 = vmatprep.subr.mxu0 0.0
        %2704 = vmatpush1.msra.mxu0 0.0
        %2705 = vmatprep.subr.mxu0 0.0
        %2706 = vmatpush1.msra.mxu0 0.0
        %2707 = vmatprep.subr.mxu0 0.0
        %2708 = vmatpush1.msra.mxu0 0.0
        %2709 = vmatprep.subr.mxu0 0.0
        %2710 = vmatpush1.msra.mxu0 0.0
        %2711 = vmatprep.subr.mxu0 0.0
        %2712 = vmatpush1.msra.mxu0 0.0
        %2713 = vmatprep.subr.mxu0 0.0
        %2714 = vmatpush1.msra.mxu0 0.0
        %2715 = vmatprep.subr.mxu0 0.0
        %2716 = vmatpush1.msra.mxu0 0.0
        %2717 = vmatprep.subr.mxu0 0.0
        %2718 = vmatpush1.msra.mxu0 0.0
        %2719 = vmatprep.subr.mxu0 0.0
        %2720 = vmatpush1.msra.mxu0 0.0
        %2721 = vmatprep.subr.mxu0 0.0
        %2722 = vmatpush1.msra.mxu0 0.0
        %2723 = vmatprep.subr.mxu0 0.0
        %2724 = vmatpush1.msra.mxu0 0.0
        %2725 = vmatprep.subr.mxu0 0.0
        %2726 = vmatpush1.msra.mxu0 0.0
        %2727 = vmatprep.subr.mxu0 0.0
        %2728 = vmatpush1.msra.mxu0 0.0
        %2729 = vmatprep.subr.mxu0 0.0
        %2730 = vmatpush1.msra.mxu0 0.0
        %2731 = vmatprep.subr.mxu0 0.0
        %2732 = vmatpush1.msra.mxu0 0.0
        %2733 = vmatprep.subr.mxu0 0.0
        %2734 = vmatpush1.msra.mxu0 0.0
        %2735 = vmatprep.subr.mxu0 0.0
        %2736 = vmatpush1.msra.mxu0 0.0
        %2737 = vmatprep.subr.mxu0 0.0
        %2738 = vmatpush1.msra.mxu0 0.0
        %2739 = vmatprep.subr.mxu0 0.0
        %2740 = vmatpush1.msra.mxu0 0.0
        %2741 = vmatprep.mubr.f32.mxu0 0.0
        %v2742 = vand.u32 %v2378, 4294901760
        %v2743 = vsub.f32 %v2378, %v2742
        %v2744 = vand.u32 %v2743, 4294901760
        %2745 = vmatmul.mubr.f32.gmra.mrb[0].mxu0 %v2744
        %v2746 = vpop.f32.mrb[0].mxu0
        %v2747 = vadd.f32 %v2657, %v2746
        %v2748 = vpop.f32.mrb[0].mxu0
        %2749 = vmatprep.mubr.f32.mxu0 0.0
        %v2750 = vand.u32 %v2381, 4294901760
        %v2751 = vsub.f32 %v2381, %v2750
        %v2752 = vand.u32 %v2751, 4294901760
        %2753 = vmatmul.mubr.f32.gmra.mrb[0].mxu0 %v2752
        %v2754 = vpop.f32.mrb[0].mxu0
        %v2755 = vadd.f32 %v2664, %v2754
        %v2756 = vpop.f32.mrb[0].mxu0
        %2757 = vmatprep.mubr.f32.mxu0 0.0
        %v2758 = vand.u32 %v2384, 4294901760
        %v2759 = vsub.f32 %v2384, %v2758
        %v2760 = vand.u32 %v2759, 4294901760
        %2761 = vmatmul.mubr.f32.gmra.mrb[0].mxu0 %v2760
        %v2762 = vpop.f32.mrb[0].mxu0
        %v2763 = vadd.f32 %v2671, %v2762
        %v2764 = vpop.f32.mrb[0].mxu0
        %2765 = vdwg.mxu0
        %2766 = vmatprep.subr.mxu0 0.0
        %v2767 = vand.u32 %v586, 4294901760
        %v2768 = vsub.f32 %v586, %v2767
        %v2769 = vand.u32 %v2768, 4294901760
        %2770 = vmatpush1.msra.mxu0 %v2769
        %2771 = vmatprep.subr.mxu0 0.0
        %v2772 = vand.u32 %v587, 4294901760
        %v2773 = vsub.f32 %v587, %v2772
        %v2774 = vand.u32 %v2773, 4294901760
        %2775 = vmatpush1.msra.mxu0 %v2774
        %2776 = vmatprep.subr.mxu0 0.0
        %v2777 = vand.u32 %v588, 4294901760
        %v2778 = vsub.f32 %v588, %v2777
        %v2779 = vand.u32 %v2778, 4294901760
        %2780 = vmatpush1.msra.mxu0 %v2779
        %2781 = vmatprep.subr.mxu0 0.0
        %2782 = vmatpush1.msra.mxu0 0.0
        %2783 = vmatprep.subr.mxu0 0.0
        %2784 = vmatpush1.msra.mxu0 0.0
        %2785 = vmatprep.subr.mxu0 0.0
        %2786 = vmatpush1.msra.mxu0 0.0
        %2787 = vmatprep.subr.mxu0 0.0
        %2788 = vmatpush1.msra.mxu0 0.0
        %2789 = vmatprep.subr.mxu0 0.0
        %2790 = vmatpush1.msra.mxu0 0.0
        %2791 = vmatprep.subr.mxu0 0.0
        %2792 = vmatpush1.msra.mxu0 0.0
        %2793 = vmatprep.subr.mxu0 0.0
        %2794 = vmatpush1.msra.mxu0 0.0
        %2795 = vmatprep.subr.mxu0 0.0
        %2796 = vmatpush1.msra.mxu0 0.0
        %2797 = vmatprep.subr.mxu0 0.0
        %2798 = vmatpush1.msra.mxu0 0.0
        %2799 = vmatprep.subr.mxu0 0.0
        %2800 = vmatpush1.msra.mxu0 0.0
        %2801 = vmatprep.subr.mxu0 0.0
        %2802 = vmatpush1.msra.mxu0 0.0
        %2803 = vmatprep.subr.mxu0 0.0
        %2804 = vmatpush1.msra.mxu0 0.0
        %2805 = vmatprep.subr.mxu0 0.0
        %2806 = vmatpush1.msra.mxu0 0.0
        %2807 = vmatprep.subr.mxu0 0.0
        %2808 = vmatpush1.msra.mxu0 0.0
        %2809 = vmatprep.subr.mxu0 0.0
        %2810 = vmatpush1.msra.mxu0 0.0
        %2811 = vmatprep.subr.mxu0 0.0
        %2812 = vmatpush1.msra.mxu0 0.0
        %2813 = vmatprep.subr.mxu0 0.0
        %2814 = vmatpush1.msra.mxu0 0.0
        %2815 = vmatprep.subr.mxu0 0.0
        %2816 = vmatpush1.msra.mxu0 0.0
        %2817 = vmatprep.subr.mxu0 0.0
        %2818 = vmatpush1.msra.mxu0 0.0
        %2819 = vmatprep.subr.mxu0 0.0
        %2820 = vmatpush1.msra.mxu0 0.0
        %2821 = vmatprep.subr.mxu0 0.0
        %2822 = vmatpush1.msra.mxu0 0.0
        %2823 = vmatprep.subr.mxu0 0.0
        %2824 = vmatpush1.msra.mxu0 0.0
        %2825 = vmatprep.subr.mxu0 0.0
        %2826 = vmatpush1.msra.mxu0 0.0
        %2827 = vmatprep.subr.mxu0 0.0
        %2828 = vmatpush1.msra.mxu0 0.0
        %2829 = vmatprep.subr.mxu0 0.0
        %2830 = vmatpush1.msra.mxu0 0.0
        %2831 = vmatprep.subr.mxu0 0.0
        %2832 = vmatpush1.msra.mxu0 0.0
        %2833 = vmatprep.subr.mxu0 0.0
        %2834 = vmatpush1.msra.mxu0 0.0
        %2835 = vmatprep.subr.mxu0 0.0
        %2836 = vmatpush1.msra.mxu0 0.0
        %2837 = vmatprep.subr.mxu0 0.0
        %2838 = vmatpush1.msra.mxu0 0.0
        %2839 = vmatprep.mubr.f32.mxu0 0.0
        %v2840 = vand.u32 %v2378, 4294901760
        %2841 = vmatmul.mubr.f32.gmra.mrb[0].mxu0 %v2840
        %v2842 = vpop.f32.mrb[0].mxu0
        %v2843 = vadd.f32 %v2747, %v2842
        %v2844 = vpop.f32.mrb[0].mxu0
        %2845 = vmatprep.mubr.f32.mxu0 0.0
        %v2846 = vand.u32 %v2381, 4294901760
        %2847 = vmatmul.mubr.f32.gmra.mrb[0].mxu0 %v2846
        %v2848 = vpop.f32.mrb[0].mxu0
        %v2849 = vadd.f32 %v2755, %v2848
        %v2850 = vpop.f32.mrb[0].mxu0
        %2851 = vmatprep.mubr.f32.mxu0 0.0
        %v2852 = vand.u32 %v2384, 4294901760
        %2853 = vmatmul.mubr.f32.gmra.mrb[0].mxu0 %v2852
        %v2854 = vpop.f32.mrb[0].mxu0
        %v2855 = vadd.f32 %v2763, %v2854
        %v2856 = vpop.f32.mrb[0].mxu0
        %2857 = vdwg.mxu0
        %2858 = vmatprep.subr.mxu0 0.0
        %v2859 = vand.u32 %v586, 4294901760
        %2860 = vmatpush1.msra.mxu0 %v2859
        %2861 = vmatprep.subr.mxu0 0.0
        %v2862 = vand.u32 %v587, 4294901760
        %2863 = vmatpush1.msra.mxu0 %v2862
        %2864 = vmatprep.subr.mxu0 0.0
        %v2865 = vand.u32 %v588, 4294901760
        %2866 = vmatpush1.msra.mxu0 %v2865
        %2867 = vmatprep.subr.mxu0 0.0
        %2868 = vmatpush1.msra.mxu0 0.0
        %2869 = vmatprep.subr.mxu0 0.0
        %2870 = vmatpush1.msra.mxu0 0.0
        %2871 = vmatprep.subr.mxu0 0.0
        %2872 = vmatpush1.msra.mxu0 0.0
        %2873 = vmatprep.subr.mxu0 0.0
        %2874 = vmatpush1.msra.mxu0 0.0
        %2875 = vmatprep.subr.mxu0 0.0
        %2876 = vmatpush1.msra.mxu0 0.0
        %2877 = vmatprep.subr.mxu0 0.0
        %2878 = vmatpush1.msra.mxu0 0.0
        %2879 = vmatprep.subr.mxu0 0.0
        %2880 = vmatpush1.msra.mxu0 0.0
        %2881 = vmatprep.subr.mxu0 0.0
        %2882 = vmatpush1.msra.mxu0 0.0
        %2883 = vmatprep.subr.mxu0 0.0
        %2884 = vmatpush1.msra.mxu0 0.0
        %2885 = vmatprep.subr.mxu0 0.0
        %2886 = vmatpush1.msra.mxu0 0.0
        %2887 = vmatprep.subr.mxu0 0.0
        %2888 = vmatpush1.msra.mxu0 0.0
        %2889 = vmatprep.subr.mxu0 0.0
        %2890 = vmatpush1.msra.mxu0 0.0
        %2891 = vmatprep.subr.mxu0 0.0
        %2892 = vmatpush1.msra.mxu0 0.0
        %2893 = vmatprep.subr.mxu0 0.0
        %2894 = vmatpush1.msra.mxu0 0.0
        %2895 = vmatprep.subr.mxu0 0.0
        %2896 = vmatpush1.msra.mxu0 0.0
        %2897 = vmatprep.subr.mxu0 0.0
        %2898 = vmatpush1.msra.mxu0 0.0
        %2899 = vmatprep.subr.mxu0 0.0
        %2900 = vmatpush1.msra.mxu0 0.0
        %2901 = vmatprep.subr.mxu0 0.0
        %2902 = vmatpush1.msra.mxu0 0.0
        %2903 = vmatprep.subr.mxu0 0.0
        %2904 = vmatpush1.msra.mxu0 0.0
        %2905 = vmatprep.subr.mxu0 0.0
        %2906 = vmatpush1.msra.mxu0 0.0
        %2907 = vmatprep.subr.mxu0 0.0
        %2908 = vmatpush1.msra.mxu0 0.0
        %2909 = vmatprep.subr.mxu0 0.0
        %2910 = vmatpush1.msra.mxu0 0.0
        %2911 = vmatprep.subr.mxu0 0.0
        %2912 = vmatpush1.msra.mxu0 0.0
        %2913 = vmatprep.subr.mxu0 0.0
        %2914 = vmatpush1.msra.mxu0 0.0
        %2915 = vmatprep.subr.mxu0 0.0
        %2916 = vmatpush1.msra.mxu0 0.0
        %2917 = vmatprep.subr.mxu0 0.0
        %2918 = vmatpush1.msra.mxu0 0.0
        %2919 = vmatprep.subr.mxu0 0.0
        %2920 = vmatpush1.msra.mxu0 0.0
        %2921 = vmatprep.subr.mxu0 0.0
        %2922 = vmatpush1.msra.mxu0 0.0
        %2923 = vmatprep.subr.mxu0 0.0
        %2924 = vmatpush1.msra.mxu0 0.0
        %2925 = vmatprep.mubr.f32.mxu0 0.0
        %v2926 = vand.u32 %v2378, 4294901760
        %2927 = vmatmul.mubr.f32.gmra.mrb[0].mxu0 %v2926
        %v2928 = vpop.f32.mrb[0].mxu0
        %v2929 = vadd.f32 %v2843, %v2928
        %v2930 = vpop.f32.mrb[0].mxu0
        %2931 = vmatprep.mubr.f32.mxu0 0.0
        %v2932 = vand.u32 %v2381, 4294901760
        %2933 = vmatmul.mubr.f32.gmra.mrb[0].mxu0 %v2932
        %v2934 = vpop.f32.mrb[0].mxu0
        %v2935 = vadd.f32 %v2849, %v2934
        %v2936 = vpop.f32.mrb[0].mxu0
        %2937 = vmatprep.mubr.f32.mxu0 0.0
        %v2938 = vand.u32 %v2384, 4294901760
        %2939 = vmatmul.mubr.f32.gmra.mrb[0].mxu0 %v2938
        %v2940 = vpop.f32.mrb[0].mxu0
        %v2941 = vadd.f32 %v2855, %v2940
        %v2942 = vpop.f32.mrb[0].mxu0
        %2943 = vdwg.mxu0
        %2944 = vst.msk [vmem:[%s555] sm:$0xff] %vm589, %v2929
        %2945 = vst.msk [vmem:[%s555 + $0x8] sm:$0xff] %vm589, %v2935
        %2946 = vst.msk [vmem:[%s555 + $0x10] sm:$0xff] %vm589, %v2941
        %s2947 = sand.u32 %s259, 1
        %s2948 = scalar_lea.sflag [#allocation5], %s2947
        %s2949 = sand.u32 %s259, 1
        %s2950 = smul.addr %s2949, 24
        %s2951 = scalar_lea.vmem [#allocation15], %s2950
        %s2952 = sand.u32 %s285, 1
        %s2953 = scalar_lea.sflag [#allocation17], %s2952
        %s2954 = sand.u32 %s285, 1
        %s2955 = smul.addr %s2954, 24
        %s2956 = scalar_lea.vmem [#allocation16], %s2955
        // Predicated region
        $region85: #{tpu_custom_call.1} parent=55 // pred_check
          %p2957 = pneg %p269
        $region86: #{tpu_custom_call.1} parent=55 // pred_check_branch
          %2959 = sbr.rel (%p2957) target = $region88
        $region87: #{tpu_custom_call.1} parent=55 // pred_region
          %s2961 = ssub.s32 384, 384
          %2962 = vsyncadd %s2948, %s2961
          %s2963 = smul.addr %s37, 3
          %s2964 = smul.addr %s2963, 128
          %s2965 = scalar_lea.hbm %s9, %s2964
          %s2966 = sshll.u32 %s2951, 4
          %s2967 = int_to_ptr.vmem [resolvable:$true] %s2966
          %2972 = dma.vmem_to_hbm [thread:$0]  %s2967, 384, %s2965, %s2948, 128, 128, 8
        $region88: #{tpu_custom_call.1} parent=55 // pred_fallthru
          _
        // Predicated region
        $region89: #{tpu_custom_call.1} parent=55 // pred_check
          %p2973 = pneg %p295
        $region90: #{tpu_custom_call.1} parent=55 // pred_check_branch
          %2975 = sbr.rel (%p2973) target = $region92
        $region91: #{tpu_custom_call.1} parent=55 // pred_region
          %s2977 = ssub.s32 384, 384
          %2978 = vsyncadd %s2953, %s2977
          %s2979 = smul.addr %s37, 3
          %s2980 = smul.addr %s2979, 128
          %s2981 = scalar_lea.hbm %s10, %s2980
          %s2982 = sshll.u32 %s2956, 4
          %s2983 = int_to_ptr.vmem [resolvable:$true] %s2982
          %2988 = dma.vmem_to_hbm [thread:$0]  %s2983, 384, %s2981, %s2953, 128, 128, 8
        $region92: #{tpu_custom_call.1} parent=55 // pred_fallthru
          _
      $region56: #{tpu_custom_call.1} parent=5 // pred_fallthru
        _
      %p2989 = scmp.le.s32.totalorder 2, %s32
      // Predicated region
      $region93: #{tpu_custom_call.1} parent=5 // pred_check
        %p2990 = pneg %p2989
      $region94: #{tpu_custom_call.1} parent=5 // pred_check_branch
        %2992 = sbr.rel (%p2990) target = $region96
      $region95: #{tpu_custom_call.1} parent=5 // pred_region
        %s2993 = ssub.s32 %s32, 2
        // Predicated region
        $region97: #{tpu_custom_call.1} parent=95 // pred_check
          %p2994 = pneg %p275
        $region98: #{tpu_custom_call.1} parent=95 // pred_check_branch
          %2996 = sbr.rel (%p2994) target = $region100
        $region99: #{tpu_custom_call.1} parent=95 // pred_region
          %s2997 = sand.u32 %s260, 1
          %s2998 = scalar_lea.sflag [#allocation5], %s2997
          %s2999 = sand.u32 %s260, 1
          %s3000 = smul.addr %s2999, 24
          %s3001 = scalar_lea.vmem [#allocation15], %s3000
          %3002 = dma.done %s2998, 384
        $region100: #{tpu_custom_call.1} parent=95 // pred_fallthru
          _
        // Predicated region
        $region101: #{tpu_custom_call.1} parent=95 // pred_check
          %p3003 = pneg %p301
        $region102: #{tpu_custom_call.1} parent=95 // pred_check_branch
          %3005 = sbr.rel (%p3003) target = $region104
        $region103: #{tpu_custom_call.1} parent=95 // pred_region
          %s3006 = sand.u32 %s286, 1
          %s3007 = scalar_lea.sflag [#allocation17], %s3006
          %s3008 = sand.u32 %s286, 1
          %s3009 = smul.addr %s3008, 24
          %s3010 = scalar_lea.vmem [#allocation16], %s3009
          %3011 = dma.done %s3007, 384
        $region104: #{tpu_custom_call.1} parent=95 // pred_fallthru
          _
      $region96: #{tpu_custom_call.1} parent=5 // pred_fallthru
        _
    $region6: #{tpu_custom_call.1} parent=1 // loop_footer
      %s36 = sadd.s32 1, %s32
    $region7: #{tpu_custom_call.1} parent=1 // loop_footer_branch
      %31 = sbr.rel target = $region3
    $region8: #{tpu_custom_call.1} parent=1 // loop_exit
      _
    %3012 = vsyncpa [#allocation4], 1
    %s3013 = scalar_lea.sflag [#allocation4], 1
    %3014 = vsyncpa %s3013, 1
    %3015 = vsyncpa [#allocation7], 1
    %3016 = vsyncpa [#allocation10], 1
    %s3017 = scalar_lea.sflag [#allocation10], 1
    %3018 = vsyncpa %s3017, 1
    %3019 = vsyncpa [#allocation13], 1
    %s3020 = scalar_lea.sflag [#allocation13], 1
    %3021 = vsyncpa %s3020, 1
    %3022 = vsyncpa [#allocation5], 1
    %s3023 = scalar_lea.sflag [#allocation5], 1
    %3024 = vsyncpa %s3023, 1
    %3025 = vsyncpa [#allocation17], 1
    %s3026 = scalar_lea.sflag [#allocation17], 1
    %3027 = vsyncpa %s3026, 1

</llo_original>
